<compile_context>
chip_gen: v5e
topology: v5e:2x2
jax: 0.10.0
libtpu: 0.0.40
codegen_flags: <defaults>
</compile_context>

<pallas_src>
import jax
import jax.numpy as jnp
from jax.experimental import pallas as pl
from jax.experimental.pallas import tpu as pltpu


def _round_up(v: int, m: int) -> int:
    return ((v + m - 1) // m) * m


def _cdiv(a: int, b: int) -> int:
    return (a + b - 1) // b


# ---------------------------------------------------------------------------
# Kernels
# ---------------------------------------------------------------------------
def _ffn_resident_kernel(x_ref, w1_ref, b1_ref, w2_ref, b2_ref, o_ref):
    """Whole-d_ff FFN for one token tile; weights are grid-constant blocks."""
    x = x_ref[...]                                                     # (tm, d_model)
    h = jnp.dot(x, w1_ref[...], preferred_element_type=jnp.float32)   # (tm, d_ff)
    h = jnp.maximum(h + b1_ref[...], 0.0)                             # bias + ReLU
    # TODO(synk): dropout omitted (inference semantics == identity); training-mode
    #             dropout would use pltpu.prng_seed / prng_random_bits here.
    o_ref[...] = (
        jnp.dot(h.astype(x.dtype), w2_ref[...], preferred_element_type=jnp.float32)
        + b2_ref[...]
    ).astype(o_ref.dtype)


def _ffn_chunked_kernel(x_ref, w1_ref, b1_ref, w2_ref, b2_ref, o_ref, acc_ref):
    """One (token_tile, d_ff_chunk) step with f32 accumulation over d_ff."""
    f = pl.program_id(1)

    @pl.when(f == 0)
    def _():
        acc_ref[...] = jnp.zeros_like(acc_ref)

    x = x_ref[...]                                                     # (tm, d_model)
    h = jnp.dot(x, w1_ref[...], preferred_element_type=jnp.float32)   # (tm, tf)
    h = jnp.maximum(h + b1_ref[...], 0.0)                             # bias + ReLU
    # TODO(synk): dropout omitted (inference semantics == identity).
    acc_ref[...] += jnp.dot(h.astype(x.dtype), w2_ref[...],
                            preferred_element_type=jnp.float32)        # (tm, d_model)

    @pl.when(f == pl.num_programs(1) - 1)
    def _():
        o_ref[...] = (acc_ref[...] + b2_ref[...]).astype(o_ref.dtype)


# ---------------------------------------------------------------------------
# Tiling / VMEM heuristics
# ---------------------------------------------------------------------------
def _pick_ff_tile(d_ff: int, cap: int) -> int:
    """Largest 128-multiple divisor of d_ff that is <= cap (fallback: d_ff)."""
    if d_ff <= cap:
        return d_ff
    t = (cap // 128) * 128
    while t >= 128:
        if d_ff % t == 0:
            return t
        t -= 128
    t = (cap // 8) * 8
    while t >= 8:
        if d_ff % t == 0:
            return t
        t -= 8
    return d_ff


def _resident_vmem_bytes(tm, d_model, d_ff, x_bytes, w_bytes):
    tile_io = 2 * tm * d_model * x_bytes * 2            # x + out tiles, double-buffered
    weights = 2 * d_model * d_ff * w_bytes * 2          # w1 + w2 (buffered; fetched once)
    biases = (d_ff + d_model) * w_bytes * 2
    h = tm * d_ff * 4                                   # f32 intermediate
    return tile_io + weights + biases + h


def _chunked_vmem_bytes(tm, tf, d_model, x_bytes, w_bytes):
    tile_io = 2 * tm * d_model * x_bytes * 2            # x + out tiles, double-buffered
    wblocks = 2 * d_model * tf * w_bytes * 2            # w1/w2 chunks, double-buffered
    biases = (tf + d_model) * w_bytes * 2
    acc = tm * d_model * 4                              # f32 accumulator scratch
    h = tm * tf * 4                                     # f32 intermediate
    return tile_io + wblocks + biases + acc + h


# ---------------------------------------------------------------------------
# Wrapper
# ---------------------------------------------------------------------------
def feed_forward(x, w1, b1, w2, b2, *, token_tile=256, ff_tile=512,
                 vmem_budget_bytes=24 * 1024 * 1024):
    """x: (..., d_model) -> (..., d_model).

    w1: (d_model, d_ff), b1: (d_ff,), w2: (d_ff, d_model), b2: (d_model,)
    """
    orig_shape = x.shape
    d_model = orig_shape[-1]
    d_ff = w1.shape[1]
    assert w1.shape == (d_model, d_ff)
    assert b1.shape == (d_ff,)
    assert w2.shape == (d_ff, d_model)
    assert b2.shape == (d_model,)

    x2 = x.reshape(-1, d_model)                          # (N, d_model), token-major
    n = x2.shape[0]
    x_bytes = jnp.dtype(x2.dtype).itemsize
    w_bytes = jnp.dtype(w1.dtype).itemsize

    # Token tile: sublane-aligned; ragged last tile is handled by Pallas
    # (padded read / masked write), so no host-side pad or output slice.
    tm = min(token_tile, _round_up(n, 8))
    tm = max(8, _round_up(tm, 8))
    # Megacore balance (v7x): give the "parallel" token axis at least 2 tiles.
    if _cdiv(n, tm) == 1 and n > 64:
        tm = _round_up(_cdiv(n, 2), 8)
    n_tiles = _cdiv(n, tm)

    b1_2d = b1.reshape(1, d_ff)
    b2_2d = b2.reshape(1, d_model)

    resident = _resident_vmem_bytes(tm, d_model, d_ff, x_bytes, w_bytes) <= vmem_budget_bytes

    if resident:
        # ---- Weights fully resident in VMEM: fetched from HBM exactly once. ----
        tf = d_ff
        grid = (n_tiles,)
        in_specs = [
            pl.BlockSpec((tm, d_model), lambda i: (i, 0)),
            pl.BlockSpec((d_model, d_ff), lambda i: (0, 0)),   # grid-constant
            pl.BlockSpec((1, d_ff), lambda i: (0, 0)),
            pl.BlockSpec((d_ff, d_model), lambda i: (0, 0)),   # grid-constant
            pl.BlockSpec((1, d_model), lambda i: (0, 0)),
        ]
        out_specs = pl.BlockSpec((tm, d_model), lambda i: (i, 0))
        scratch_shapes = []
        kernel = _ffn_resident_kernel
        dims = ("parallel",)
        weight_streams = 1
        vmem_est = _resident_vmem_bytes(tm, d_model, d_ff, x_bytes, w_bytes)
    else:
        # ---- d_ff-chunked reduction with an f32 VMEM accumulator. ----
        tf = _pick_ff_tile(d_ff, ff_tile)
        while (_chunked_vmem_bytes(tm, tf, d_model, x_bytes, w_bytes) > vmem_budget_bytes
               and tf > 128):
            new_tf = _pick_ff_tile(d_ff, tf // 2)
            if new_tf >= tf:
                break
            tf = new_tf
        while (_chunked_vmem_bytes(tm, tf, d_model, x_bytes, w_bytes) > vmem_budget_bytes
               and tm > 64):
            tm = max(8, _round_up(tm // 2, 8))
        n_tiles = _cdiv(n, tm)

        grid = (n_tiles, d_ff // tf)
        in_specs = [
            pl.BlockSpec((tm, d_model), lambda i, f: (i, 0)),
            pl.BlockSpec((d_model, tf), lambda i, f: (0, f)),
            pl.BlockSpec((1, tf), lambda i, f: (0, f)),
            pl.BlockSpec((tf, d_model), lambda i, f: (f, 0)),
            pl.BlockSpec((1, d_model), lambda i, f: (0, 0)),
        ]
        # Constant block index along f => output tile stays resident across the
        # d_ff reduction and is written back once per token tile.
        out_specs = pl.BlockSpec((tm, d_model), lambda i, f: (i, 0))
        scratch_shapes = [pltpu.VMEM((tm, d_model), jnp.float32)]
        kernel = _ffn_chunked_kernel
        dims = ("parallel", "arbitrary")
        weight_streams = n_tiles                      # weights re-streamed per token tile
        vmem_est = _chunked_vmem_bytes(tm, tf, d_model, x_bytes, w_bytes)

    n_proc = n_tiles * tm
    weight_bytes = 2 * d_model * d_ff * w_bytes
    cost = pl.CostEstimate(
        flops=4 * n_proc * d_model * d_ff,            # two matmuls
        transcendentals=0,
        bytes_accessed=(
            n_proc * d_model * x_bytes                # x read
            + n_proc * d_model * x_bytes              # out write
            + weight_bytes * weight_streams           # weights (re-)streamed
            + (d_ff + d_model) * w_bytes * weight_streams
        ),
    )

    vmem_limit = int(min(32 * 1024 * 1024, max(16 * 1024 * 1024, 2 * vmem_est)))

    out = pl.pallas_call(
        kernel,
        out_shape=jax.ShapeDtypeStruct((n, d_model), x.dtype),
        grid_spec=pltpu.PrefetchScalarGridSpec(
            num_scalar_prefetch=0,
            grid=grid,
            in_specs=in_specs,
            out_specs=out_specs,
            scratch_shapes=scratch_shapes,
        ),
        compiler_params=pltpu.CompilerParams(
            dimension_semantics=dims,
            vmem_limit_bytes=vmem_limit),
        cost_estimate=cost,
    )(x2, w1, b1_2d, w2, b2_2d)

    return out.reshape(orig_shape)


# ---------------------------------------------------------------------------
# Parameters / reference
# ---------------------------------------------------------------------------
def init_params(key, d_model, d_ff, dtype=jnp.bfloat16):
    """Deterministic synthetic parameters (nn.Linear weights, pre-transposed)."""
    k1, k2, k3, k4 = jax.random.split(key, 4)
    w1 = jax.random.normal(k1, (d_model, d_ff), dtype) * jnp.asarray(0.02, dtype)
    b1 = jax.random.normal(k2, (d_ff,), dtype) * jnp.asarray(0.02, dtype)
    w2 = jax.random.normal(k3, (d_ff, d_model), dtype) * jnp.asarray(0.02, dtype)
    b2 = jax.random.normal(k4, (d_model,), dtype) * jnp.asarray(0.02, dtype)
    return w1, b1, w2, b2


def feed_forward_ref(x, w1, b1, w2, b2):
    """Plain-JAX reference for correctness checking."""
    h = jnp.maximum(x @ w1 + b1, 0.0)
    return h @ w2 + b2


if __name__ == "__main__":
    # (seq, batch, d_model) tokens, DETR-style FFN but small.
    # N = 50*8 = 400 tokens -> 2 token tiles of 256 with a ragged last tile
    # (exercises the cdiv / masked-edge path, no host pad/slice).
    seq, batch, d_model, d_ff = 50, 8, 256, 1024
    dtype = jnp.bfloat16                                  # MXU-native on v6e/v7x

    key = jax.random.PRNGKey(0)
    kx, kp = jax.random.split(key)
    x = jax.random.normal(kx, (seq, batch, d_model), dtype)
    w1, b1, w2, b2 = init_params(kp, d_model, d_ff, dtype)

    # f32 reference on the same (bf16-valued) operands.
    y_ref = feed_forward_ref(x.astype(jnp.float32), w1.astype(jnp.float32),
                             b1.astype(jnp.float32), w2.astype(jnp.float32),
                             b2.astype(jnp.float32))

    # Path 1: weight-resident (weights fit in VMEM -> fetched from HBM once).
    y = feed_forward(x, w1, b1, w2, b2)
    y = jax.block_until_ready(y)
    assert y.shape == x.shape
    assert jnp.allclose(y.astype(jnp.float32), y_ref, atol=2e-2, rtol=2e-2)

    # Path 2: force the d_ff-chunked accumulation path with a tiny VMEM budget
    # (covers the large-d_ff fallback: grid (token_tiles, d_ff//tf) + f32 acc).
    y2 = feed_forward(x, w1, b1, w2, b2, vmem_budget_bytes=2 * 1024 * 1024)
    y2 = jax.block_until_ready(y2)
    assert jnp.allclose(y2.astype(jnp.float32), y_ref, atol=2e-2, rtol=2e-2)

    print("KERNEL_OK")
</pallas_src>

<mosaic_0001>
module attributes {stable_mosaic.version = 11 : i64} {
  func.func @_ffn_resident_kernel(%arg0: i32, %arg1: memref<256x256xbf16, #tpu.memory_space<vmem>>, %arg2: memref<256x1024xbf16, #tpu.memory_space<vmem>>, %arg3: memref<1x1024xbf16, #tpu.memory_space<vmem>>, %arg4: memref<1024x256xbf16, #tpu.memory_space<vmem>>, %arg5: memref<1x256xbf16, #tpu.memory_space<vmem>>, %arg6: memref<256x256xbf16, #tpu.memory_space<vmem>>) attributes {dimension_semantics = [#tpu.dimension_semantics<parallel>], iteration_bounds = array<i64: 2>, scalar_prefetch = 0 : i64, scratch_operands = 0 : i64, tpu.core_type = #tpu.core_type<tc>, window_params = [{transform_indices = @transform_0, window_bounds = array<i64: 256, 256>}, {pipeline_mode = #tpu.pipeline_mode<synchronous>, transform_indices = @transform_1, window_bounds = array<i64: 256, 1024>}, {pipeline_mode = #tpu.pipeline_mode<synchronous>, transform_indices = @transform_2, window_bounds = array<i64: 1, 1024>}, {pipeline_mode = #tpu.pipeline_mode<synchronous>, transform_indices = @transform_3, window_bounds = array<i64: 1024, 256>}, {pipeline_mode = #tpu.pipeline_mode<synchronous>, transform_indices = @transform_4, window_bounds = array<i64: 1, 256>}, {transform_indices = @transform_5, window_bounds = array<i64: 256, 256>}]} {
    %c0 = arith.constant 0 : index
    %c0_0 = arith.constant 0 : index
    %0 = vector.load %arg1[%c0, %c0_0] : memref<256x256xbf16, #tpu.memory_space<vmem>>, vector<256x256xbf16>
    %c0_1 = arith.constant 0 : index
    %c0_2 = arith.constant 0 : index
    %1 = vector.load %arg2[%c0_1, %c0_2] : memref<256x1024xbf16, #tpu.memory_space<vmem>>, vector<256x1024xbf16>
    %cst = arith.constant dense<0.000000e+00> : vector<256x1024xf32>
    %2 = tpu.matmul %0, %1, %cst {dimension_numbers = #tpu.dot_dimension_numbers<[1], [0], [0], [1], [0, 0, 1, 1], [], []>} : vector<256x256xbf16>, vector<256x1024xbf16>, vector<256x1024xf32> -> vector<256x1024xf32>
    %c0_3 = arith.constant 0 : index
    %c0_4 = arith.constant 0 : index
    %3 = vector.load %arg3[%c0_3, %c0_4] : memref<1x1024xbf16, #tpu.memory_space<vmem>>, vector<1x1024xbf16>
    %4 = arith.extf %3 : vector<1x1024xbf16> to vector<1x1024xf32>
    %5 = vector.broadcast %4 : vector<1x1024xf32> to vector<256x1024xf32>
    %6 = arith.addf %2, %5 : vector<256x1024xf32>
    %cst_5 = arith.constant 0.000000e+00 : f32
    %7 = vector.broadcast %cst_5 : f32 to vector<256x1024xf32>
    %8 = arith.maximumf %6, %7 : vector<256x1024xf32>
    %9 = arith.truncf %8 : vector<256x1024xf32> to vector<256x1024xbf16>
    %c0_6 = arith.constant 0 : index
    %c0_7 = arith.constant 0 : index
    %10 = vector.load %arg4[%c0_6, %c0_7] : memref<1024x256xbf16, #tpu.memory_space<vmem>>, vector<1024x256xbf16>
    %cst_8 = arith.constant dense<0.000000e+00> : vector<256x256xf32>
    %11 = tpu.matmul %9, %10, %cst_8 {dimension_numbers = #tpu.dot_dimension_numbers<[1], [0], [0], [1], [0, 0, 1, 1], [], []>} : vector<256x1024xbf16>, vector<1024x256xbf16>, vector<256x256xf32> -> vector<256x256xf32>
    %c0_9 = arith.constant 0 : index
    %c0_10 = arith.constant 0 : index
    %12 = vector.load %arg5[%c0_9, %c0_10] : memref<1x256xbf16, #tpu.memory_space<vmem>>, vector<1x256xbf16>
    %13 = arith.extf %12 : vector<1x256xbf16> to vector<1x256xf32>
    %14 = vector.broadcast %13 : vector<1x256xf32> to vector<256x256xf32>
    %15 = arith.addf %11, %14 : vector<256x256xf32>
    %16 = arith.truncf %15 : vector<256x256xf32> to vector<256x256xbf16>
    %c0_11 = arith.constant 0 : index
    %c0_12 = arith.constant 0 : index
    %17 = vector.load %arg6[%c0_11, %c0_12] : memref<256x256xbf16, #tpu.memory_space<vmem>>, vector<256x256xbf16>
    tpu.vector_store %arg6[%c0_11, %c0_12], %16 {strides = array<i32>} : memref<256x256xbf16, #tpu.memory_space<vmem>>, vector<256x256xbf16>,
    return
  }
  func.func @transform_0(%arg0: i32) -> (i32, i32) {
    %c0_i32 = arith.constant 0 : i32
    %c0_i32_0 = arith.constant 0 : i32
    return %arg0, %c0_i32 : i32, i32
  }
  func.func @transform_1(%arg0: i32) -> (i32, i32) {
    %c0_i32 = arith.constant 0 : i32
    %c0_i32_0 = arith.constant 0 : i32
    %c0_i32_1 = arith.constant 0 : i32
    return %c0_i32, %c0_i32_0 : i32, i32
  }
  func.func @transform_2(%arg0: i32) -> (i32, i32) {
    %c0_i32 = arith.constant 0 : i32
    %c0_i32_0 = arith.constant 0 : i32
    %c0_i32_1 = arith.constant 0 : i32
    return %c0_i32, %c0_i32_0 : i32, i32
  }
  func.func @transform_3(%arg0: i32) -> (i32, i32) {
    %c0_i32 = arith.constant 0 : i32
    %c0_i32_0 = arith.constant 0 : i32
    %c0_i32_1 = arith.constant 0 : i32
    return %c0_i32, %c0_i32_0 : i32, i32
  }
  func.func @transform_4(%arg0: i32) -> (i32, i32) {
    %c0_i32 = arith.constant 0 : i32
    %c0_i32_0 = arith.constant 0 : i32
    %c0_i32_1 = arith.constant 0 : i32
    return %c0_i32, %c0_i32_0 : i32, i32
  }
  func.func @transform_5(%arg0: i32) -> (i32, i32) {
    %c0_i32 = arith.constant 0 : i32
    %c0_i32_0 = arith.constant 0 : i32
    return %arg0, %c0_i32 : i32, i32
  }
}

</mosaic_0001>

<llo_original>
// kernel: tpu_custom_call.1
$region0: #{tpu_custom_call.1}
  #allocation0 [shape = 'u32[]', space=smem, size = 0x4, offset = 0x4, fixed_abs, tag = 'smem constant byte address 0x4 - core index']
  #allocation1 [shape = 'u32[72,128]{1,0:T(1,128)}', space=vmem, size = 0x9000, scoped, tag = 'internal scratch']
  %s0 = inlined_call_operand.hbm [shape: bf16[400,256], index: 0, kind: input, shape index: {}]
  %s1 = inlined_call_operand.hbm [shape: bf16[256,1024], index: 1, kind: input, shape index: {}]
  %s2 = inlined_call_operand.hbm [shape: bf16[1,1024], index: 2, kind: input, shape index: {}]
  %s3 = inlined_call_operand.hbm [shape: bf16[1024,256], index: 3, kind: input, shape index: {}]
  %s4 = inlined_call_operand.vmem [shape: bf16[1,256], index: 4, kind: input, shape index: {}]
  %s5 = inlined_call_operand.hbm [shape: bf16[400,256], index: 5, kind: output, shape index: {}]
  %s6 = sld [smem:[#allocation0]]
  $region69: #{tpu_custom_call.1} parent=0
    _
  %s8 = ssub.s32 1, %s6
  %s9 = scalar_select 0, %s8, %s6
  $region1: #{tpu_custom_call.1} parent=0
    #allocation2 [shape = 'u8[262144]{0}', space=vmem, size = 0x40000, scoped, tag = 'input window, operand 0']
    #allocation3 [shape = 's32[2]{0}', space=sflag, size = 0x8, scoped, tag = 'scoped memory for tpu_custom_call.1']
    #allocation4 [shape = 's32[2]{0}', space=sflag, size = 0x8, scoped, tag = 'scoped memory for tpu_custom_call.1']
    #allocation5 [shape = 'u8[524288]{0}', space=vmem, size = 0x80000, scoped, tag = 'input window, operand 1, single buffered']
    #allocation6 [shape = 's32[1]{0}', space=sflag, size = 0x4, scoped, tag = 'scoped memory for tpu_custom_call.1']
    #allocation7 [shape = 'u8[4096]{0}', space=vmem, size = 0x1000, scoped, tag = 'input window, operand 2, single buffered']
    #allocation8 [shape = 'u8[524288]{0}', space=vmem, size = 0x80000, scoped, tag = 'input window, operand 3, single buffered']
    #allocation9 [shape = 's32[1]{0}', space=sflag, size = 0x4, scoped, tag = 'scoped memory for tpu_custom_call.1']
    #allocation10 [shape = 'u8[262144]{0}', space=vmem, size = 0x40000, scoped, tag = 'output window, operand 0']
    %10 = vsyncpa [#allocation3], 0
    %s11 = scalar_lea.sflag [#allocation3], 1
    %12 = vsyncpa %s11, 0
    %13 = vsyncpa [#allocation6], 0
    %14 = vsyncpa [#allocation9], 0
    %15 = vsyncpa [#allocation4], 0
    %s16 = scalar_lea.sflag [#allocation4], 1
    %17 = vsyncpa %s16, 0
    loop: start=0, step=1, limit=4
    $region2: #{tpu_custom_call.1} parent=1 // loop_pre_header
      _
    $region3: #{tpu_custom_call.1} parent=1 // loop_header
      %s19 = sphi 0, %s23
      %p20 = scmp.ge.s32.totalorder %s19, 4
      %s29 = sphi 0, %s31
      %s32 = sphi 0, %s29
      %s33 = sphi 0, %s32
      %s49 = sphi 0, %s33
      %s53 = sphi 0, %s53
      %s55 = sphi 0, %s53
      %s56 = sphi 0, %s55
      %s70 = sphi 0, %s56
      %s74 = sphi 0, %s74
      %s76 = sphi 0, %s74
      %s77 = sphi 0, %s76
      %s91 = sphi 0, %s77
      %s95 = sphi 0, %s95
      %s97 = sphi 0, %s95
      %s98 = sphi 0, %s97
      %s112 = sphi 0, %s98
      %s116 = sphi 0, %s116
      %s118 = sphi 0, %s116
      %s119 = sphi 0, %s118
      %s133 = sphi 0, %s119
      %s139 = sphi 0, %s141
      %s142 = sphi 0, %s139
      %s143 = sphi 0, %s142
      %s159 = sphi 0, %s143
    $region4: #{tpu_custom_call.1} parent=1 // loop_header_branch
      %22 = sbr.rel (%p20) target = $region8
    $region5: #{tpu_custom_call.1} parent=1 // loop_body
      %s24 = ssub.s32 %s19, 1
      %s25 = ssub.s32 %s19, 2
      %s26 = sadd.s32 %s19, 1
      %s27 = ssub.s32 %s19, %s26
      %p28 = scmp.eq.s32.totalorder %s27, 0
      %s30 = sadd.s32 %s29, 1
      %s31 = scalar_select %p28, %s29, %s30
      %p34 = pneg %p28
      %p35 = scmp.eq.s32.totalorder %s19, 1
      %p36 = por %p34, %p35
      %p37 = scmp.ne.s32.totalorder %s29, %s32
      %p38 = scmp.eq.s32.totalorder %s19, 0
      %p39 = por %p37, %p38
      %p40 = scmp.ne.s32.totalorder %s29, %s32
      %p41 = scmp.eq.s32.totalorder %s24, 1
      %p42 = por %p40, %p41
      %p43 = scmp.ne.s32.totalorder %s32, %s33
      %p44 = scmp.eq.s32.totalorder %s24, 0
      %p45 = por %p43, %p44
      %p46 = scmp.ne.s32.totalorder %s32, %s33
      %p47 = scmp.eq.s32.totalorder %s25, 1
      %p48 = por %p46, %p47
      %p50 = scmp.ne.s32.totalorder %s33, %s49
      %p51 = scmp.eq.s32.totalorder %s25, 0
      %p52 = por %p50, %p51
      %s54 = sadd.s32 %s53, 1
      %p57 = scmp.eq.s32.totalorder %s19, 1
      %p58 = scmp.ne.s32.totalorder %s53, %s55
      %p59 = scmp.eq.s32.totalorder %s19, 0
      %p60 = por %p58, %p59
      %p61 = scmp.ne.s32.totalorder %s53, %s55
      %p62 = scmp.eq.s32.totalorder %s24, 1
      %p63 = por %p61, %p62
      %p64 = scmp.ne.s32.totalorder %s55, %s56
      %p65 = scmp.eq.s32.totalorder %s24, 0
      %p66 = por %p64, %p65
      %p67 = scmp.ne.s32.totalorder %s55, %s56
      %p68 = scmp.eq.s32.totalorder %s25, 1
      %p69 = por %p67, %p68
      %p71 = scmp.ne.s32.totalorder %s56, %s70
      %p72 = scmp.eq.s32.totalorder %s25, 0
      %p73 = por %p71, %p72
      %s75 = sadd.s32 %s74, 1
      %p78 = scmp.eq.s32.totalorder %s19, 1
      %p79 = scmp.ne.s32.totalorder %s74, %s76
      %p80 = scmp.eq.s32.totalorder %s19, 0
      %p81 = por %p79, %p80
      %p82 = scmp.ne.s32.totalorder %s74, %s76
      %p83 = scmp.eq.s32.totalorder %s24, 1
      %p84 = por %p82, %p83
      %p85 = scmp.ne.s32.totalorder %s76, %s77
      %p86 = scmp.eq.s32.totalorder %s24, 0
      %p87 = por %p85, %p86
      %p88 = scmp.ne.s32.totalorder %s76, %s77
      %p89 = scmp.eq.s32.totalorder %s25, 1
      %p90 = por %p88, %p89
      %p92 = scmp.ne.s32.totalorder %s77, %s91
      %p93 = scmp.eq.s32.totalorder %s25, 0
      %p94 = por %p92, %p93
      %s96 = sadd.s32 %s95, 1
      %p99 = scmp.eq.s32.totalorder %s19, 1
      %p100 = scmp.ne.s32.totalorder %s95, %s97
      %p101 = scmp.eq.s32.totalorder %s19, 0
      %p102 = por %p100, %p101
      %p103 = scmp.ne.s32.totalorder %s95, %s97
      %p104 = scmp.eq.s32.totalorder %s24, 1
      %p105 = por %p103, %p104
      %p106 = scmp.ne.s32.totalorder %s97, %s98
      %p107 = scmp.eq.s32.totalorder %s24, 0
      %p108 = por %p106, %p107
      %p109 = scmp.ne.s32.totalorder %s97, %s98
      %p110 = scmp.eq.s32.totalorder %s25, 1
      %p111 = por %p109, %p110
      %p113 = scmp.ne.s32.totalorder %s98, %s112
      %p114 = scmp.eq.s32.totalorder %s25, 0
      %p115 = por %p113, %p114
      %s117 = sadd.s32 %s116, 1
      %p120 = scmp.eq.s32.totalorder %s19, 1
      %p121 = scmp.ne.s32.totalorder %s116, %s118
      %p122 = scmp.eq.s32.totalorder %s19, 0
      %p123 = por %p121, %p122
      %p124 = scmp.ne.s32.totalorder %s116, %s118
      %p125 = scmp.eq.s32.totalorder %s24, 1
      %p126 = por %p124, %p125
      %p127 = scmp.ne.s32.totalorder %s118, %s119
      %p128 = scmp.eq.s32.totalorder %s24, 0
      %p129 = por %p127, %p128
      %p130 = scmp.ne.s32.totalorder %s118, %s119
      %p131 = scmp.eq.s32.totalorder %s25, 1
      %p132 = por %p130, %p131
      %p134 = scmp.ne.s32.totalorder %s119, %s133
      %p135 = scmp.eq.s32.totalorder %s25, 0
      %p136 = por %p134, %p135
      %s137 = ssub.s32 %s19, %s26
      %p138 = scmp.eq.s32.totalorder %s137, 0
      %s140 = sadd.s32 %s139, 1
      %s141 = scalar_select %p138, %s139, %s140
      %p144 = pneg %p138
      %p145 = scmp.eq.s32.totalorder %s19, 1
      %p146 = por %p144, %p145
      %p147 = scmp.ne.s32.totalorder %s139, %s142
      %p148 = scmp.eq.s32.totalorder %s19, 0
      %p149 = por %p147, %p148
      %p150 = scmp.ne.s32.totalorder %s139, %s142
      %p151 = scmp.eq.s32.totalorder %s24, 1
      %p152 = por %p150, %p151
      %p153 = scmp.ne.s32.totalorder %s142, %s143
      %p154 = scmp.eq.s32.totalorder %s24, 0
      %p155 = por %p153, %p154
      %p156 = scmp.ne.s32.totalorder %s142, %s143
      %p157 = scmp.eq.s32.totalorder %s25, 1
      %p158 = por %p156, %p157
      %p160 = scmp.ne.s32.totalorder %s143, %s159
      %p161 = scmp.eq.s32.totalorder %s25, 0
      %p162 = por %p160, %p161
      %p163 = scmp.le.s32.totalorder 1, %s19
      %p164 = scmp.lt.s32.totalorder %s19, 3
      %p165 = pnand %p163, %p164
      %p166 = pneg %p165
      // Predicated region
      $region9: #{tpu_custom_call.1} parent=5 // pred_check
        _
      $region10: #{tpu_custom_call.1} parent=5 // pred_check_branch
        %168 = sbr.rel (%p165) target = $region12
      $region11: #{tpu_custom_call.1} parent=5 // pred_region
        %s169 = ssub.s32 %s19, 1
        // Predicated region
        $region13: #{tpu_custom_call.1} parent=11 // pred_check
          %p170 = pneg %p66
        $region14: #{tpu_custom_call.1} parent=11 // pred_check_branch
          %172 = sbr.rel (%p170) target = $region16
        $region15: #{tpu_custom_call.1} parent=11 // pred_region
          %174 = vsyncadd [#allocation6], 0
          %s175 = sshll.u32 %s1, 4
          %s176 = int_to_ptr.hbm [resolvable:$true] %s175
          %s177 = sshll.u32 [#allocation5], 4
          %s178 = int_to_ptr.vmem [resolvable:$true] %s177
          %183 = dma.hbm_to_vmem [thread:$0]  %s176, 16384, %s178, [#allocation6], 512, 512, 32
        $region16: #{tpu_custom_call.1} parent=11 // pred_fallthru
          _
        // Predicated region
        $region17: #{tpu_custom_call.1} parent=11 // pred_check
          %p184 = pneg %p87
        $region18: #{tpu_custom_call.1} parent=11 // pred_check_branch
          %186 = sbr.rel (%p184) target = $region20
        $region19: #{tpu_custom_call.1} parent=11 // pred_region
          %188 = vsyncadd [#allocation6], 0
          %s190 = sshll.u32 %s2, 4
          %s191 = int_to_ptr.hbm [resolvable:$true] %s190
          %s192 = sshll.u32 [#allocation7], 4
          %s193 = int_to_ptr.vmem [resolvable:$true] %s192
          %195 = dma.hbm_to_vmem [thread:$0]  %s191, 128, %s193, [#allocation6]
        $region20: #{tpu_custom_call.1} parent=11 // pred_fallthru
          _
        // Predicated region
        $region21: #{tpu_custom_call.1} parent=11 // pred_check
          %p196 = pneg %p108
        $region22: #{tpu_custom_call.1} parent=11 // pred_check_branch
          %198 = sbr.rel (%p196) target = $region24
        $region23: #{tpu_custom_call.1} parent=11 // pred_region
          %200 = vsyncadd [#allocation9], 0
          %s201 = sshll.u32 %s3, 4
          %s202 = int_to_ptr.hbm [resolvable:$true] %s201
          %s203 = sshll.u32 [#allocation8], 4
          %s204 = int_to_ptr.vmem [resolvable:$true] %s203
          %209 = dma.hbm_to_vmem [thread:$0]  %s202, 16384, %s204, [#allocation9], 128, 128, 8
        $region24: #{tpu_custom_call.1} parent=11 // pred_fallthru
          _
        // Predicated region
        $region25: #{tpu_custom_call.1} parent=11 // pred_check
          %p210 = pneg %p129
        $region26: #{tpu_custom_call.1} parent=11 // pred_check_branch
          %212 = sbr.rel (%p210) target = $region28
        $region27: #{tpu_custom_call.1} parent=11 // pred_region
          _
        $region28: #{tpu_custom_call.1} parent=11 // pred_fallthru
          _
      $region12: #{tpu_custom_call.1} parent=5 // pred_fallthru
        _
      %p213 = scmp.lt.s32.totalorder %s19, 2
      // Predicated region
      $region29: #{tpu_custom_call.1} parent=5 // pred_check
        %p214 = pneg %p213
      $region30: #{tpu_custom_call.1} parent=5 // pred_check_branch
        %216 = sbr.rel (%p214) target = $region32
      $region31: #{tpu_custom_call.1} parent=5 // pred_region
        // Predicated region
        $region33: #{tpu_custom_call.1} parent=31 // pred_check
          %p217 = pneg %p39
        $region34: #{tpu_custom_call.1} parent=31 // pred_check_branch
          %219 = sbr.rel (%p217) target = $region36
        $region35: #{tpu_custom_call.1} parent=31 // pred_region
          %s220 = sand.u32 %s29, 1
          %s221 = scalar_lea.sflag [#allocation3], %s220
          %s222 = sand.u32 %s29, 1
          %s223 = smul.addr %s222, 256
          %s224 = scalar_lea.vmem [#allocation2], %s223
          %s225 = smul.u32 32, %s19
          %s226 = ssub.s32 50, %s225
          %p227 = scmp.lt.s32.totalorder %s226, 32
          %s228 = scalar_select %p227, %s226, 32
          %s229 = smul.u32 4, %s228
          %s230 = smul.u32 %s229, 2
          %s231 = ssub.s32 256, %s230
          %s232 = sshll.u32 %s231, 4
          %233 = vsyncadd %s221, %s232
          %p234 = scmp.ne.s32.totalorder 0, %s230
          %s235 = smul.addr %s225, 2
          %s236 = smul.addr %s235, 4
          %s237 = scalar_lea.hbm %s0, %s236
          %s238 = smul.u32 8, %s228
          %s239 = sshll.u32 %s237, 4
          %s240 = int_to_ptr.hbm [resolvable:$true] %s239
          %s241 = sshll.u32 %s224, 4
          %s242 = int_to_ptr.vmem [resolvable:$true] %s241
          %s243 = sshll.u32 %s238, 4
          %247 = dma.hbm_to_vmem [thread:$0]  (%p234), %s240, %s243, %s242, %s221, 128, 128, 8
        $region36: #{tpu_custom_call.1} parent=31 // pred_fallthru
          _
      $region32: #{tpu_custom_call.1} parent=5 // pred_fallthru
        _
      %p248 = scmp.le.s32.totalorder 1, %s19
      %p249 = scmp.lt.s32.totalorder %s19, 3
      %p250 = pnand %p248, %p249
      %p251 = pneg %p250
      // Predicated region
      $region37: #{tpu_custom_call.1} parent=5 // pred_check
        _
      $region38: #{tpu_custom_call.1} parent=5 // pred_check_branch
        %253 = sbr.rel (%p250) target = $region40
      $region39: #{tpu_custom_call.1} parent=5 // pred_region
        %s254 = ssub.s32 %s19, 1
        %s255 = sand.u32 %s32, 1
        %s256 = scalar_lea.sflag [#allocation3], %s255
        %s257 = sand.u32 %s32, 1
        %s258 = smul.addr %s257, 256
        %s259 = scalar_lea.vmem [#allocation2], %s258
        // Predicated region
        $region41: #{tpu_custom_call.1} parent=39 // pred_check
          %p260 = pneg %p45
        $region42: #{tpu_custom_call.1} parent=39 // pred_check_branch
          %262 = sbr.rel (%p260) target = $region44
        $region43: #{tpu_custom_call.1} parent=39 // pred_region
          %264 = dma.done %s256, 4096
        $region44: #{tpu_custom_call.1} parent=39 // pred_fallthru
          _
        // Predicated region
        $region45: #{tpu_custom_call.1} parent=39 // pred_check
          %p265 = pneg %p66
        $region46: #{tpu_custom_call.1} parent=39 // pred_check_branch
          %267 = sbr.rel (%p265) target = $region48
        $region47: #{tpu_custom_call.1} parent=39 // pred_region
          %269 = dma.done [#allocation6], 16384
        $region48: #{tpu_custom_call.1} parent=39 // pred_fallthru
          _
        // Predicated region
        $region49: #{tpu_custom_call.1} parent=39 // pred_check
          %p270 = pneg %p87
        $region50: #{tpu_custom_call.1} parent=39 // pred_check_branch
          %272 = sbr.rel (%p270) target = $region52
        $region51: #{tpu_custom_call.1} parent=39 // pred_region
          %274 = dma.done [#allocation6], 128
        $region52: #{tpu_custom_call.1} parent=39 // pred_fallthru
          _
        // Predicated region
        $region53: #{tpu_custom_call.1} parent=39 // pred_check
          %p275 = pneg %p108
        $region54: #{tpu_custom_call.1} parent=39 // pred_check_branch
          %277 = sbr.rel (%p275) target = $region56
        $region55: #{tpu_custom_call.1} parent=39 // pred_region
          %279 = dma.done [#allocation9], 16384
        $region56: #{tpu_custom_call.1} parent=39 // pred_fallthru
          _
        %s280 = sand.u32 %s32, 1
        %s281 = scalar_lea.sflag [#allocation3], %s280
        %s282 = sand.u32 %s32, 1
        %s283 = smul.addr %s282, 256
        %s284 = scalar_lea.vmem [#allocation2], %s283
        %p285 = pneg %p45
        %p286 = pneg %p42
        %p287 = pneg %p66
        %p288 = pneg %p63
        %p289 = pneg %p87
        %p290 = pneg %p84
        %p291 = pneg %p108
        %p292 = pneg %p105
        %p293 = pneg %p129
        %p294 = pneg %p126
        %p295 = pneg %p155
        %p296 = pneg %p152
        %s297 = sand.u32 %s142, 1
        %s298 = scalar_lea.sflag [#allocation4], %s297
        %s299 = sand.u32 %s142, 1
        %s300 = smul.addr %s299, 256
        %s301 = scalar_lea.vmem [#allocation10], %s300
        %s302 = smul.u32 32, %s24
        %s303 = ssub.s32 50, %s302
        %p304 = scmp.lt.s32.totalorder %s303, 32
        %s305 = scalar_select %p304, %s303, 32
        %s306 = smul.u32 4, %s305
        %s307 = smul.u32 %s306, 2
        %s308 = smul.u32 32, %s24
        %s309 = ssub.s32 50, %s308
        %p310 = scmp.lt.s32.totalorder %s309, 32
        %s311 = scalar_select %p310, %s309, 32
        %s312 = smul.u32 4, %s311
        %s313 = smul.u32 %s312, 2
        %v314 = vld [vmem:[%s259] sm:$0xff]
        %v315 = vld [vmem:[%s259 + $0x8] sm:$0xff]
        %v316 = vld [vmem:[%s259 + $0x10] sm:$0xff]
        %v317 = vld [vmem:[%s259 + $0x18] sm:$0xff]
        %v318 = vld [vmem:[%s259 + $0x20] sm:$0xff]
        %v319 = vld [vmem:[%s259 + $0x28] sm:$0xff]
        %v320 = vld [vmem:[%s259 + $0x30] sm:$0xff]
        %v321 = vld [vmem:[%s259 + $0x38] sm:$0xff]
        %v322 = vld [vmem:[%s259 + $0x40] sm:$0xff]
        %v323 = vld [vmem:[%s259 + $0x48] sm:$0xff]
        %v324 = vld [vmem:[%s259 + $0x50] sm:$0xff]
        %v325 = vld [vmem:[%s259 + $0x58] sm:$0xff]
        %v326 = vld [vmem:[%s259 + $0x60] sm:$0xff]
        %v327 = vld [vmem:[%s259 + $0x68] sm:$0xff]
        %v328 = vld [vmem:[%s259 + $0x70] sm:$0xff]
        %v329 = vld [vmem:[%s259 + $0x78] sm:$0xff]
        %v330 = vld [vmem:[%s259 + $0x80] sm:$0xff]
        %v331 = vld [vmem:[%s259 + $0x88] sm:$0xff]
        %v332 = vld [vmem:[%s259 + $0x90] sm:$0xff]
        %v333 = vld [vmem:[%s259 + $0x98] sm:$0xff]
        %v334 = vld [vmem:[%s259 + $0xa0] sm:$0xff]
        %v335 = vld [vmem:[%s259 + $0xa8] sm:$0xff]
        %v336 = vld [vmem:[%s259 + $0xb0] sm:$0xff]
        %v337 = vld [vmem:[%s259 + $0xb8] sm:$0xff]
        %v338 = vld [vmem:[%s259 + $0xc0] sm:$0xff]
        %v339 = vld [vmem:[%s259 + $0xc8] sm:$0xff]
        %v340 = vld [vmem:[%s259 + $0xd0] sm:$0xff]
        %v341 = vld [vmem:[%s259 + $0xd8] sm:$0xff]
        %v342 = vld [vmem:[%s259 + $0xe0] sm:$0xff]
        %v343 = vld [vmem:[%s259 + $0xe8] sm:$0xff]
        %v344 = vld [vmem:[%s259 + $0xf0] sm:$0xff]
        %v345 = vld [vmem:[%s259 + $0xf8] sm:$0xff]
        %v346 = vld [vmem:[#allocation5] sm:$0xff]
        %v347 = vld [vmem:[#allocation5 + $0x8] sm:$0xff]
        %v348 = vld [vmem:[#allocation5 + $0x10] sm:$0xff]
        %v349 = vld [vmem:[#allocation5 + $0x18] sm:$0xff]
        %v350 = vld [vmem:[#allocation5 + $0x20] sm:$0xff]
        %v351 = vld [vmem:[#allocation5 + $0x28] sm:$0xff]
        %v352 = vld [vmem:[#allocation5 + $0x30] sm:$0xff]
        %v353 = vld [vmem:[#allocation5 + $0x38] sm:$0xff]
        %v354 = vld [vmem:[#allocation5 + $0x40] sm:$0xff]
        %v355 = vld [vmem:[#allocation5 + $0x48] sm:$0xff]
        %v356 = vld [vmem:[#allocation5 + $0x50] sm:$0xff]
        %v357 = vld [vmem:[#allocation5 + $0x58] sm:$0xff]
        %v358 = vld [vmem:[#allocation5 + $0x60] sm:$0xff]
        %v359 = vld [vmem:[#allocation5 + $0x68] sm:$0xff]
        %v360 = vld [vmem:[#allocation5 + $0x70] sm:$0xff]
        %v361 = vld [vmem:[#allocation5 + $0x78] sm:$0xff]
        %v362 = vld [vmem:[#allocation5 + $0x80] sm:$0xff]
        %v363 = vld [vmem:[#allocation5 + $0x88] sm:$0xff]
        %v364 = vld [vmem:[#allocation5 + $0x90] sm:$0xff]
        %v365 = vld [vmem:[#allocation5 + $0x98] sm:$0xff]
        %v366 = vld [vmem:[#allocation5 + $0xa0] sm:$0xff]
        %v367 = vld [vmem:[#allocation5 + $0xa8] sm:$0xff]
        %v368 = vld [vmem:[#allocation5 + $0xb0] sm:$0xff]
        %v369 = vld [vmem:[#allocation5 + $0xb8] sm:$0xff]
        %v370 = vld [vmem:[#allocation5 + $0xc0] sm:$0xff]
        %v371 = vld [vmem:[#allocation5 + $0xc8] sm:$0xff]
        %v372 = vld [vmem:[#allocation5 + $0xd0] sm:$0xff]
        %v373 = vld [vmem:[#allocation5 + $0xd8] sm:$0xff]
        %v374 = vld [vmem:[#allocation5 + $0xe0] sm:$0xff]
        %v375 = vld [vmem:[#allocation5 + $0xe8] sm:$0xff]
        %v376 = vld [vmem:[#allocation5 + $0xf0] sm:$0xff]
        %v377 = vld [vmem:[#allocation5 + $0xf8] sm:$0xff]
        %v378 = vld [vmem:[#allocation5 + $0x100] sm:$0xff]
        %v379 = vld [vmem:[#allocation5 + $0x108] sm:$0xff]
        %v380 = vld [vmem:[#allocation5 + $0x110] sm:$0xff]
        %v381 = vld [vmem:[#allocation5 + $0x118] sm:$0xff]
        %v382 = vld [vmem:[#allocation5 + $0x120] sm:$0xff]
        %v383 = vld [vmem:[#allocation5 + $0x128] sm:$0xff]
        %v384 = vld [vmem:[#allocation5 + $0x130] sm:$0xff]
        %v385 = vld [vmem:[#allocation5 + $0x138] sm:$0xff]
        %v386 = vld [vmem:[#allocation5 + $0x140] sm:$0xff]
        %v387 = vld [vmem:[#allocation5 + $0x148] sm:$0xff]
        %v388 = vld [vmem:[#allocation5 + $0x150] sm:$0xff]
        %v389 = vld [vmem:[#allocation5 + $0x158] sm:$0xff]
        %v390 = vld [vmem:[#allocation5 + $0x160] sm:$0xff]
        %v391 = vld [vmem:[#allocation5 + $0x168] sm:$0xff]
        %v392 = vld [vmem:[#allocation5 + $0x170] sm:$0xff]
        %v393 = vld [vmem:[#allocation5 + $0x178] sm:$0xff]
        %v394 = vld [vmem:[#allocation5 + $0x180] sm:$0xff]
        %v395 = vld [vmem:[#allocation5 + $0x188] sm:$0xff]
        %v396 = vld [vmem:[#allocation5 + $0x190] sm:$0xff]
        %v397 = vld [vmem:[#allocation5 + $0x198] sm:$0xff]
        %v398 = vld [vmem:[#allocation5 + $0x1a0] sm:$0xff]
        %v399 = vld [vmem:[#allocation5 + $0x1a8] sm:$0xff]
        %v400 = vld [vmem:[#allocation5 + $0x1b0] sm:$0xff]
        %v401 = vld [vmem:[#allocation5 + $0x1b8] sm:$0xff]
        %v402 = vld [vmem:[#allocation5 + $0x1c0] sm:$0xff]
        %v403 = vld [vmem:[#allocation5 + $0x1c8] sm:$0xff]
        %v404 = vld [vmem:[#allocation5 + $0x1d0] sm:$0xff]
        %v405 = vld [vmem:[#allocation5 + $0x1d8] sm:$0xff]
        %v406 = vld [vmem:[#allocation5 + $0x1e0] sm:$0xff]
        %v407 = vld [vmem:[#allocation5 + $0x1e8] sm:$0xff]
        %v408 = vld [vmem:[#allocation5 + $0x1f0] sm:$0xff]
        %v409 = vld [vmem:[#allocation5 + $0x1f8] sm:$0xff]
        %v410 = vld [vmem:[#allocation5 + $0x200] sm:$0xff]
        %v411 = vld [vmem:[#allocation5 + $0x208] sm:$0xff]
        %v412 = vld [vmem:[#allocation5 + $0x210] sm:$0xff]
        %v413 = vld [vmem:[#allocation5 + $0x218] sm:$0xff]
        %v414 = vld [vmem:[#allocation5 + $0x220] sm:$0xff]
        %v415 = vld [vmem:[#allocation5 + $0x228] sm:$0xff]
        %v416 = vld [vmem:[#allocation5 + $0x230] sm:$0xff]
        %v417 = vld [vmem:[#allocation5 + $0x238] sm:$0xff]
        %v418 = vld [vmem:[#allocation5 + $0x240] sm:$0xff]
        %v419 = vld [vmem:[#allocation5 + $0x248] sm:$0xff]
        %v420 = vld [vmem:[#allocation5 + $0x250] sm:$0xff]
        %v421 = vld [vmem:[#allocation5 + $0x258] sm:$0xff]
        %v422 = vld [vmem:[#allocation5 + $0x260] sm:$0xff]
        %v423 = vld [vmem:[#allocation5 + $0x268] sm:$0xff]
        %v424 = vld [vmem:[#allocation5 + $0x270] sm:$0xff]
        %v425 = vld [vmem:[#allocation5 + $0x278] sm:$0xff]
        %v426 = vld [vmem:[#allocation5 + $0x280] sm:$0xff]
        %v427 = vld [vmem:[#allocation5 + $0x288] sm:$0xff]
        %v428 = vld [vmem:[#allocation5 + $0x290] sm:$0xff]
        %v429 = vld [vmem:[#allocation5 + $0x298] sm:$0xff]
        %v430 = vld [vmem:[#allocation5 + $0x2a0] sm:$0xff]
        %v431 = vld [vmem:[#allocation5 + $0x2a8] sm:$0xff]
        %v432 = vld [vmem:[#allocation5 + $0x2b0] sm:$0xff]
        %v433 = vld [vmem:[#allocation5 + $0x2b8] sm:$0xff]
        %v434 = vld [vmem:[#allocation5 + $0x2c0] sm:$0xff]
        %v435 = vld [vmem:[#allocation5 + $0x2c8] sm:$0xff]
        %v436 = vld [vmem:[#allocation5 + $0x2d0] sm:$0xff]
        %v437 = vld [vmem:[#allocation5 + $0x2d8] sm:$0xff]
        %v438 = vld [vmem:[#allocation5 + $0x2e0] sm:$0xff]
        %v439 = vld [vmem:[#allocation5 + $0x2e8] sm:$0xff]
        %v440 = vld [vmem:[#allocation5 + $0x2f0] sm:$0xff]
        %v441 = vld [vmem:[#allocation5 + $0x2f8] sm:$0xff]
        %v442 = vld [vmem:[#allocation5 + $0x300] sm:$0xff]
        %v443 = vld [vmem:[#allocation5 + $0x308] sm:$0xff]
        %v444 = vld [vmem:[#allocation5 + $0x310] sm:$0xff]
        %v445 = vld [vmem:[#allocation5 + $0x318] sm:$0xff]
        %v446 = vld [vmem:[#allocation5 + $0x320] sm:$0xff]
        %v447 = vld [vmem:[#allocation5 + $0x328] sm:$0xff]
        %v448 = vld [vmem:[#allocation5 + $0x330] sm:$0xff]
        %v449 = vld [vmem:[#allocation5 + $0x338] sm:$0xff]
        %v450 = vld [vmem:[#allocation5 + $0x340] sm:$0xff]
        %v451 = vld [vmem:[#allocation5 + $0x348] sm:$0xff]
        %v452 = vld [vmem:[#allocation5 + $0x350] sm:$0xff]
        %v453 = vld [vmem:[#allocation5 + $0x358] sm:$0xff]
        %v454 = vld [vmem:[#allocation5 + $0x360] sm:$0xff]
        %v455 = vld [vmem:[#allocation5 + $0x368] sm:$0xff]
        %v456 = vld [vmem:[#allocation5 + $0x370] sm:$0xff]
        %v457 = vld [vmem:[#allocation5 + $0x378] sm:$0xff]
        %v458 = vld [vmem:[#allocation5 + $0x380] sm:$0xff]
        %v459 = vld [vmem:[#allocation5 + $0x388] sm:$0xff]
        %v460 = vld [vmem:[#allocation5 + $0x390] sm:$0xff]
        %v461 = vld [vmem:[#allocation5 + $0x398] sm:$0xff]
        %v462 = vld [vmem:[#allocation5 + $0x3a0] sm:$0xff]
        %v463 = vld [vmem:[#allocation5 + $0x3a8] sm:$0xff]
        %v464 = vld [vmem:[#allocation5 + $0x3b0] sm:$0xff]
        %v465 = vld [vmem:[#allocation5 + $0x3b8] sm:$0xff]
        %v466 = vld [vmem:[#allocation5 + $0x3c0] sm:$0xff]
        %v467 = vld [vmem:[#allocation5 + $0x3c8] sm:$0xff]
        %v468 = vld [vmem:[#allocation5 + $0x3d0] sm:$0xff]
        %v469 = vld [vmem:[#allocation5 + $0x3d8] sm:$0xff]
        %v470 = vld [vmem:[#allocation5 + $0x3e0] sm:$0xff]
        %v471 = vld [vmem:[#allocation5 + $0x3e8] sm:$0xff]
        %v472 = vld [vmem:[#allocation5 + $0x3f0] sm:$0xff]
        %v473 = vld [vmem:[#allocation5 + $0x3f8] sm:$0xff]
        %v474 = vld [vmem:[#allocation7] sm:$0xff]
        %v475 = vunpack.c.l.bf16 %v474
        %v476 = vunpack.c.h.bf16 %v474
        %v479 = vperm.slane %v475, 0
        %v480 = vperm.slane %v475, 2
        %v481 = vperm.slane %v475, 4
        %v482 = vperm.slane %v475, 6
        %v483 = vperm.slane %v476, 0
        %v484 = vperm.slane %v476, 2
        %v485 = vperm.slane %v476, 4
        %v486 = vperm.slane %v476, 6
        %v495 = vperm.slane %v479, 0
        %v496 = vperm.slane %v480, 0
        %v497 = vperm.slane %v481, 0
        %v498 = vperm.slane %v482, 0
        %v499 = vperm.slane %v483, 0
        %v500 = vperm.slane %v484, 0
        %v501 = vperm.slane %v485, 0
        %v502 = vperm.slane %v486, 0
        %v535 = vunpack.c.l.b16 %v314
        %v536 = vunpack.c.h.b16 %v314
        %v537 = vunpack.c.l.b16 %v315
        %v538 = vunpack.c.h.b16 %v315
        %v539 = vunpack.c.l.b16 %v316
        %v540 = vunpack.c.h.b16 %v316
        %v541 = vunpack.c.l.b16 %v317
        %v542 = vunpack.c.h.b16 %v317
        %v543 = vunpack.c.l.b16 %v318
        %v544 = vunpack.c.h.b16 %v318
        %v545 = vunpack.c.l.b16 %v319
        %v546 = vunpack.c.h.b16 %v319
        %v547 = vunpack.c.l.b16 %v320
        %v548 = vunpack.c.h.b16 %v320
        %v549 = vunpack.c.l.b16 %v321
        %v550 = vunpack.c.h.b16 %v321
        %v551 = vunpack.c.l.b16 %v322
        %v552 = vunpack.c.h.b16 %v322
        %v553 = vunpack.c.l.b16 %v323
        %v554 = vunpack.c.h.b16 %v323
        %v555 = vunpack.c.l.b16 %v324
        %v556 = vunpack.c.h.b16 %v324
        %v557 = vunpack.c.l.b16 %v325
        %v558 = vunpack.c.h.b16 %v325
        %v559 = vunpack.c.l.b16 %v326
        %v560 = vunpack.c.h.b16 %v326
        %v561 = vunpack.c.l.b16 %v327
        %v562 = vunpack.c.h.b16 %v327
        %v563 = vunpack.c.l.b16 %v328
        %v564 = vunpack.c.h.b16 %v328
        %v565 = vunpack.c.l.b16 %v329
        %v566 = vunpack.c.h.b16 %v329
        %v567 = vunpack.c.l.b16 %v330
        %v568 = vunpack.c.h.b16 %v330
        %v569 = vunpack.c.l.b16 %v331
        %v570 = vunpack.c.h.b16 %v331
        %v571 = vunpack.c.l.b16 %v332
        %v572 = vunpack.c.h.b16 %v332
        %v573 = vunpack.c.l.b16 %v333
        %v574 = vunpack.c.h.b16 %v333
        %v575 = vunpack.c.l.b16 %v334
        %v576 = vunpack.c.h.b16 %v334
        %v577 = vunpack.c.l.b16 %v335
        %v578 = vunpack.c.h.b16 %v335
        %v579 = vunpack.c.l.b16 %v336
        %v580 = vunpack.c.h.b16 %v336
        %v581 = vunpack.c.l.b16 %v337
        %v582 = vunpack.c.h.b16 %v337
        %v583 = vunpack.c.l.b16 %v338
        %v584 = vunpack.c.h.b16 %v338
        %v585 = vunpack.c.l.b16 %v339
        %v586 = vunpack.c.h.b16 %v339
        %v587 = vunpack.c.l.b16 %v340
        %v588 = vunpack.c.h.b16 %v340
        %v589 = vunpack.c.l.b16 %v341
        %v590 = vunpack.c.h.b16 %v341
        %v591 = vunpack.c.l.b16 %v342
        %v592 = vunpack.c.h.b16 %v342
        %v593 = vunpack.c.l.b16 %v343
        %v594 = vunpack.c.h.b16 %v343
        %v595 = vunpack.c.l.b16 %v344
        %v596 = vunpack.c.h.b16 %v344
        %v597 = vunpack.c.l.b16 %v345
        %v598 = vunpack.c.h.b16 %v345
        %v599 = vpack.c.b16 %v537, %v535
        %v600 = vpack.c.b16 %v538, %v536
        %v601 = vpack.c.b16 %v541, %v539
        %v602 = vpack.c.b16 %v542, %v540
        %v603 = vpack.c.b16 %v545, %v543
        %v604 = vpack.c.b16 %v546, %v544
        %v605 = vpack.c.b16 %v549, %v547
        %v606 = vpack.c.b16 %v550, %v548
        %v607 = vpack.c.b16 %v553, %v551
        %v608 = vpack.c.b16 %v554, %v552
        %v609 = vpack.c.b16 %v557, %v555
        %v610 = vpack.c.b16 %v558, %v556
        %v611 = vpack.c.b16 %v561, %v559
        %v612 = vpack.c.b16 %v562, %v560
        %v613 = vpack.c.b16 %v565, %v563
        %v614 = vpack.c.b16 %v566, %v564
        %v615 = vpack.c.b16 %v569, %v567
        %v616 = vpack.c.b16 %v570, %v568
        %v617 = vpack.c.b16 %v573, %v571
        %v618 = vpack.c.b16 %v574, %v572
        %v619 = vpack.c.b16 %v577, %v575
        %v620 = vpack.c.b16 %v578, %v576
        %v621 = vpack.c.b16 %v581, %v579
        %v622 = vpack.c.b16 %v582, %v580
        %v623 = vpack.c.b16 %v585, %v583
        %v624 = vpack.c.b16 %v586, %v584
        %v625 = vpack.c.b16 %v589, %v587
        %v626 = vpack.c.b16 %v590, %v588
        %v627 = vpack.c.b16 %v593, %v591
        %v628 = vpack.c.b16 %v594, %v592
        %v629 = vpack.c.b16 %v597, %v595
        %v630 = vpack.c.b16 %v598, %v596
        %v791 = vunpack.c.l.b16 %v346
        %v792 = vunpack.c.h.b16 %v346
        %v793 = vunpack.c.l.b16 %v347
        %v794 = vunpack.c.h.b16 %v347
        %v795 = vunpack.c.l.b16 %v348
        %v796 = vunpack.c.h.b16 %v348
        %v797 = vunpack.c.l.b16 %v349
        %v798 = vunpack.c.h.b16 %v349
        %v799 = vunpack.c.l.b16 %v350
        %v800 = vunpack.c.h.b16 %v350
        %v801 = vunpack.c.l.b16 %v351
        %v802 = vunpack.c.h.b16 %v351
        %v803 = vunpack.c.l.b16 %v352
        %v804 = vunpack.c.h.b16 %v352
        %v805 = vunpack.c.l.b16 %v353
        %v806 = vunpack.c.h.b16 %v353
        %v807 = vunpack.c.l.b16 %v354
        %v808 = vunpack.c.h.b16 %v354
        %v809 = vunpack.c.l.b16 %v355
        %v810 = vunpack.c.h.b16 %v355
        %v811 = vunpack.c.l.b16 %v356
        %v812 = vunpack.c.h.b16 %v356
        %v813 = vunpack.c.l.b16 %v357
        %v814 = vunpack.c.h.b16 %v357
        %v815 = vunpack.c.l.b16 %v358
        %v816 = vunpack.c.h.b16 %v358
        %v817 = vunpack.c.l.b16 %v359
        %v818 = vunpack.c.h.b16 %v359
        %v819 = vunpack.c.l.b16 %v360
        %v820 = vunpack.c.h.b16 %v360
        %v821 = vunpack.c.l.b16 %v361
        %v822 = vunpack.c.h.b16 %v361
        %v823 = vunpack.c.l.b16 %v362
        %v824 = vunpack.c.h.b16 %v362
        %v825 = vunpack.c.l.b16 %v363
        %v826 = vunpack.c.h.b16 %v363
        %v827 = vunpack.c.l.b16 %v364
        %v828 = vunpack.c.h.b16 %v364
        %v829 = vunpack.c.l.b16 %v365
        %v830 = vunpack.c.h.b16 %v365
        %v831 = vunpack.c.l.b16 %v366
        %v832 = vunpack.c.h.b16 %v366
        %v833 = vunpack.c.l.b16 %v367
        %v834 = vunpack.c.h.b16 %v367
        %v835 = vunpack.c.l.b16 %v368
        %v836 = vunpack.c.h.b16 %v368
        %v837 = vunpack.c.l.b16 %v369
        %v838 = vunpack.c.h.b16 %v369
        %v839 = vunpack.c.l.b16 %v370
        %v840 = vunpack.c.h.b16 %v370
        %v841 = vunpack.c.l.b16 %v371
        %v842 = vunpack.c.h.b16 %v371
        %v843 = vunpack.c.l.b16 %v372
        %v844 = vunpack.c.h.b16 %v372
        %v845 = vunpack.c.l.b16 %v373
        %v846 = vunpack.c.h.b16 %v373
        %v847 = vunpack.c.l.b16 %v374
        %v848 = vunpack.c.h.b16 %v374
        %v849 = vunpack.c.l.b16 %v375
        %v850 = vunpack.c.h.b16 %v375
        %v851 = vunpack.c.l.b16 %v376
        %v852 = vunpack.c.h.b16 %v376
        %v853 = vunpack.c.l.b16 %v377
        %v854 = vunpack.c.h.b16 %v377
        %v855 = vunpack.c.l.b16 %v378
        %v856 = vunpack.c.h.b16 %v378
        %v857 = vunpack.c.l.b16 %v379
        %v858 = vunpack.c.h.b16 %v379
        %v859 = vunpack.c.l.b16 %v380
        %v860 = vunpack.c.h.b16 %v380
        %v861 = vunpack.c.l.b16 %v381
        %v862 = vunpack.c.h.b16 %v381
        %v863 = vunpack.c.l.b16 %v382
        %v864 = vunpack.c.h.b16 %v382
        %v865 = vunpack.c.l.b16 %v383
        %v866 = vunpack.c.h.b16 %v383
        %v867 = vunpack.c.l.b16 %v384
        %v868 = vunpack.c.h.b16 %v384
        %v869 = vunpack.c.l.b16 %v385
        %v870 = vunpack.c.h.b16 %v385
        %v871 = vunpack.c.l.b16 %v386
        %v872 = vunpack.c.h.b16 %v386
        %v873 = vunpack.c.l.b16 %v387
        %v874 = vunpack.c.h.b16 %v387
        %v875 = vunpack.c.l.b16 %v388
        %v876 = vunpack.c.h.b16 %v388
        %v877 = vunpack.c.l.b16 %v389
        %v878 = vunpack.c.h.b16 %v389
        %v879 = vunpack.c.l.b16 %v390
        %v880 = vunpack.c.h.b16 %v390
        %v881 = vunpack.c.l.b16 %v391
        %v882 = vunpack.c.h.b16 %v391
        %v883 = vunpack.c.l.b16 %v392
        %v884 = vunpack.c.h.b16 %v392
        %v885 = vunpack.c.l.b16 %v393
        %v886 = vunpack.c.h.b16 %v393
        %v887 = vunpack.c.l.b16 %v394
        %v888 = vunpack.c.h.b16 %v394
        %v889 = vunpack.c.l.b16 %v395
        %v890 = vunpack.c.h.b16 %v395
        %v891 = vunpack.c.l.b16 %v396
        %v892 = vunpack.c.h.b16 %v396
        %v893 = vunpack.c.l.b16 %v397
        %v894 = vunpack.c.h.b16 %v397
        %v895 = vunpack.c.l.b16 %v398
        %v896 = vunpack.c.h.b16 %v398
        %v897 = vunpack.c.l.b16 %v399
        %v898 = vunpack.c.h.b16 %v399
        %v899 = vunpack.c.l.b16 %v400
        %v900 = vunpack.c.h.b16 %v400
        %v901 = vunpack.c.l.b16 %v401
        %v902 = vunpack.c.h.b16 %v401
        %v903 = vunpack.c.l.b16 %v402
        %v904 = vunpack.c.h.b16 %v402
        %v905 = vunpack.c.l.b16 %v403
        %v906 = vunpack.c.h.b16 %v403
        %v907 = vunpack.c.l.b16 %v404
        %v908 = vunpack.c.h.b16 %v404
        %v909 = vunpack.c.l.b16 %v405
        %v910 = vunpack.c.h.b16 %v405
        %v911 = vunpack.c.l.b16 %v406
        %v912 = vunpack.c.h.b16 %v406
        %v913 = vunpack.c.l.b16 %v407
        %v914 = vunpack.c.h.b16 %v407
        %v915 = vunpack.c.l.b16 %v408
        %v916 = vunpack.c.h.b16 %v408
        %v917 = vunpack.c.l.b16 %v409
        %v918 = vunpack.c.h.b16 %v409
        %v919 = vunpack.c.l.b16 %v410
        %v920 = vunpack.c.h.b16 %v410
        %v921 = vunpack.c.l.b16 %v411
        %v922 = vunpack.c.h.b16 %v411
        %v923 = vunpack.c.l.b16 %v412
        %v924 = vunpack.c.h.b16 %v412
        %v925 = vunpack.c.l.b16 %v413
        %v926 = vunpack.c.h.b16 %v413
        %v927 = vunpack.c.l.b16 %v414
        %v928 = vunpack.c.h.b16 %v414
        %v929 = vunpack.c.l.b16 %v415
        %v930 = vunpack.c.h.b16 %v415
        %v931 = vunpack.c.l.b16 %v416
        %v932 = vunpack.c.h.b16 %v416
        %v933 = vunpack.c.l.b16 %v417
        %v934 = vunpack.c.h.b16 %v417
        %v935 = vunpack.c.l.b16 %v418
        %v936 = vunpack.c.h.b16 %v418
        %v937 = vunpack.c.l.b16 %v419
        %v938 = vunpack.c.h.b16 %v419
        %v939 = vunpack.c.l.b16 %v420
        %v940 = vunpack.c.h.b16 %v420
        %v941 = vunpack.c.l.b16 %v421
        %v942 = vunpack.c.h.b16 %v421
        %v943 = vunpack.c.l.b16 %v422
        %v944 = vunpack.c.h.b16 %v422
        %v945 = vunpack.c.l.b16 %v423
        %v946 = vunpack.c.h.b16 %v423
        %v947 = vunpack.c.l.b16 %v424
        %v948 = vunpack.c.h.b16 %v424
        %v949 = vunpack.c.l.b16 %v425
        %v950 = vunpack.c.h.b16 %v425
        %v951 = vunpack.c.l.b16 %v426
        %v952 = vunpack.c.h.b16 %v426
        %v953 = vunpack.c.l.b16 %v427
        %v954 = vunpack.c.h.b16 %v427
        %v955 = vunpack.c.l.b16 %v428
        %v956 = vunpack.c.h.b16 %v428
        %v957 = vunpack.c.l.b16 %v429
        %v958 = vunpack.c.h.b16 %v429
        %v959 = vunpack.c.l.b16 %v430
        %v960 = vunpack.c.h.b16 %v430
        %v961 = vunpack.c.l.b16 %v431
        %v962 = vunpack.c.h.b16 %v431
        %v963 = vunpack.c.l.b16 %v432
        %v964 = vunpack.c.h.b16 %v432
        %v965 = vunpack.c.l.b16 %v433
        %v966 = vunpack.c.h.b16 %v433
        %v967 = vunpack.c.l.b16 %v434
        %v968 = vunpack.c.h.b16 %v434
        %v969 = vunpack.c.l.b16 %v435
        %v970 = vunpack.c.h.b16 %v435
        %v971 = vunpack.c.l.b16 %v436
        %v972 = vunpack.c.h.b16 %v436
        %v973 = vunpack.c.l.b16 %v437
        %v974 = vunpack.c.h.b16 %v437
        %v975 = vunpack.c.l.b16 %v438
        %v976 = vunpack.c.h.b16 %v438
        %v977 = vunpack.c.l.b16 %v439
        %v978 = vunpack.c.h.b16 %v439
        %v979 = vunpack.c.l.b16 %v440
        %v980 = vunpack.c.h.b16 %v440
        %v981 = vunpack.c.l.b16 %v441
        %v982 = vunpack.c.h.b16 %v441
        %v983 = vunpack.c.l.b16 %v442
        %v984 = vunpack.c.h.b16 %v442
        %v985 = vunpack.c.l.b16 %v443
        %v986 = vunpack.c.h.b16 %v443
        %v987 = vunpack.c.l.b16 %v444
        %v988 = vunpack.c.h.b16 %v444
        %v989 = vunpack.c.l.b16 %v445
        %v990 = vunpack.c.h.b16 %v445
        %v991 = vunpack.c.l.b16 %v446
        %v992 = vunpack.c.h.b16 %v446
        %v993 = vunpack.c.l.b16 %v447
        %v994 = vunpack.c.h.b16 %v447
        %v995 = vunpack.c.l.b16 %v448
        %v996 = vunpack.c.h.b16 %v448
        %v997 = vunpack.c.l.b16 %v449
        %v998 = vunpack.c.h.b16 %v449
        %v999 = vunpack.c.l.b16 %v450
        %v1000 = vunpack.c.h.b16 %v450
        %v1001 = vunpack.c.l.b16 %v451
        %v1002 = vunpack.c.h.b16 %v451
        %v1003 = vunpack.c.l.b16 %v452
        %v1004 = vunpack.c.h.b16 %v452
        %v1005 = vunpack.c.l.b16 %v453
        %v1006 = vunpack.c.h.b16 %v453
        %v1007 = vunpack.c.l.b16 %v454
        %v1008 = vunpack.c.h.b16 %v454
        %v1009 = vunpack.c.l.b16 %v455
        %v1010 = vunpack.c.h.b16 %v455
        %v1011 = vunpack.c.l.b16 %v456
        %v1012 = vunpack.c.h.b16 %v456
        %v1013 = vunpack.c.l.b16 %v457
        %v1014 = vunpack.c.h.b16 %v457
        %v1015 = vunpack.c.l.b16 %v458
        %v1016 = vunpack.c.h.b16 %v458
        %v1017 = vunpack.c.l.b16 %v459
        %v1018 = vunpack.c.h.b16 %v459
        %v1019 = vunpack.c.l.b16 %v460
        %v1020 = vunpack.c.h.b16 %v460
        %v1021 = vunpack.c.l.b16 %v461
        %v1022 = vunpack.c.h.b16 %v461
        %v1023 = vunpack.c.l.b16 %v462
        %v1024 = vunpack.c.h.b16 %v462
        %v1025 = vunpack.c.l.b16 %v463
        %v1026 = vunpack.c.h.b16 %v463
        %v1027 = vunpack.c.l.b16 %v464
        %v1028 = vunpack.c.h.b16 %v464
        %v1029 = vunpack.c.l.b16 %v465
        %v1030 = vunpack.c.h.b16 %v465
        %v1031 = vunpack.c.l.b16 %v466
        %v1032 = vunpack.c.h.b16 %v466
        %v1033 = vunpack.c.l.b16 %v467
        %v1034 = vunpack.c.h.b16 %v467
        %v1035 = vunpack.c.l.b16 %v468
        %v1036 = vunpack.c.h.b16 %v468
        %v1037 = vunpack.c.l.b16 %v469
        %v1038 = vunpack.c.h.b16 %v469
        %v1039 = vunpack.c.l.b16 %v470
        %v1040 = vunpack.c.h.b16 %v470
        %v1041 = vunpack.c.l.b16 %v471
        %v1042 = vunpack.c.h.b16 %v471
        %v1043 = vunpack.c.l.b16 %v472
        %v1044 = vunpack.c.h.b16 %v472
        %v1045 = vunpack.c.l.b16 %v473
        %v1046 = vunpack.c.h.b16 %v473
        %v1047 = vpack.c.b16 %v799, %v791
        %v1048 = vpack.c.b16 %v800, %v792
        %v1049 = vpack.c.b16 %v801, %v793
        %v1050 = vpack.c.b16 %v802, %v794
        %v1051 = vpack.c.b16 %v803, %v795
        %v1052 = vpack.c.b16 %v804, %v796
        %v1053 = vpack.c.b16 %v805, %v797
        %v1054 = vpack.c.b16 %v806, %v798
        %v1055 = vpack.c.b16 %v815, %v807
        %v1056 = vpack.c.b16 %v816, %v808
        %v1057 = vpack.c.b16 %v817, %v809
        %v1058 = vpack.c.b16 %v818, %v810
        %v1059 = vpack.c.b16 %v819, %v811
        %v1060 = vpack.c.b16 %v820, %v812
        %v1061 = vpack.c.b16 %v821, %v813
        %v1062 = vpack.c.b16 %v822, %v814
        %v1063 = vpack.c.b16 %v831, %v823
        %v1064 = vpack.c.b16 %v832, %v824
        %v1065 = vpack.c.b16 %v833, %v825
        %v1066 = vpack.c.b16 %v834, %v826
        %v1067 = vpack.c.b16 %v835, %v827
        %v1068 = vpack.c.b16 %v836, %v828
        %v1069 = vpack.c.b16 %v837, %v829
        %v1070 = vpack.c.b16 %v838, %v830
        %v1071 = vpack.c.b16 %v847, %v839
        %v1072 = vpack.c.b16 %v848, %v840
        %v1073 = vpack.c.b16 %v849, %v841
        %v1074 = vpack.c.b16 %v850, %v842
        %v1075 = vpack.c.b16 %v851, %v843
        %v1076 = vpack.c.b16 %v852, %v844
        %v1077 = vpack.c.b16 %v853, %v845
        %v1078 = vpack.c.b16 %v854, %v846
        %v1079 = vpack.c.b16 %v863, %v855
        %v1080 = vpack.c.b16 %v864, %v856
        %v1081 = vpack.c.b16 %v865, %v857
        %v1082 = vpack.c.b16 %v866, %v858
        %v1083 = vpack.c.b16 %v867, %v859
        %v1084 = vpack.c.b16 %v868, %v860
        %v1085 = vpack.c.b16 %v869, %v861
        %v1086 = vpack.c.b16 %v870, %v862
        %v1087 = vpack.c.b16 %v879, %v871
        %v1088 = vpack.c.b16 %v880, %v872
        %v1089 = vpack.c.b16 %v881, %v873
        %v1090 = vpack.c.b16 %v882, %v874
        %v1091 = vpack.c.b16 %v883, %v875
        %v1092 = vpack.c.b16 %v884, %v876
        %v1093 = vpack.c.b16 %v885, %v877
        %v1094 = vpack.c.b16 %v886, %v878
        %v1095 = vpack.c.b16 %v895, %v887
        %v1096 = vpack.c.b16 %v896, %v888
        %v1097 = vpack.c.b16 %v897, %v889
        %v1098 = vpack.c.b16 %v898, %v890
        %v1099 = vpack.c.b16 %v899, %v891
        %v1100 = vpack.c.b16 %v900, %v892
        %v1101 = vpack.c.b16 %v901, %v893
        %v1102 = vpack.c.b16 %v902, %v894
        %v1103 = vpack.c.b16 %v911, %v903
        %v1104 = vpack.c.b16 %v912, %v904
        %v1105 = vpack.c.b16 %v913, %v905
        %v1106 = vpack.c.b16 %v914, %v906
        %v1107 = vpack.c.b16 %v915, %v907
        %v1108 = vpack.c.b16 %v916, %v908
        %v1109 = vpack.c.b16 %v917, %v909
        %v1110 = vpack.c.b16 %v918, %v910
        %v1111 = vpack.c.b16 %v927, %v919
        %v1112 = vpack.c.b16 %v928, %v920
        %v1113 = vpack.c.b16 %v929, %v921
        %v1114 = vpack.c.b16 %v930, %v922
        %v1115 = vpack.c.b16 %v931, %v923
        %v1116 = vpack.c.b16 %v932, %v924
        %v1117 = vpack.c.b16 %v933, %v925
        %v1118 = vpack.c.b16 %v934, %v926
        %v1119 = vpack.c.b16 %v943, %v935
        %v1120 = vpack.c.b16 %v944, %v936
        %v1121 = vpack.c.b16 %v945, %v937
        %v1122 = vpack.c.b16 %v946, %v938
        %v1123 = vpack.c.b16 %v947, %v939
        %v1124 = vpack.c.b16 %v948, %v940
        %v1125 = vpack.c.b16 %v949, %v941
        %v1126 = vpack.c.b16 %v950, %v942
        %v1127 = vpack.c.b16 %v959, %v951
        %v1128 = vpack.c.b16 %v960, %v952
        %v1129 = vpack.c.b16 %v961, %v953
        %v1130 = vpack.c.b16 %v962, %v954
        %v1131 = vpack.c.b16 %v963, %v955
        %v1132 = vpack.c.b16 %v964, %v956
        %v1133 = vpack.c.b16 %v965, %v957
        %v1134 = vpack.c.b16 %v966, %v958
        %v1135 = vpack.c.b16 %v975, %v967
        %v1136 = vpack.c.b16 %v976, %v968
        %v1137 = vpack.c.b16 %v977, %v969
        %v1138 = vpack.c.b16 %v978, %v970
        %v1139 = vpack.c.b16 %v979, %v971
        %v1140 = vpack.c.b16 %v980, %v972
        %v1141 = vpack.c.b16 %v981, %v973
        %v1142 = vpack.c.b16 %v982, %v974
        %v1143 = vpack.c.b16 %v991, %v983
        %v1144 = vpack.c.b16 %v992, %v984
        %v1145 = vpack.c.b16 %v993, %v985
        %v1146 = vpack.c.b16 %v994, %v986
        %v1147 = vpack.c.b16 %v995, %v987
        %v1148 = vpack.c.b16 %v996, %v988
        %v1149 = vpack.c.b16 %v997, %v989
        %v1150 = vpack.c.b16 %v998, %v990
        %v1151 = vpack.c.b16 %v1007, %v999
        %v1152 = vpack.c.b16 %v1008, %v1000
        %v1153 = vpack.c.b16 %v1009, %v1001
        %v1154 = vpack.c.b16 %v1010, %v1002
        %v1155 = vpack.c.b16 %v1011, %v1003
        %v1156 = vpack.c.b16 %v1012, %v1004
        %v1157 = vpack.c.b16 %v1013, %v1005
        %v1158 = vpack.c.b16 %v1014, %v1006
        %v1159 = vpack.c.b16 %v1023, %v1015
        %v1160 = vpack.c.b16 %v1024, %v1016
        %v1161 = vpack.c.b16 %v1025, %v1017
        %v1162 = vpack.c.b16 %v1026, %v1018
        %v1163 = vpack.c.b16 %v1027, %v1019
        %v1164 = vpack.c.b16 %v1028, %v1020
        %v1165 = vpack.c.b16 %v1029, %v1021
        %v1166 = vpack.c.b16 %v1030, %v1022
        %v1167 = vpack.c.b16 %v1039, %v1031
        %v1168 = vpack.c.b16 %v1040, %v1032
        %v1169 = vpack.c.b16 %v1041, %v1033
        %v1170 = vpack.c.b16 %v1042, %v1034
        %v1171 = vpack.c.b16 %v1043, %v1035
        %v1172 = vpack.c.b16 %v1044, %v1036
        %v1173 = vpack.c.b16 %v1045, %v1037
        %v1174 = vpack.c.b16 %v1046, %v1038
        %1303 = vmatpush.bf16.msra.mxu0 %v1103
        %1304 = vmatpush.bf16.msra.mxu0 %v1095
        %1305 = vmatpush.bf16.msra.mxu0 %v1087
        %1306 = vmatpush.bf16.msra.mxu0 %v1079
        %1307 = vmatpush.bf16.msra.mxu0 %v1071
        %1308 = vmatpush.bf16.msra.mxu0 %v1063
        %1309 = vmatpush.bf16.msra.mxu0 %v1055
        %1310 = vmatpush.bf16.msra.mxu0 %v1047
        %1311 = vmatmul.bf16.gmra.mxu0 %v599
        %v1312 = vpop.f32.mrf.mxu0
        %v1313 = vadd.f32 %v495, %v1312
        %v1314 = vpop.f32.mrf.mxu0
        %v1315 = vadd.f32 %v495, %v1314
        %1316 = vmatmul.bf16.gmra.mxu0 %v601
        %v1317 = vpop.f32.mrf.mxu0
        %v1318 = vadd.f32 %v495, %v1317
        %v1319 = vpop.f32.mrf.mxu0
        %v1320 = vadd.f32 %v495, %v1319
        %1321 = vmatmul.bf16.gmra.mxu0 %v603
        %v1322 = vpop.f32.mrf.mxu0
        %v1323 = vadd.f32 %v495, %v1322
        %v1324 = vpop.f32.mrf.mxu0
        %v1325 = vadd.f32 %v495, %v1324
        %1326 = vmatmul.bf16.gmra.mxu0 %v605
        %v1327 = vpop.f32.mrf.mxu0
        %v1328 = vadd.f32 %v495, %v1327
        %v1329 = vpop.f32.mrf.mxu0
        %v1330 = vadd.f32 %v495, %v1329
        %1331 = vmatmul.bf16.gmra.mxu0 %v607
        %v1332 = vpop.f32.mrf.mxu0
        %v1333 = vadd.f32 %v495, %v1332
        %v1334 = vpop.f32.mrf.mxu0
        %v1335 = vadd.f32 %v495, %v1334
        %1336 = vmatmul.bf16.gmra.mxu0 %v609
        %v1337 = vpop.f32.mrf.mxu0
        %v1338 = vadd.f32 %v495, %v1337
        %v1339 = vpop.f32.mrf.mxu0
        %v1340 = vadd.f32 %v495, %v1339
        %1341 = vmatmul.bf16.gmra.mxu0 %v611
        %v1342 = vpop.f32.mrf.mxu0
        %v1343 = vadd.f32 %v495, %v1342
        %v1344 = vpop.f32.mrf.mxu0
        %v1345 = vadd.f32 %v495, %v1344
        %1346 = vmatmul.bf16.gmra.mxu0 %v613
        %v1347 = vpop.f32.mrf.mxu0
        %v1348 = vadd.f32 %v495, %v1347
        %v1349 = vpop.f32.mrf.mxu0
        %v1350 = vadd.f32 %v495, %v1349
        %1351 = vmatmul.bf16.gmra.mxu0 %v615
        %v1352 = vpop.f32.mrf.mxu0
        %v1353 = vadd.f32 %v495, %v1352
        %v1354 = vpop.f32.mrf.mxu0
        %v1355 = vadd.f32 %v495, %v1354
        %1356 = vmatmul.bf16.gmra.mxu0 %v617
        %v1357 = vpop.f32.mrf.mxu0
        %v1358 = vadd.f32 %v495, %v1357
        %v1359 = vpop.f32.mrf.mxu0
        %v1360 = vadd.f32 %v495, %v1359
        %1361 = vmatmul.bf16.gmra.mxu0 %v619
        %v1362 = vpop.f32.mrf.mxu0
        %v1363 = vadd.f32 %v495, %v1362
        %v1364 = vpop.f32.mrf.mxu0
        %v1365 = vadd.f32 %v495, %v1364
        %1366 = vmatmul.bf16.gmra.mxu0 %v621
        %v1367 = vpop.f32.mrf.mxu0
        %v1368 = vadd.f32 %v495, %v1367
        %v1369 = vpop.f32.mrf.mxu0
        %v1370 = vadd.f32 %v495, %v1369
        %1371 = vmatmul.bf16.gmra.mxu0 %v623
        %v1372 = vpop.f32.mrf.mxu0
        %v1373 = vadd.f32 %v495, %v1372
        %v1374 = vpop.f32.mrf.mxu0
        %v1375 = vadd.f32 %v495, %v1374
        %1376 = vmatmul.bf16.gmra.mxu0 %v625
        %v1377 = vpop.f32.mrf.mxu0
        %v1378 = vadd.f32 %v495, %v1377
        %v1379 = vpop.f32.mrf.mxu0
        %v1380 = vadd.f32 %v495, %v1379
        %1381 = vmatmul.bf16.gmra.mxu0 %v627
        %v1382 = vpop.f32.mrf.mxu0
        %v1383 = vadd.f32 %v495, %v1382
        %v1384 = vpop.f32.mrf.mxu0
        %v1385 = vadd.f32 %v495, %v1384
        %1386 = vmatmul.bf16.gmra.mxu0 %v629
        %v1387 = vpop.f32.mrf.mxu0
        %v1388 = vadd.f32 %v495, %v1387
        %v1389 = vpop.f32.mrf.mxu0
        %v1390 = vadd.f32 %v495, %v1389
        %1391 = vdwg.mxu0
        %1392 = vmatpush.bf16.msra.mxu0 %v1167
        %1393 = vmatpush.bf16.msra.mxu0 %v1159
        %1394 = vmatpush.bf16.msra.mxu0 %v1151
        %1395 = vmatpush.bf16.msra.mxu0 %v1143
        %1396 = vmatpush.bf16.msra.mxu0 %v1135
        %1397 = vmatpush.bf16.msra.mxu0 %v1127
        %1398 = vmatpush.bf16.msra.mxu0 %v1119
        %1399 = vmatpush.bf16.msra.mxu0 %v1111
        %1400 = vmatmul.bf16.gmra.mxu0 %v600
        %v1401 = vpop.f32.mrf.mxu0
        %v1402 = vadd.f32 %v1313, %v1401
        %v1403 = vpop.f32.mrf.mxu0
        %v1404 = vadd.f32 %v1315, %v1403
        %1405 = vmatmul.bf16.gmra.mxu0 %v602
        %v1406 = vpop.f32.mrf.mxu0
        %v1407 = vadd.f32 %v1318, %v1406
        %v1408 = vpop.f32.mrf.mxu0
        %v1409 = vadd.f32 %v1320, %v1408
        %1410 = vmatmul.bf16.gmra.mxu0 %v604
        %v1411 = vpop.f32.mrf.mxu0
        %v1412 = vadd.f32 %v1323, %v1411
        %v1413 = vpop.f32.mrf.mxu0
        %v1414 = vadd.f32 %v1325, %v1413
        %1415 = vmatmul.bf16.gmra.mxu0 %v606
        %v1416 = vpop.f32.mrf.mxu0
        %v1417 = vadd.f32 %v1328, %v1416
        %v1418 = vpop.f32.mrf.mxu0
        %v1419 = vadd.f32 %v1330, %v1418
        %1420 = vmatmul.bf16.gmra.mxu0 %v608
        %v1421 = vpop.f32.mrf.mxu0
        %v1422 = vadd.f32 %v1333, %v1421
        %v1423 = vpop.f32.mrf.mxu0
        %v1424 = vadd.f32 %v1335, %v1423
        %1425 = vmatmul.bf16.gmra.mxu0 %v610
        %v1426 = vpop.f32.mrf.mxu0
        %v1427 = vadd.f32 %v1338, %v1426
        %v1428 = vpop.f32.mrf.mxu0
        %v1429 = vadd.f32 %v1340, %v1428
        %1430 = vmatmul.bf16.gmra.mxu0 %v612
        %v1431 = vpop.f32.mrf.mxu0
        %v1432 = vadd.f32 %v1343, %v1431
        %v1433 = vpop.f32.mrf.mxu0
        %v1434 = vadd.f32 %v1345, %v1433
        %1435 = vmatmul.bf16.gmra.mxu0 %v614
        %v1436 = vpop.f32.mrf.mxu0
        %v1437 = vadd.f32 %v1348, %v1436
        %v1438 = vpop.f32.mrf.mxu0
        %v1439 = vadd.f32 %v1350, %v1438
        %1440 = vmatmul.bf16.gmra.mxu0 %v616
        %v1441 = vpop.f32.mrf.mxu0
        %v1442 = vadd.f32 %v1353, %v1441
        %v1443 = vpop.f32.mrf.mxu0
        %v1444 = vadd.f32 %v1355, %v1443
        %1445 = vmatmul.bf16.gmra.mxu0 %v618
        %v1446 = vpop.f32.mrf.mxu0
        %v1447 = vadd.f32 %v1358, %v1446
        %v1448 = vpop.f32.mrf.mxu0
        %v1449 = vadd.f32 %v1360, %v1448
        %1450 = vmatmul.bf16.gmra.mxu0 %v620
        %v1451 = vpop.f32.mrf.mxu0
        %v1452 = vadd.f32 %v1363, %v1451
        %v1453 = vpop.f32.mrf.mxu0
        %v1454 = vadd.f32 %v1365, %v1453
        %1455 = vmatmul.bf16.gmra.mxu0 %v622
        %v1456 = vpop.f32.mrf.mxu0
        %v1457 = vadd.f32 %v1368, %v1456
        %v1458 = vpop.f32.mrf.mxu0
        %v1459 = vadd.f32 %v1370, %v1458
        %1460 = vmatmul.bf16.gmra.mxu0 %v624
        %v1461 = vpop.f32.mrf.mxu0
        %v1462 = vadd.f32 %v1373, %v1461
        %v1463 = vpop.f32.mrf.mxu0
        %v1464 = vadd.f32 %v1375, %v1463
        %1465 = vmatmul.bf16.gmra.mxu0 %v626
        %v1466 = vpop.f32.mrf.mxu0
        %v1467 = vadd.f32 %v1378, %v1466
        %v1468 = vpop.f32.mrf.mxu0
        %v1469 = vadd.f32 %v1380, %v1468
        %1470 = vmatmul.bf16.gmra.mxu0 %v628
        %v1471 = vpop.f32.mrf.mxu0
        %v1472 = vadd.f32 %v1383, %v1471
        %v1473 = vpop.f32.mrf.mxu0
        %v1474 = vadd.f32 %v1385, %v1473
        %1475 = vmatmul.bf16.gmra.mxu0 %v630
        %v1476 = vpop.f32.mrf.mxu0
        %v1477 = vadd.f32 %v1388, %v1476
        %v1478 = vpop.f32.mrf.mxu0
        %v1479 = vadd.f32 %v1390, %v1478
        %1480 = vdwg.mxu0
        %1481 = vmatpush.bf16.msra.mxu0 %v1104
        %1482 = vmatpush.bf16.msra.mxu0 %v1096
        %1483 = vmatpush.bf16.msra.mxu0 %v1088
        %1484 = vmatpush.bf16.msra.mxu0 %v1080
        %1485 = vmatpush.bf16.msra.mxu0 %v1072
        %1486 = vmatpush.bf16.msra.mxu0 %v1064
        %1487 = vmatpush.bf16.msra.mxu0 %v1056
        %1488 = vmatpush.bf16.msra.mxu0 %v1048
        %1489 = vmatmul.bf16.gmra.mxu0 %v599
        %v1490 = vpop.f32.mrf.mxu0
        %v1491 = vadd.f32 %v496, %v1490
        %v1492 = vpop.f32.mrf.mxu0
        %v1493 = vadd.f32 %v496, %v1492
        %1494 = vmatmul.bf16.gmra.mxu0 %v601
        %v1495 = vpop.f32.mrf.mxu0
        %v1496 = vadd.f32 %v496, %v1495
        %v1497 = vpop.f32.mrf.mxu0
        %v1498 = vadd.f32 %v496, %v1497
        %1499 = vmatmul.bf16.gmra.mxu0 %v603
        %v1500 = vpop.f32.mrf.mxu0
        %v1501 = vadd.f32 %v496, %v1500
        %v1502 = vpop.f32.mrf.mxu0
        %v1503 = vadd.f32 %v496, %v1502
        %1504 = vmatmul.bf16.gmra.mxu0 %v605
        %v1505 = vpop.f32.mrf.mxu0
        %v1506 = vadd.f32 %v496, %v1505
        %v1507 = vpop.f32.mrf.mxu0
        %v1508 = vadd.f32 %v496, %v1507
        %1509 = vmatmul.bf16.gmra.mxu0 %v607
        %v1510 = vpop.f32.mrf.mxu0
        %v1511 = vadd.f32 %v496, %v1510
        %v1512 = vpop.f32.mrf.mxu0
        %v1513 = vadd.f32 %v496, %v1512
        %1514 = vmatmul.bf16.gmra.mxu0 %v609
        %v1515 = vpop.f32.mrf.mxu0
        %v1516 = vadd.f32 %v496, %v1515
        %v1517 = vpop.f32.mrf.mxu0
        %v1518 = vadd.f32 %v496, %v1517
        %1519 = vmatmul.bf16.gmra.mxu0 %v611
        %v1520 = vpop.f32.mrf.mxu0
        %v1521 = vadd.f32 %v496, %v1520
        %v1522 = vpop.f32.mrf.mxu0
        %v1523 = vadd.f32 %v496, %v1522
        %1524 = vmatmul.bf16.gmra.mxu0 %v613
        %v1525 = vpop.f32.mrf.mxu0
        %v1526 = vadd.f32 %v496, %v1525
        %v1527 = vpop.f32.mrf.mxu0
        %v1528 = vadd.f32 %v496, %v1527
        %1529 = vmatmul.bf16.gmra.mxu0 %v615
        %v1530 = vpop.f32.mrf.mxu0
        %v1531 = vadd.f32 %v496, %v1530
        %v1532 = vpop.f32.mrf.mxu0
        %v1533 = vadd.f32 %v496, %v1532
        %1534 = vmatmul.bf16.gmra.mxu0 %v617
        %v1535 = vpop.f32.mrf.mxu0
        %v1536 = vadd.f32 %v496, %v1535
        %v1537 = vpop.f32.mrf.mxu0
        %v1538 = vadd.f32 %v496, %v1537
        %1539 = vmatmul.bf16.gmra.mxu0 %v619
        %v1540 = vpop.f32.mrf.mxu0
        %v1541 = vadd.f32 %v496, %v1540
        %v1542 = vpop.f32.mrf.mxu0
        %v1543 = vadd.f32 %v496, %v1542
        %1544 = vmatmul.bf16.gmra.mxu0 %v621
        %v1545 = vpop.f32.mrf.mxu0
        %v1546 = vadd.f32 %v496, %v1545
        %v1547 = vpop.f32.mrf.mxu0
        %v1548 = vadd.f32 %v496, %v1547
        %1549 = vmatmul.bf16.gmra.mxu0 %v623
        %v1550 = vpop.f32.mrf.mxu0
        %v1551 = vadd.f32 %v496, %v1550
        %v1552 = vpop.f32.mrf.mxu0
        %v1553 = vadd.f32 %v496, %v1552
        %1554 = vmatmul.bf16.gmra.mxu0 %v625
        %v1555 = vpop.f32.mrf.mxu0
        %v1556 = vadd.f32 %v496, %v1555
        %v1557 = vpop.f32.mrf.mxu0
        %v1558 = vadd.f32 %v496, %v1557
        %1559 = vmatmul.bf16.gmra.mxu0 %v627
        %v1560 = vpop.f32.mrf.mxu0
        %v1561 = vadd.f32 %v496, %v1560
        %v1562 = vpop.f32.mrf.mxu0
        %v1563 = vadd.f32 %v496, %v1562
        %1564 = vmatmul.bf16.gmra.mxu0 %v629
        %v1565 = vpop.f32.mrf.mxu0
        %v1566 = vadd.f32 %v496, %v1565
        %v1567 = vpop.f32.mrf.mxu0
        %v1568 = vadd.f32 %v496, %v1567
        %1569 = vdwg.mxu0
        %1570 = vmatpush.bf16.msra.mxu0 %v1168
        %1571 = vmatpush.bf16.msra.mxu0 %v1160
        %1572 = vmatpush.bf16.msra.mxu0 %v1152
        %1573 = vmatpush.bf16.msra.mxu0 %v1144
        %1574 = vmatpush.bf16.msra.mxu0 %v1136
        %1575 = vmatpush.bf16.msra.mxu0 %v1128
        %1576 = vmatpush.bf16.msra.mxu0 %v1120
        %1577 = vmatpush.bf16.msra.mxu0 %v1112
        %1578 = vmatmul.bf16.gmra.mxu0 %v600
        %v1579 = vpop.f32.mrf.mxu0
        %v1580 = vadd.f32 %v1491, %v1579
        %v1581 = vpop.f32.mrf.mxu0
        %v1582 = vadd.f32 %v1493, %v1581
        %1583 = vmatmul.bf16.gmra.mxu0 %v602
        %v1584 = vpop.f32.mrf.mxu0
        %v1585 = vadd.f32 %v1496, %v1584
        %v1586 = vpop.f32.mrf.mxu0
        %v1587 = vadd.f32 %v1498, %v1586
        %1588 = vmatmul.bf16.gmra.mxu0 %v604
        %v1589 = vpop.f32.mrf.mxu0
        %v1590 = vadd.f32 %v1501, %v1589
        %v1591 = vpop.f32.mrf.mxu0
        %v1592 = vadd.f32 %v1503, %v1591
        %1593 = vmatmul.bf16.gmra.mxu0 %v606
        %v1594 = vpop.f32.mrf.mxu0
        %v1595 = vadd.f32 %v1506, %v1594
        %v1596 = vpop.f32.mrf.mxu0
        %v1597 = vadd.f32 %v1508, %v1596
        %1598 = vmatmul.bf16.gmra.mxu0 %v608
        %v1599 = vpop.f32.mrf.mxu0
        %v1600 = vadd.f32 %v1511, %v1599
        %v1601 = vpop.f32.mrf.mxu0
        %v1602 = vadd.f32 %v1513, %v1601
        %1603 = vmatmul.bf16.gmra.mxu0 %v610
        %v1604 = vpop.f32.mrf.mxu0
        %v1605 = vadd.f32 %v1516, %v1604
        %v1606 = vpop.f32.mrf.mxu0
        %v1607 = vadd.f32 %v1518, %v1606
        %1608 = vmatmul.bf16.gmra.mxu0 %v612
        %v1609 = vpop.f32.mrf.mxu0
        %v1610 = vadd.f32 %v1521, %v1609
        %v1611 = vpop.f32.mrf.mxu0
        %v1612 = vadd.f32 %v1523, %v1611
        %1613 = vmatmul.bf16.gmra.mxu0 %v614
        %v1614 = vpop.f32.mrf.mxu0
        %v1615 = vadd.f32 %v1526, %v1614
        %v1616 = vpop.f32.mrf.mxu0
        %v1617 = vadd.f32 %v1528, %v1616
        %1618 = vmatmul.bf16.gmra.mxu0 %v616
        %v1619 = vpop.f32.mrf.mxu0
        %v1620 = vadd.f32 %v1531, %v1619
        %v1621 = vpop.f32.mrf.mxu0
        %v1622 = vadd.f32 %v1533, %v1621
        %1623 = vmatmul.bf16.gmra.mxu0 %v618
        %v1624 = vpop.f32.mrf.mxu0
        %v1625 = vadd.f32 %v1536, %v1624
        %v1626 = vpop.f32.mrf.mxu0
        %v1627 = vadd.f32 %v1538, %v1626
        %1628 = vmatmul.bf16.gmra.mxu0 %v620
        %v1629 = vpop.f32.mrf.mxu0
        %v1630 = vadd.f32 %v1541, %v1629
        %v1631 = vpop.f32.mrf.mxu0
        %v1632 = vadd.f32 %v1543, %v1631
        %1633 = vmatmul.bf16.gmra.mxu0 %v622
        %v1634 = vpop.f32.mrf.mxu0
        %v1635 = vadd.f32 %v1546, %v1634
        %v1636 = vpop.f32.mrf.mxu0
        %v1637 = vadd.f32 %v1548, %v1636
        %1638 = vmatmul.bf16.gmra.mxu0 %v624
        %v1639 = vpop.f32.mrf.mxu0
        %v1640 = vadd.f32 %v1551, %v1639
        %v1641 = vpop.f32.mrf.mxu0
        %v1642 = vadd.f32 %v1553, %v1641
        %1643 = vmatmul.bf16.gmra.mxu0 %v626
        %v1644 = vpop.f32.mrf.mxu0
        %v1645 = vadd.f32 %v1556, %v1644
        %v1646 = vpop.f32.mrf.mxu0
        %v1647 = vadd.f32 %v1558, %v1646
        %1648 = vmatmul.bf16.gmra.mxu0 %v628
        %v1649 = vpop.f32.mrf.mxu0
        %v1650 = vadd.f32 %v1561, %v1649
        %v1651 = vpop.f32.mrf.mxu0
        %v1652 = vadd.f32 %v1563, %v1651
        %1653 = vmatmul.bf16.gmra.mxu0 %v630
        %v1654 = vpop.f32.mrf.mxu0
        %v1655 = vadd.f32 %v1566, %v1654
        %v1656 = vpop.f32.mrf.mxu0
        %v1657 = vadd.f32 %v1568, %v1656
        %1658 = vdwg.mxu0
        %1659 = vmatpush.bf16.msra.mxu0 %v1105
        %1660 = vmatpush.bf16.msra.mxu0 %v1097
        %1661 = vmatpush.bf16.msra.mxu0 %v1089
        %1662 = vmatpush.bf16.msra.mxu0 %v1081
        %1663 = vmatpush.bf16.msra.mxu0 %v1073
        %1664 = vmatpush.bf16.msra.mxu0 %v1065
        %1665 = vmatpush.bf16.msra.mxu0 %v1057
        %1666 = vmatpush.bf16.msra.mxu0 %v1049
        %1667 = vmatmul.bf16.gmra.mxu0 %v599
        %v1668 = vpop.f32.mrf.mxu0
        %v1669 = vadd.f32 %v497, %v1668
        %v1670 = vpop.f32.mrf.mxu0
        %v1671 = vadd.f32 %v497, %v1670
        %1672 = vmatmul.bf16.gmra.mxu0 %v601
        %v1673 = vpop.f32.mrf.mxu0
        %v1674 = vadd.f32 %v497, %v1673
        %v1675 = vpop.f32.mrf.mxu0
        %v1676 = vadd.f32 %v497, %v1675
        %1677 = vmatmul.bf16.gmra.mxu0 %v603
        %v1678 = vpop.f32.mrf.mxu0
        %v1679 = vadd.f32 %v497, %v1678
        %v1680 = vpop.f32.mrf.mxu0
        %v1681 = vadd.f32 %v497, %v1680
        %1682 = vmatmul.bf16.gmra.mxu0 %v605
        %v1683 = vpop.f32.mrf.mxu0
        %v1684 = vadd.f32 %v497, %v1683
        %v1685 = vpop.f32.mrf.mxu0
        %v1686 = vadd.f32 %v497, %v1685
        %1687 = vmatmul.bf16.gmra.mxu0 %v607
        %v1688 = vpop.f32.mrf.mxu0
        %v1689 = vadd.f32 %v497, %v1688
        %v1690 = vpop.f32.mrf.mxu0
        %v1691 = vadd.f32 %v497, %v1690
        %1692 = vmatmul.bf16.gmra.mxu0 %v609
        %v1693 = vpop.f32.mrf.mxu0
        %v1694 = vadd.f32 %v497, %v1693
        %v1695 = vpop.f32.mrf.mxu0
        %v1696 = vadd.f32 %v497, %v1695
        %1697 = vmatmul.bf16.gmra.mxu0 %v611
        %v1698 = vpop.f32.mrf.mxu0
        %v1699 = vadd.f32 %v497, %v1698
        %v1700 = vpop.f32.mrf.mxu0
        %v1701 = vadd.f32 %v497, %v1700
        %1702 = vmatmul.bf16.gmra.mxu0 %v613
        %v1703 = vpop.f32.mrf.mxu0
        %v1704 = vadd.f32 %v497, %v1703
        %v1705 = vpop.f32.mrf.mxu0
        %v1706 = vadd.f32 %v497, %v1705
        %1707 = vmatmul.bf16.gmra.mxu0 %v615
        %v1708 = vpop.f32.mrf.mxu0
        %v1709 = vadd.f32 %v497, %v1708
        %v1710 = vpop.f32.mrf.mxu0
        %v1711 = vadd.f32 %v497, %v1710
        %1712 = vmatmul.bf16.gmra.mxu0 %v617
        %v1713 = vpop.f32.mrf.mxu0
        %v1714 = vadd.f32 %v497, %v1713
        %v1715 = vpop.f32.mrf.mxu0
        %v1716 = vadd.f32 %v497, %v1715
        %1717 = vmatmul.bf16.gmra.mxu0 %v619
        %v1718 = vpop.f32.mrf.mxu0
        %v1719 = vadd.f32 %v497, %v1718
        %v1720 = vpop.f32.mrf.mxu0
        %v1721 = vadd.f32 %v497, %v1720
        %1722 = vmatmul.bf16.gmra.mxu0 %v621
        %v1723 = vpop.f32.mrf.mxu0
        %v1724 = vadd.f32 %v497, %v1723
        %v1725 = vpop.f32.mrf.mxu0
        %v1726 = vadd.f32 %v497, %v1725
        %1727 = vmatmul.bf16.gmra.mxu0 %v623
        %v1728 = vpop.f32.mrf.mxu0
        %v1729 = vadd.f32 %v497, %v1728
        %v1730 = vpop.f32.mrf.mxu0
        %v1731 = vadd.f32 %v497, %v1730
        %1732 = vmatmul.bf16.gmra.mxu0 %v625
        %v1733 = vpop.f32.mrf.mxu0
        %v1734 = vadd.f32 %v497, %v1733
        %v1735 = vpop.f32.mrf.mxu0
        %v1736 = vadd.f32 %v497, %v1735
        %1737 = vmatmul.bf16.gmra.mxu0 %v627
        %v1738 = vpop.f32.mrf.mxu0
        %v1739 = vadd.f32 %v497, %v1738
        %v1740 = vpop.f32.mrf.mxu0
        %v1741 = vadd.f32 %v497, %v1740
        %1742 = vmatmul.bf16.gmra.mxu0 %v629
        %v1743 = vpop.f32.mrf.mxu0
        %v1744 = vadd.f32 %v497, %v1743
        %v1745 = vpop.f32.mrf.mxu0
        %v1746 = vadd.f32 %v497, %v1745
        %1747 = vdwg.mxu0
        %1748 = vmatpush.bf16.msra.mxu0 %v1169
        %1749 = vmatpush.bf16.msra.mxu0 %v1161
        %1750 = vmatpush.bf16.msra.mxu0 %v1153
        %1751 = vmatpush.bf16.msra.mxu0 %v1145
        %1752 = vmatpush.bf16.msra.mxu0 %v1137
        %1753 = vmatpush.bf16.msra.mxu0 %v1129
        %1754 = vmatpush.bf16.msra.mxu0 %v1121
        %1755 = vmatpush.bf16.msra.mxu0 %v1113
        %1756 = vmatmul.bf16.gmra.mxu0 %v600
        %v1757 = vpop.f32.mrf.mxu0
        %v1758 = vadd.f32 %v1669, %v1757
        %v1759 = vpop.f32.mrf.mxu0
        %v1760 = vadd.f32 %v1671, %v1759
        %1761 = vmatmul.bf16.gmra.mxu0 %v602
        %v1762 = vpop.f32.mrf.mxu0
        %v1763 = vadd.f32 %v1674, %v1762
        %v1764 = vpop.f32.mrf.mxu0
        %v1765 = vadd.f32 %v1676, %v1764
        %1766 = vmatmul.bf16.gmra.mxu0 %v604
        %v1767 = vpop.f32.mrf.mxu0
        %v1768 = vadd.f32 %v1679, %v1767
        %v1769 = vpop.f32.mrf.mxu0
        %v1770 = vadd.f32 %v1681, %v1769
        %1771 = vmatmul.bf16.gmra.mxu0 %v606
        %v1772 = vpop.f32.mrf.mxu0
        %v1773 = vadd.f32 %v1684, %v1772
        %v1774 = vpop.f32.mrf.mxu0
        %v1775 = vadd.f32 %v1686, %v1774
        %1776 = vmatmul.bf16.gmra.mxu0 %v608
        %v1777 = vpop.f32.mrf.mxu0
        %v1778 = vadd.f32 %v1689, %v1777
        %v1779 = vpop.f32.mrf.mxu0
        %v1780 = vadd.f32 %v1691, %v1779
        %1781 = vmatmul.bf16.gmra.mxu0 %v610
        %v1782 = vpop.f32.mrf.mxu0
        %v1783 = vadd.f32 %v1694, %v1782
        %v1784 = vpop.f32.mrf.mxu0
        %v1785 = vadd.f32 %v1696, %v1784
        %1786 = vmatmul.bf16.gmra.mxu0 %v612
        %v1787 = vpop.f32.mrf.mxu0
        %v1788 = vadd.f32 %v1699, %v1787
        %v1789 = vpop.f32.mrf.mxu0
        %v1790 = vadd.f32 %v1701, %v1789
        %1791 = vmatmul.bf16.gmra.mxu0 %v614
        %v1792 = vpop.f32.mrf.mxu0
        %v1793 = vadd.f32 %v1704, %v1792
        %v1794 = vpop.f32.mrf.mxu0
        %v1795 = vadd.f32 %v1706, %v1794
        %1796 = vmatmul.bf16.gmra.mxu0 %v616
        %v1797 = vpop.f32.mrf.mxu0
        %v1798 = vadd.f32 %v1709, %v1797
        %v1799 = vpop.f32.mrf.mxu0
        %v1800 = vadd.f32 %v1711, %v1799
        %1801 = vmatmul.bf16.gmra.mxu0 %v618
        %v1802 = vpop.f32.mrf.mxu0
        %v1803 = vadd.f32 %v1714, %v1802
        %v1804 = vpop.f32.mrf.mxu0
        %v1805 = vadd.f32 %v1716, %v1804
        %1806 = vmatmul.bf16.gmra.mxu0 %v620
        %v1807 = vpop.f32.mrf.mxu0
        %v1808 = vadd.f32 %v1719, %v1807
        %v1809 = vpop.f32.mrf.mxu0
        %v1810 = vadd.f32 %v1721, %v1809
        %1811 = vmatmul.bf16.gmra.mxu0 %v622
        %v1812 = vpop.f32.mrf.mxu0
        %v1813 = vadd.f32 %v1724, %v1812
        %v1814 = vpop.f32.mrf.mxu0
        %v1815 = vadd.f32 %v1726, %v1814
        %1816 = vmatmul.bf16.gmra.mxu0 %v624
        %v1817 = vpop.f32.mrf.mxu0
        %v1818 = vadd.f32 %v1729, %v1817
        %v1819 = vpop.f32.mrf.mxu0
        %v1820 = vadd.f32 %v1731, %v1819
        %1821 = vmatmul.bf16.gmra.mxu0 %v626
        %v1822 = vpop.f32.mrf.mxu0
        %v1823 = vadd.f32 %v1734, %v1822
        %v1824 = vpop.f32.mrf.mxu0
        %v1825 = vadd.f32 %v1736, %v1824
        %1826 = vmatmul.bf16.gmra.mxu0 %v628
        %v1827 = vpop.f32.mrf.mxu0
        %v1828 = vadd.f32 %v1739, %v1827
        %v1829 = vpop.f32.mrf.mxu0
        %v1830 = vadd.f32 %v1741, %v1829
        %1831 = vmatmul.bf16.gmra.mxu0 %v630
        %v1832 = vpop.f32.mrf.mxu0
        %v1833 = vadd.f32 %v1744, %v1832
        %v1834 = vpop.f32.mrf.mxu0
        %v1835 = vadd.f32 %v1746, %v1834
        %1836 = vdwg.mxu0
        %1837 = vmatpush.bf16.msra.mxu0 %v1106
        %1838 = vmatpush.bf16.msra.mxu0 %v1098
        %1839 = vmatpush.bf16.msra.mxu0 %v1090
        %1840 = vmatpush.bf16.msra.mxu0 %v1082
        %1841 = vmatpush.bf16.msra.mxu0 %v1074
        %1842 = vmatpush.bf16.msra.mxu0 %v1066
        %1843 = vmatpush.bf16.msra.mxu0 %v1058
        %1844 = vmatpush.bf16.msra.mxu0 %v1050
        %1845 = vmatmul.bf16.gmra.mxu0 %v599
        %v1846 = vpop.f32.mrf.mxu0
        %v1847 = vadd.f32 %v498, %v1846
        %v1848 = vpop.f32.mrf.mxu0
        %v1849 = vadd.f32 %v498, %v1848
        %1850 = vmatmul.bf16.gmra.mxu0 %v601
        %v1851 = vpop.f32.mrf.mxu0
        %v1852 = vadd.f32 %v498, %v1851
        %v1853 = vpop.f32.mrf.mxu0
        %v1854 = vadd.f32 %v498, %v1853
        %1855 = vmatmul.bf16.gmra.mxu0 %v603
        %v1856 = vpop.f32.mrf.mxu0
        %v1857 = vadd.f32 %v498, %v1856
        %v1858 = vpop.f32.mrf.mxu0
        %v1859 = vadd.f32 %v498, %v1858
        %1860 = vmatmul.bf16.gmra.mxu0 %v605
        %v1861 = vpop.f32.mrf.mxu0
        %v1862 = vadd.f32 %v498, %v1861
        %v1863 = vpop.f32.mrf.mxu0
        %v1864 = vadd.f32 %v498, %v1863
        %1865 = vmatmul.bf16.gmra.mxu0 %v607
        %v1866 = vpop.f32.mrf.mxu0
        %v1867 = vadd.f32 %v498, %v1866
        %v1868 = vpop.f32.mrf.mxu0
        %v1869 = vadd.f32 %v498, %v1868
        %1870 = vmatmul.bf16.gmra.mxu0 %v609
        %v1871 = vpop.f32.mrf.mxu0
        %v1872 = vadd.f32 %v498, %v1871
        %v1873 = vpop.f32.mrf.mxu0
        %v1874 = vadd.f32 %v498, %v1873
        %1875 = vmatmul.bf16.gmra.mxu0 %v611
        %v1876 = vpop.f32.mrf.mxu0
        %v1877 = vadd.f32 %v498, %v1876
        %v1878 = vpop.f32.mrf.mxu0
        %v1879 = vadd.f32 %v498, %v1878
        %1880 = vmatmul.bf16.gmra.mxu0 %v613
        %v1881 = vpop.f32.mrf.mxu0
        %v1882 = vadd.f32 %v498, %v1881
        %v1883 = vpop.f32.mrf.mxu0
        %v1884 = vadd.f32 %v498, %v1883
        %1885 = vmatmul.bf16.gmra.mxu0 %v615
        %v1886 = vpop.f32.mrf.mxu0
        %v1887 = vadd.f32 %v498, %v1886
        %v1888 = vpop.f32.mrf.mxu0
        %v1889 = vadd.f32 %v498, %v1888
        %1890 = vmatmul.bf16.gmra.mxu0 %v617
        %v1891 = vpop.f32.mrf.mxu0
        %v1892 = vadd.f32 %v498, %v1891
        %v1893 = vpop.f32.mrf.mxu0
        %v1894 = vadd.f32 %v498, %v1893
        %1895 = vmatmul.bf16.gmra.mxu0 %v619
        %v1896 = vpop.f32.mrf.mxu0
        %v1897 = vadd.f32 %v498, %v1896
        %v1898 = vpop.f32.mrf.mxu0
        %v1899 = vadd.f32 %v498, %v1898
        %1900 = vmatmul.bf16.gmra.mxu0 %v621
        %v1901 = vpop.f32.mrf.mxu0
        %v1902 = vadd.f32 %v498, %v1901
        %v1903 = vpop.f32.mrf.mxu0
        %v1904 = vadd.f32 %v498, %v1903
        %1905 = vmatmul.bf16.gmra.mxu0 %v623
        %v1906 = vpop.f32.mrf.mxu0
        %v1907 = vadd.f32 %v498, %v1906
        %v1908 = vpop.f32.mrf.mxu0
        %v1909 = vadd.f32 %v498, %v1908
        %1910 = vmatmul.bf16.gmra.mxu0 %v625
        %v1911 = vpop.f32.mrf.mxu0
        %v1912 = vadd.f32 %v498, %v1911
        %v1913 = vpop.f32.mrf.mxu0
        %v1914 = vadd.f32 %v498, %v1913
        %1915 = vmatmul.bf16.gmra.mxu0 %v627
        %v1916 = vpop.f32.mrf.mxu0
        %v1917 = vadd.f32 %v498, %v1916
        %v1918 = vpop.f32.mrf.mxu0
        %v1919 = vadd.f32 %v498, %v1918
        %1920 = vmatmul.bf16.gmra.mxu0 %v629
        %v1921 = vpop.f32.mrf.mxu0
        %v1922 = vadd.f32 %v498, %v1921
        %v1923 = vpop.f32.mrf.mxu0
        %v1924 = vadd.f32 %v498, %v1923
        %1925 = vdwg.mxu0
        %1926 = vmatpush.bf16.msra.mxu0 %v1170
        %1927 = vmatpush.bf16.msra.mxu0 %v1162
        %1928 = vmatpush.bf16.msra.mxu0 %v1154
        %1929 = vmatpush.bf16.msra.mxu0 %v1146
        %1930 = vmatpush.bf16.msra.mxu0 %v1138
        %1931 = vmatpush.bf16.msra.mxu0 %v1130
        %1932 = vmatpush.bf16.msra.mxu0 %v1122
        %1933 = vmatpush.bf16.msra.mxu0 %v1114
        %1934 = vmatmul.bf16.gmra.mxu0 %v600
        %v1935 = vpop.f32.mrf.mxu0
        %v1936 = vadd.f32 %v1847, %v1935
        %v1937 = vpop.f32.mrf.mxu0
        %v1938 = vadd.f32 %v1849, %v1937
        %1939 = vmatmul.bf16.gmra.mxu0 %v602
        %v1940 = vpop.f32.mrf.mxu0
        %v1941 = vadd.f32 %v1852, %v1940
        %v1942 = vpop.f32.mrf.mxu0
        %v1943 = vadd.f32 %v1854, %v1942
        %1944 = vmatmul.bf16.gmra.mxu0 %v604
        %v1945 = vpop.f32.mrf.mxu0
        %v1946 = vadd.f32 %v1857, %v1945
        %v1947 = vpop.f32.mrf.mxu0
        %v1948 = vadd.f32 %v1859, %v1947
        %1949 = vmatmul.bf16.gmra.mxu0 %v606
        %v1950 = vpop.f32.mrf.mxu0
        %v1951 = vadd.f32 %v1862, %v1950
        %v1952 = vpop.f32.mrf.mxu0
        %v1953 = vadd.f32 %v1864, %v1952
        %1954 = vmatmul.bf16.gmra.mxu0 %v608
        %v1955 = vpop.f32.mrf.mxu0
        %v1956 = vadd.f32 %v1867, %v1955
        %v1957 = vpop.f32.mrf.mxu0
        %v1958 = vadd.f32 %v1869, %v1957
        %1959 = vmatmul.bf16.gmra.mxu0 %v610
        %v1960 = vpop.f32.mrf.mxu0
        %v1961 = vadd.f32 %v1872, %v1960
        %v1962 = vpop.f32.mrf.mxu0
        %v1963 = vadd.f32 %v1874, %v1962
        %1964 = vmatmul.bf16.gmra.mxu0 %v612
        %v1965 = vpop.f32.mrf.mxu0
        %v1966 = vadd.f32 %v1877, %v1965
        %v1967 = vpop.f32.mrf.mxu0
        %v1968 = vadd.f32 %v1879, %v1967
        %1969 = vmatmul.bf16.gmra.mxu0 %v614
        %v1970 = vpop.f32.mrf.mxu0
        %v1971 = vadd.f32 %v1882, %v1970
        %v1972 = vpop.f32.mrf.mxu0
        %v1973 = vadd.f32 %v1884, %v1972
        %1974 = vmatmul.bf16.gmra.mxu0 %v616
        %v1975 = vpop.f32.mrf.mxu0
        %v1976 = vadd.f32 %v1887, %v1975
        %v1977 = vpop.f32.mrf.mxu0
        %v1978 = vadd.f32 %v1889, %v1977
        %1979 = vmatmul.bf16.gmra.mxu0 %v618
        %v1980 = vpop.f32.mrf.mxu0
        %v1981 = vadd.f32 %v1892, %v1980
        %v1982 = vpop.f32.mrf.mxu0
        %v1983 = vadd.f32 %v1894, %v1982
        %1984 = vmatmul.bf16.gmra.mxu0 %v620
        %v1985 = vpop.f32.mrf.mxu0
        %v1986 = vadd.f32 %v1897, %v1985
        %v1987 = vpop.f32.mrf.mxu0
        %v1988 = vadd.f32 %v1899, %v1987
        %1989 = vmatmul.bf16.gmra.mxu0 %v622
        %v1990 = vpop.f32.mrf.mxu0
        %v1991 = vadd.f32 %v1902, %v1990
        %v1992 = vpop.f32.mrf.mxu0
        %v1993 = vadd.f32 %v1904, %v1992
        %1994 = vmatmul.bf16.gmra.mxu0 %v624
        %v1995 = vpop.f32.mrf.mxu0
        %v1996 = vadd.f32 %v1907, %v1995
        %v1997 = vpop.f32.mrf.mxu0
        %v1998 = vadd.f32 %v1909, %v1997
        %1999 = vmatmul.bf16.gmra.mxu0 %v626
        %v2000 = vpop.f32.mrf.mxu0
        %v2001 = vadd.f32 %v1912, %v2000
        %v2002 = vpop.f32.mrf.mxu0
        %v2003 = vadd.f32 %v1914, %v2002
        %2004 = vmatmul.bf16.gmra.mxu0 %v628
        %v2005 = vpop.f32.mrf.mxu0
        %v2006 = vadd.f32 %v1917, %v2005
        %v2007 = vpop.f32.mrf.mxu0
        %v2008 = vadd.f32 %v1919, %v2007
        %2009 = vmatmul.bf16.gmra.mxu0 %v630
        %v2010 = vpop.f32.mrf.mxu0
        %v2011 = vadd.f32 %v1922, %v2010
        %v2012 = vpop.f32.mrf.mxu0
        %v2013 = vadd.f32 %v1924, %v2012
        %2014 = vdwg.mxu0
        %2015 = vmatpush.bf16.msra.mxu0 %v1107
        %2016 = vmatpush.bf16.msra.mxu0 %v1099
        %2017 = vmatpush.bf16.msra.mxu0 %v1091
        %2018 = vmatpush.bf16.msra.mxu0 %v1083
        %2019 = vmatpush.bf16.msra.mxu0 %v1075
        %2020 = vmatpush.bf16.msra.mxu0 %v1067
        %2021 = vmatpush.bf16.msra.mxu0 %v1059
        %2022 = vmatpush.bf16.msra.mxu0 %v1051
        %2023 = vmatmul.bf16.gmra.mxu0 %v599
        %v2024 = vpop.f32.mrf.mxu0
        %v2025 = vadd.f32 %v499, %v2024
        %v2026 = vpop.f32.mrf.mxu0
        %v2027 = vadd.f32 %v499, %v2026
        %2028 = vmatmul.bf16.gmra.mxu0 %v601
        %v2029 = vpop.f32.mrf.mxu0
        %v2030 = vadd.f32 %v499, %v2029
        %v2031 = vpop.f32.mrf.mxu0
        %v2032 = vadd.f32 %v499, %v2031
        %2033 = vmatmul.bf16.gmra.mxu0 %v603
        %v2034 = vpop.f32.mrf.mxu0
        %v2035 = vadd.f32 %v499, %v2034
        %v2036 = vpop.f32.mrf.mxu0
        %v2037 = vadd.f32 %v499, %v2036
        %2038 = vmatmul.bf16.gmra.mxu0 %v605
        %v2039 = vpop.f32.mrf.mxu0
        %v2040 = vadd.f32 %v499, %v2039
        %v2041 = vpop.f32.mrf.mxu0
        %v2042 = vadd.f32 %v499, %v2041
        %2043 = vmatmul.bf16.gmra.mxu0 %v607
        %v2044 = vpop.f32.mrf.mxu0
        %v2045 = vadd.f32 %v499, %v2044
        %v2046 = vpop.f32.mrf.mxu0
        %v2047 = vadd.f32 %v499, %v2046
        %2048 = vmatmul.bf16.gmra.mxu0 %v609
        %v2049 = vpop.f32.mrf.mxu0
        %v2050 = vadd.f32 %v499, %v2049
        %v2051 = vpop.f32.mrf.mxu0
        %v2052 = vadd.f32 %v499, %v2051
        %2053 = vmatmul.bf16.gmra.mxu0 %v611
        %v2054 = vpop.f32.mrf.mxu0
        %v2055 = vadd.f32 %v499, %v2054
        %v2056 = vpop.f32.mrf.mxu0
        %v2057 = vadd.f32 %v499, %v2056
        %2058 = vmatmul.bf16.gmra.mxu0 %v613
        %v2059 = vpop.f32.mrf.mxu0
        %v2060 = vadd.f32 %v499, %v2059
        %v2061 = vpop.f32.mrf.mxu0
        %v2062 = vadd.f32 %v499, %v2061
        %2063 = vmatmul.bf16.gmra.mxu0 %v615
        %v2064 = vpop.f32.mrf.mxu0
        %v2065 = vadd.f32 %v499, %v2064
        %v2066 = vpop.f32.mrf.mxu0
        %v2067 = vadd.f32 %v499, %v2066
        %2068 = vmatmul.bf16.gmra.mxu0 %v617
        %v2069 = vpop.f32.mrf.mxu0
        %v2070 = vadd.f32 %v499, %v2069
        %v2071 = vpop.f32.mrf.mxu0
        %v2072 = vadd.f32 %v499, %v2071
        %2073 = vmatmul.bf16.gmra.mxu0 %v619
        %v2074 = vpop.f32.mrf.mxu0
        %v2075 = vadd.f32 %v499, %v2074
        %v2076 = vpop.f32.mrf.mxu0
        %v2077 = vadd.f32 %v499, %v2076
        %2078 = vmatmul.bf16.gmra.mxu0 %v621
        %v2079 = vpop.f32.mrf.mxu0
        %v2080 = vadd.f32 %v499, %v2079
        %v2081 = vpop.f32.mrf.mxu0
        %v2082 = vadd.f32 %v499, %v2081
        %2083 = vmatmul.bf16.gmra.mxu0 %v623
        %v2084 = vpop.f32.mrf.mxu0
        %v2085 = vadd.f32 %v499, %v2084
        %v2086 = vpop.f32.mrf.mxu0
        %v2087 = vadd.f32 %v499, %v2086
        %2088 = vmatmul.bf16.gmra.mxu0 %v625
        %v2089 = vpop.f32.mrf.mxu0
        %v2090 = vadd.f32 %v499, %v2089
        %v2091 = vpop.f32.mrf.mxu0
        %v2092 = vadd.f32 %v499, %v2091
        %2093 = vmatmul.bf16.gmra.mxu0 %v627
        %v2094 = vpop.f32.mrf.mxu0
        %v2095 = vadd.f32 %v499, %v2094
        %v2096 = vpop.f32.mrf.mxu0
        %v2097 = vadd.f32 %v499, %v2096
        %2098 = vmatmul.bf16.gmra.mxu0 %v629
        %v2099 = vpop.f32.mrf.mxu0
        %v2100 = vadd.f32 %v499, %v2099
        %v2101 = vpop.f32.mrf.mxu0
        %v2102 = vadd.f32 %v499, %v2101
        %2103 = vdwg.mxu0
        %2104 = vmatpush.bf16.msra.mxu0 %v1171
        %2105 = vmatpush.bf16.msra.mxu0 %v1163
        %2106 = vmatpush.bf16.msra.mxu0 %v1155
        %2107 = vmatpush.bf16.msra.mxu0 %v1147
        %2108 = vmatpush.bf16.msra.mxu0 %v1139
        %2109 = vmatpush.bf16.msra.mxu0 %v1131
        %2110 = vmatpush.bf16.msra.mxu0 %v1123
        %2111 = vmatpush.bf16.msra.mxu0 %v1115
        %2112 = vmatmul.bf16.gmra.mxu0 %v600
        %v2113 = vpop.f32.mrf.mxu0
        %v2114 = vadd.f32 %v2025, %v2113
        %v2115 = vpop.f32.mrf.mxu0
        %v2116 = vadd.f32 %v2027, %v2115
        %2117 = vmatmul.bf16.gmra.mxu0 %v602
        %v2118 = vpop.f32.mrf.mxu0
        %v2119 = vadd.f32 %v2030, %v2118
        %v2120 = vpop.f32.mrf.mxu0
        %v2121 = vadd.f32 %v2032, %v2120
        %2122 = vmatmul.bf16.gmra.mxu0 %v604
        %v2123 = vpop.f32.mrf.mxu0
        %v2124 = vadd.f32 %v2035, %v2123
        %v2125 = vpop.f32.mrf.mxu0
        %v2126 = vadd.f32 %v2037, %v2125
        %2127 = vmatmul.bf16.gmra.mxu0 %v606
        %v2128 = vpop.f32.mrf.mxu0
        %v2129 = vadd.f32 %v2040, %v2128
        %v2130 = vpop.f32.mrf.mxu0
        %v2131 = vadd.f32 %v2042, %v2130
        %2132 = vmatmul.bf16.gmra.mxu0 %v608
        %v2133 = vpop.f32.mrf.mxu0
        %v2134 = vadd.f32 %v2045, %v2133
        %v2135 = vpop.f32.mrf.mxu0
        %v2136 = vadd.f32 %v2047, %v2135
        %2137 = vmatmul.bf16.gmra.mxu0 %v610
        %v2138 = vpop.f32.mrf.mxu0
        %v2139 = vadd.f32 %v2050, %v2138
        %v2140 = vpop.f32.mrf.mxu0
        %v2141 = vadd.f32 %v2052, %v2140
        %2142 = vmatmul.bf16.gmra.mxu0 %v612
        %v2143 = vpop.f32.mrf.mxu0
        %v2144 = vadd.f32 %v2055, %v2143
        %v2145 = vpop.f32.mrf.mxu0
        %v2146 = vadd.f32 %v2057, %v2145
        %2147 = vmatmul.bf16.gmra.mxu0 %v614
        %v2148 = vpop.f32.mrf.mxu0
        %v2149 = vadd.f32 %v2060, %v2148
        %v2150 = vpop.f32.mrf.mxu0
        %v2151 = vadd.f32 %v2062, %v2150
        %2152 = vmatmul.bf16.gmra.mxu0 %v616
        %v2153 = vpop.f32.mrf.mxu0
        %v2154 = vadd.f32 %v2065, %v2153
        %v2155 = vpop.f32.mrf.mxu0
        %v2156 = vadd.f32 %v2067, %v2155
        %2157 = vmatmul.bf16.gmra.mxu0 %v618
        %v2158 = vpop.f32.mrf.mxu0
        %v2159 = vadd.f32 %v2070, %v2158
        %v2160 = vpop.f32.mrf.mxu0
        %v2161 = vadd.f32 %v2072, %v2160
        %2162 = vmatmul.bf16.gmra.mxu0 %v620
        %v2163 = vpop.f32.mrf.mxu0
        %v2164 = vadd.f32 %v2075, %v2163
        %v2165 = vpop.f32.mrf.mxu0
        %v2166 = vadd.f32 %v2077, %v2165
        %2167 = vmatmul.bf16.gmra.mxu0 %v622
        %v2168 = vpop.f32.mrf.mxu0
        %v2169 = vadd.f32 %v2080, %v2168
        %v2170 = vpop.f32.mrf.mxu0
        %v2171 = vadd.f32 %v2082, %v2170
        %2172 = vmatmul.bf16.gmra.mxu0 %v624
        %v2173 = vpop.f32.mrf.mxu0
        %v2174 = vadd.f32 %v2085, %v2173
        %v2175 = vpop.f32.mrf.mxu0
        %v2176 = vadd.f32 %v2087, %v2175
        %2177 = vmatmul.bf16.gmra.mxu0 %v626
        %v2178 = vpop.f32.mrf.mxu0
        %v2179 = vadd.f32 %v2090, %v2178
        %v2180 = vpop.f32.mrf.mxu0
        %v2181 = vadd.f32 %v2092, %v2180
        %2182 = vmatmul.bf16.gmra.mxu0 %v628
        %v2183 = vpop.f32.mrf.mxu0
        %v2184 = vadd.f32 %v2095, %v2183
        %v2185 = vpop.f32.mrf.mxu0
        %v2186 = vadd.f32 %v2097, %v2185
        %2187 = vmatmul.bf16.gmra.mxu0 %v630
        %v2188 = vpop.f32.mrf.mxu0
        %v2189 = vadd.f32 %v2100, %v2188
        %v2190 = vpop.f32.mrf.mxu0
        %v2191 = vadd.f32 %v2102, %v2190
        %2192 = vdwg.mxu0
        %2193 = vmatpush.bf16.msra.mxu0 %v1108
        %2194 = vmatpush.bf16.msra.mxu0 %v1100
        %2195 = vmatpush.bf16.msra.mxu0 %v1092
        %2196 = vmatpush.bf16.msra.mxu0 %v1084
        %2197 = vmatpush.bf16.msra.mxu0 %v1076
        %2198 = vmatpush.bf16.msra.mxu0 %v1068
        %2199 = vmatpush.bf16.msra.mxu0 %v1060
        %2200 = vmatpush.bf16.msra.mxu0 %v1052
        %2201 = vmatmul.bf16.gmra.mxu0 %v599
        %v2202 = vpop.f32.mrf.mxu0
        %v2203 = vadd.f32 %v500, %v2202
        %v2204 = vpop.f32.mrf.mxu0
        %v2205 = vadd.f32 %v500, %v2204
        %2206 = vmatmul.bf16.gmra.mxu0 %v601
        %v2207 = vpop.f32.mrf.mxu0
        %v2208 = vadd.f32 %v500, %v2207
        %v2209 = vpop.f32.mrf.mxu0
        %v2210 = vadd.f32 %v500, %v2209
        %2211 = vmatmul.bf16.gmra.mxu0 %v603
        %v2212 = vpop.f32.mrf.mxu0
        %v2213 = vadd.f32 %v500, %v2212
        %v2214 = vpop.f32.mrf.mxu0
        %v2215 = vadd.f32 %v500, %v2214
        %2216 = vmatmul.bf16.gmra.mxu0 %v605
        %v2217 = vpop.f32.mrf.mxu0
        %v2218 = vadd.f32 %v500, %v2217
        %v2219 = vpop.f32.mrf.mxu0
        %v2220 = vadd.f32 %v500, %v2219
        %2221 = vmatmul.bf16.gmra.mxu0 %v607
        %v2222 = vpop.f32.mrf.mxu0
        %v2223 = vadd.f32 %v500, %v2222
        %v2224 = vpop.f32.mrf.mxu0
        %v2225 = vadd.f32 %v500, %v2224
        %2226 = vmatmul.bf16.gmra.mxu0 %v609
        %v2227 = vpop.f32.mrf.mxu0
        %v2228 = vadd.f32 %v500, %v2227
        %v2229 = vpop.f32.mrf.mxu0
        %v2230 = vadd.f32 %v500, %v2229
        %2231 = vmatmul.bf16.gmra.mxu0 %v611
        %v2232 = vpop.f32.mrf.mxu0
        %v2233 = vadd.f32 %v500, %v2232
        %v2234 = vpop.f32.mrf.mxu0
        %v2235 = vadd.f32 %v500, %v2234
        %2236 = vmatmul.bf16.gmra.mxu0 %v613
        %v2237 = vpop.f32.mrf.mxu0
        %v2238 = vadd.f32 %v500, %v2237
        %v2239 = vpop.f32.mrf.mxu0
        %v2240 = vadd.f32 %v500, %v2239
        %2241 = vmatmul.bf16.gmra.mxu0 %v615
        %v2242 = vpop.f32.mrf.mxu0
        %v2243 = vadd.f32 %v500, %v2242
        %v2244 = vpop.f32.mrf.mxu0
        %v2245 = vadd.f32 %v500, %v2244
        %2246 = vmatmul.bf16.gmra.mxu0 %v617
        %v2247 = vpop.f32.mrf.mxu0
        %v2248 = vadd.f32 %v500, %v2247
        %v2249 = vpop.f32.mrf.mxu0
        %v2250 = vadd.f32 %v500, %v2249
        %2251 = vmatmul.bf16.gmra.mxu0 %v619
        %v2252 = vpop.f32.mrf.mxu0
        %v2253 = vadd.f32 %v500, %v2252
        %v2254 = vpop.f32.mrf.mxu0
        %v2255 = vadd.f32 %v500, %v2254
        %2256 = vmatmul.bf16.gmra.mxu0 %v621
        %v2257 = vpop.f32.mrf.mxu0
        %v2258 = vadd.f32 %v500, %v2257
        %v2259 = vpop.f32.mrf.mxu0
        %v2260 = vadd.f32 %v500, %v2259
        %2261 = vmatmul.bf16.gmra.mxu0 %v623
        %v2262 = vpop.f32.mrf.mxu0
        %v2263 = vadd.f32 %v500, %v2262
        %v2264 = vpop.f32.mrf.mxu0
        %v2265 = vadd.f32 %v500, %v2264
        %2266 = vmatmul.bf16.gmra.mxu0 %v625
        %v2267 = vpop.f32.mrf.mxu0
        %v2268 = vadd.f32 %v500, %v2267
        %v2269 = vpop.f32.mrf.mxu0
        %v2270 = vadd.f32 %v500, %v2269
        %2271 = vmatmul.bf16.gmra.mxu0 %v627
        %v2272 = vpop.f32.mrf.mxu0
        %v2273 = vadd.f32 %v500, %v2272
        %v2274 = vpop.f32.mrf.mxu0
        %v2275 = vadd.f32 %v500, %v2274
        %2276 = vmatmul.bf16.gmra.mxu0 %v629
        %v2277 = vpop.f32.mrf.mxu0
        %v2278 = vadd.f32 %v500, %v2277
        %v2279 = vpop.f32.mrf.mxu0
        %v2280 = vadd.f32 %v500, %v2279
        %2281 = vdwg.mxu0
        %2282 = vmatpush.bf16.msra.mxu0 %v1172
        %2283 = vmatpush.bf16.msra.mxu0 %v1164
        %2284 = vmatpush.bf16.msra.mxu0 %v1156
        %2285 = vmatpush.bf16.msra.mxu0 %v1148
        %2286 = vmatpush.bf16.msra.mxu0 %v1140
        %2287 = vmatpush.bf16.msra.mxu0 %v1132
        %2288 = vmatpush.bf16.msra.mxu0 %v1124
        %2289 = vmatpush.bf16.msra.mxu0 %v1116
        %2290 = vmatmul.bf16.gmra.mxu0 %v600
        %v2291 = vpop.f32.mrf.mxu0
        %v2292 = vadd.f32 %v2203, %v2291
        %v2293 = vpop.f32.mrf.mxu0
        %v2294 = vadd.f32 %v2205, %v2293
        %2295 = vmatmul.bf16.gmra.mxu0 %v602
        %v2296 = vpop.f32.mrf.mxu0
        %v2297 = vadd.f32 %v2208, %v2296
        %v2298 = vpop.f32.mrf.mxu0
        %v2299 = vadd.f32 %v2210, %v2298
        %2300 = vmatmul.bf16.gmra.mxu0 %v604
        %v2301 = vpop.f32.mrf.mxu0
        %v2302 = vadd.f32 %v2213, %v2301
        %v2303 = vpop.f32.mrf.mxu0
        %v2304 = vadd.f32 %v2215, %v2303
        %2305 = vmatmul.bf16.gmra.mxu0 %v606
        %v2306 = vpop.f32.mrf.mxu0
        %v2307 = vadd.f32 %v2218, %v2306
        %v2308 = vpop.f32.mrf.mxu0
        %v2309 = vadd.f32 %v2220, %v2308
        %2310 = vmatmul.bf16.gmra.mxu0 %v608
        %v2311 = vpop.f32.mrf.mxu0
        %v2312 = vadd.f32 %v2223, %v2311
        %v2313 = vpop.f32.mrf.mxu0
        %v2314 = vadd.f32 %v2225, %v2313
        %2315 = vmatmul.bf16.gmra.mxu0 %v610
        %v2316 = vpop.f32.mrf.mxu0
        %v2317 = vadd.f32 %v2228, %v2316
        %v2318 = vpop.f32.mrf.mxu0
        %v2319 = vadd.f32 %v2230, %v2318
        %2320 = vmatmul.bf16.gmra.mxu0 %v612
        %v2321 = vpop.f32.mrf.mxu0
        %v2322 = vadd.f32 %v2233, %v2321
        %v2323 = vpop.f32.mrf.mxu0
        %v2324 = vadd.f32 %v2235, %v2323
        %2325 = vmatmul.bf16.gmra.mxu0 %v614
        %v2326 = vpop.f32.mrf.mxu0
        %v2327 = vadd.f32 %v2238, %v2326
        %v2328 = vpop.f32.mrf.mxu0
        %v2329 = vadd.f32 %v2240, %v2328
        %2330 = vmatmul.bf16.gmra.mxu0 %v616
        %v2331 = vpop.f32.mrf.mxu0
        %v2332 = vadd.f32 %v2243, %v2331
        %v2333 = vpop.f32.mrf.mxu0
        %v2334 = vadd.f32 %v2245, %v2333
        %2335 = vmatmul.bf16.gmra.mxu0 %v618
        %v2336 = vpop.f32.mrf.mxu0
        %v2337 = vadd.f32 %v2248, %v2336
        %v2338 = vpop.f32.mrf.mxu0
        %v2339 = vadd.f32 %v2250, %v2338
        %2340 = vmatmul.bf16.gmra.mxu0 %v620
        %v2341 = vpop.f32.mrf.mxu0
        %v2342 = vadd.f32 %v2253, %v2341
        %v2343 = vpop.f32.mrf.mxu0
        %v2344 = vadd.f32 %v2255, %v2343
        %2345 = vmatmul.bf16.gmra.mxu0 %v622
        %v2346 = vpop.f32.mrf.mxu0
        %v2347 = vadd.f32 %v2258, %v2346
        %v2348 = vpop.f32.mrf.mxu0
        %v2349 = vadd.f32 %v2260, %v2348
        %2350 = vmatmul.bf16.gmra.mxu0 %v624
        %v2351 = vpop.f32.mrf.mxu0
        %v2352 = vadd.f32 %v2263, %v2351
        %v2353 = vpop.f32.mrf.mxu0
        %v2354 = vadd.f32 %v2265, %v2353
        %2355 = vmatmul.bf16.gmra.mxu0 %v626
        %v2356 = vpop.f32.mrf.mxu0
        %v2357 = vadd.f32 %v2268, %v2356
        %v2358 = vpop.f32.mrf.mxu0
        %v2359 = vadd.f32 %v2270, %v2358
        %2360 = vmatmul.bf16.gmra.mxu0 %v628
        %v2361 = vpop.f32.mrf.mxu0
        %v2362 = vadd.f32 %v2273, %v2361
        %v2363 = vpop.f32.mrf.mxu0
        %v2364 = vadd.f32 %v2275, %v2363
        %2365 = vmatmul.bf16.gmra.mxu0 %v630
        %v2366 = vpop.f32.mrf.mxu0
        %v2367 = vadd.f32 %v2278, %v2366
        %v2368 = vpop.f32.mrf.mxu0
        %v2369 = vadd.f32 %v2280, %v2368
        %2370 = vdwg.mxu0
        %2371 = vmatpush.bf16.msra.mxu0 %v1109
        %2372 = vmatpush.bf16.msra.mxu0 %v1101
        %2373 = vmatpush.bf16.msra.mxu0 %v1093
        %2374 = vmatpush.bf16.msra.mxu0 %v1085
        %2375 = vmatpush.bf16.msra.mxu0 %v1077
        %2376 = vmatpush.bf16.msra.mxu0 %v1069
        %2377 = vmatpush.bf16.msra.mxu0 %v1061
        %2378 = vmatpush.bf16.msra.mxu0 %v1053
        %2379 = vmatmul.bf16.gmra.mxu0 %v599
        %v2380 = vpop.f32.mrf.mxu0
        %v2381 = vadd.f32 %v501, %v2380
        %v2382 = vpop.f32.mrf.mxu0
        %v2383 = vadd.f32 %v501, %v2382
        %2384 = vmatmul.bf16.gmra.mxu0 %v601
        %v2385 = vpop.f32.mrf.mxu0
        %v2386 = vadd.f32 %v501, %v2385
        %v2387 = vpop.f32.mrf.mxu0
        %v2388 = vadd.f32 %v501, %v2387
        %2389 = vmatmul.bf16.gmra.mxu0 %v603
        %v2390 = vpop.f32.mrf.mxu0
        %v2391 = vadd.f32 %v501, %v2390
        %v2392 = vpop.f32.mrf.mxu0
        %v2393 = vadd.f32 %v501, %v2392
        %2394 = vmatmul.bf16.gmra.mxu0 %v605
        %v2395 = vpop.f32.mrf.mxu0
        %v2396 = vadd.f32 %v501, %v2395
        %v2397 = vpop.f32.mrf.mxu0
        %v2398 = vadd.f32 %v501, %v2397
        %2399 = vmatmul.bf16.gmra.mxu0 %v607
        %v2400 = vpop.f32.mrf.mxu0
        %v2401 = vadd.f32 %v501, %v2400
        %v2402 = vpop.f32.mrf.mxu0
        %v2403 = vadd.f32 %v501, %v2402
        %2404 = vmatmul.bf16.gmra.mxu0 %v609
        %v2405 = vpop.f32.mrf.mxu0
        %v2406 = vadd.f32 %v501, %v2405
        %v2407 = vpop.f32.mrf.mxu0
        %v2408 = vadd.f32 %v501, %v2407
        %2409 = vmatmul.bf16.gmra.mxu0 %v611
        %v2410 = vpop.f32.mrf.mxu0
        %v2411 = vadd.f32 %v501, %v2410
        %v2412 = vpop.f32.mrf.mxu0
        %v2413 = vadd.f32 %v501, %v2412
        %2414 = vmatmul.bf16.gmra.mxu0 %v613
        %v2415 = vpop.f32.mrf.mxu0
        %v2416 = vadd.f32 %v501, %v2415
        %v2417 = vpop.f32.mrf.mxu0
        %v2418 = vadd.f32 %v501, %v2417
        %2419 = vmatmul.bf16.gmra.mxu0 %v615
        %v2420 = vpop.f32.mrf.mxu0
        %v2421 = vadd.f32 %v501, %v2420
        %v2422 = vpop.f32.mrf.mxu0
        %v2423 = vadd.f32 %v501, %v2422
        %2424 = vmatmul.bf16.gmra.mxu0 %v617
        %v2425 = vpop.f32.mrf.mxu0
        %v2426 = vadd.f32 %v501, %v2425
        %v2427 = vpop.f32.mrf.mxu0
        %v2428 = vadd.f32 %v501, %v2427
        %2429 = vmatmul.bf16.gmra.mxu0 %v619
        %v2430 = vpop.f32.mrf.mxu0
        %v2431 = vadd.f32 %v501, %v2430
        %v2432 = vpop.f32.mrf.mxu0
        %v2433 = vadd.f32 %v501, %v2432
        %2434 = vmatmul.bf16.gmra.mxu0 %v621
        %v2435 = vpop.f32.mrf.mxu0
        %v2436 = vadd.f32 %v501, %v2435
        %v2437 = vpop.f32.mrf.mxu0
        %v2438 = vadd.f32 %v501, %v2437
        %2439 = vmatmul.bf16.gmra.mxu0 %v623
        %v2440 = vpop.f32.mrf.mxu0
        %v2441 = vadd.f32 %v501, %v2440
        %v2442 = vpop.f32.mrf.mxu0
        %v2443 = vadd.f32 %v501, %v2442
        %2444 = vmatmul.bf16.gmra.mxu0 %v625
        %v2445 = vpop.f32.mrf.mxu0
        %v2446 = vadd.f32 %v501, %v2445
        %v2447 = vpop.f32.mrf.mxu0
        %v2448 = vadd.f32 %v501, %v2447
        %2449 = vmatmul.bf16.gmra.mxu0 %v627
        %v2450 = vpop.f32.mrf.mxu0
        %v2451 = vadd.f32 %v501, %v2450
        %v2452 = vpop.f32.mrf.mxu0
        %v2453 = vadd.f32 %v501, %v2452
        %2454 = vmatmul.bf16.gmra.mxu0 %v629
        %v2455 = vpop.f32.mrf.mxu0
        %v2456 = vadd.f32 %v501, %v2455
        %v2457 = vpop.f32.mrf.mxu0
        %v2458 = vadd.f32 %v501, %v2457
        %2459 = vdwg.mxu0
        %2460 = vmatpush.bf16.msra.mxu0 %v1173
        %2461 = vmatpush.bf16.msra.mxu0 %v1165
        %2462 = vmatpush.bf16.msra.mxu0 %v1157
        %2463 = vmatpush.bf16.msra.mxu0 %v1149
        %2464 = vmatpush.bf16.msra.mxu0 %v1141
        %2465 = vmatpush.bf16.msra.mxu0 %v1133
        %2466 = vmatpush.bf16.msra.mxu0 %v1125
        %2467 = vmatpush.bf16.msra.mxu0 %v1117
        %2468 = vmatmul.bf16.gmra.mxu0 %v600
        %v2469 = vpop.f32.mrf.mxu0
        %v2470 = vadd.f32 %v2381, %v2469
        %v2471 = vpop.f32.mrf.mxu0
        %v2472 = vadd.f32 %v2383, %v2471
        %2473 = vmatmul.bf16.gmra.mxu0 %v602
        %v2474 = vpop.f32.mrf.mxu0
        %v2475 = vadd.f32 %v2386, %v2474
        %v2476 = vpop.f32.mrf.mxu0
        %v2477 = vadd.f32 %v2388, %v2476
        %2478 = vmatmul.bf16.gmra.mxu0 %v604
        %v2479 = vpop.f32.mrf.mxu0
        %v2480 = vadd.f32 %v2391, %v2479
        %v2481 = vpop.f32.mrf.mxu0
        %v2482 = vadd.f32 %v2393, %v2481
        %2483 = vmatmul.bf16.gmra.mxu0 %v606
        %v2484 = vpop.f32.mrf.mxu0
        %v2485 = vadd.f32 %v2396, %v2484
        %v2486 = vpop.f32.mrf.mxu0
        %v2487 = vadd.f32 %v2398, %v2486
        %2488 = vmatmul.bf16.gmra.mxu0 %v608
        %v2489 = vpop.f32.mrf.mxu0
        %v2490 = vadd.f32 %v2401, %v2489
        %v2491 = vpop.f32.mrf.mxu0
        %v2492 = vadd.f32 %v2403, %v2491
        %2493 = vmatmul.bf16.gmra.mxu0 %v610
        %v2494 = vpop.f32.mrf.mxu0
        %v2495 = vadd.f32 %v2406, %v2494
        %v2496 = vpop.f32.mrf.mxu0
        %v2497 = vadd.f32 %v2408, %v2496
        %2498 = vmatmul.bf16.gmra.mxu0 %v612
        %v2499 = vpop.f32.mrf.mxu0
        %v2500 = vadd.f32 %v2411, %v2499
        %v2501 = vpop.f32.mrf.mxu0
        %v2502 = vadd.f32 %v2413, %v2501
        %2503 = vmatmul.bf16.gmra.mxu0 %v614
        %v2504 = vpop.f32.mrf.mxu0
        %v2505 = vadd.f32 %v2416, %v2504
        %v2506 = vpop.f32.mrf.mxu0
        %v2507 = vadd.f32 %v2418, %v2506
        %2508 = vmatmul.bf16.gmra.mxu0 %v616
        %v2509 = vpop.f32.mrf.mxu0
        %v2510 = vadd.f32 %v2421, %v2509
        %v2511 = vpop.f32.mrf.mxu0
        %v2512 = vadd.f32 %v2423, %v2511
        %2513 = vmatmul.bf16.gmra.mxu0 %v618
        %v2514 = vpop.f32.mrf.mxu0
        %v2515 = vadd.f32 %v2426, %v2514
        %v2516 = vpop.f32.mrf.mxu0
        %v2517 = vadd.f32 %v2428, %v2516
        %2518 = vmatmul.bf16.gmra.mxu0 %v620
        %v2519 = vpop.f32.mrf.mxu0
        %v2520 = vadd.f32 %v2431, %v2519
        %v2521 = vpop.f32.mrf.mxu0
        %v2522 = vadd.f32 %v2433, %v2521
        %2523 = vmatmul.bf16.gmra.mxu0 %v622
        %v2524 = vpop.f32.mrf.mxu0
        %v2525 = vadd.f32 %v2436, %v2524
        %v2526 = vpop.f32.mrf.mxu0
        %v2527 = vadd.f32 %v2438, %v2526
        %2528 = vmatmul.bf16.gmra.mxu0 %v624
        %v2529 = vpop.f32.mrf.mxu0
        %v2530 = vadd.f32 %v2441, %v2529
        %v2531 = vpop.f32.mrf.mxu0
        %v2532 = vadd.f32 %v2443, %v2531
        %2533 = vmatmul.bf16.gmra.mxu0 %v626
        %v2534 = vpop.f32.mrf.mxu0
        %v2535 = vadd.f32 %v2446, %v2534
        %v2536 = vpop.f32.mrf.mxu0
        %v2537 = vadd.f32 %v2448, %v2536
        %2538 = vmatmul.bf16.gmra.mxu0 %v628
        %v2539 = vpop.f32.mrf.mxu0
        %v2540 = vadd.f32 %v2451, %v2539
        %v2541 = vpop.f32.mrf.mxu0
        %v2542 = vadd.f32 %v2453, %v2541
        %2543 = vmatmul.bf16.gmra.mxu0 %v630
        %v2544 = vpop.f32.mrf.mxu0
        %v2545 = vadd.f32 %v2456, %v2544
        %v2546 = vpop.f32.mrf.mxu0
        %v2547 = vadd.f32 %v2458, %v2546
        %2548 = vdwg.mxu0
        %2549 = vmatpush.bf16.msra.mxu0 %v1110
        %2550 = vmatpush.bf16.msra.mxu0 %v1102
        %2551 = vmatpush.bf16.msra.mxu0 %v1094
        %2552 = vmatpush.bf16.msra.mxu0 %v1086
        %2553 = vmatpush.bf16.msra.mxu0 %v1078
        %2554 = vmatpush.bf16.msra.mxu0 %v1070
        %2555 = vmatpush.bf16.msra.mxu0 %v1062
        %2556 = vmatpush.bf16.msra.mxu0 %v1054
        %2557 = vmatmul.bf16.gmra.mxu0 %v599
        %v2558 = vpop.f32.mrf.mxu0
        %v2559 = vadd.f32 %v502, %v2558
        %v2560 = vpop.f32.mrf.mxu0
        %v2561 = vadd.f32 %v502, %v2560
        %2562 = vmatmul.bf16.gmra.mxu0 %v601
        %v2563 = vpop.f32.mrf.mxu0
        %v2564 = vadd.f32 %v502, %v2563
        %v2565 = vpop.f32.mrf.mxu0
        %v2566 = vadd.f32 %v502, %v2565
        %2567 = vmatmul.bf16.gmra.mxu0 %v603
        %v2568 = vpop.f32.mrf.mxu0
        %v2569 = vadd.f32 %v502, %v2568
        %v2570 = vpop.f32.mrf.mxu0
        %v2571 = vadd.f32 %v502, %v2570
        %2572 = vmatmul.bf16.gmra.mxu0 %v605
        %v2573 = vpop.f32.mrf.mxu0
        %v2574 = vadd.f32 %v502, %v2573
        %v2575 = vpop.f32.mrf.mxu0
        %v2576 = vadd.f32 %v502, %v2575
        %2577 = vmatmul.bf16.gmra.mxu0 %v607
        %v2578 = vpop.f32.mrf.mxu0
        %v2579 = vadd.f32 %v502, %v2578
        %v2580 = vpop.f32.mrf.mxu0
        %v2581 = vadd.f32 %v502, %v2580
        %2582 = vmatmul.bf16.gmra.mxu0 %v609
        %v2583 = vpop.f32.mrf.mxu0
        %v2584 = vadd.f32 %v502, %v2583
        %v2585 = vpop.f32.mrf.mxu0
        %v2586 = vadd.f32 %v502, %v2585
        %2587 = vmatmul.bf16.gmra.mxu0 %v611
        %v2588 = vpop.f32.mrf.mxu0
        %v2589 = vadd.f32 %v502, %v2588
        %v2590 = vpop.f32.mrf.mxu0
        %v2591 = vadd.f32 %v502, %v2590
        %2592 = vmatmul.bf16.gmra.mxu0 %v613
        %v2593 = vpop.f32.mrf.mxu0
        %v2594 = vadd.f32 %v502, %v2593
        %v2595 = vpop.f32.mrf.mxu0
        %v2596 = vadd.f32 %v502, %v2595
        %2597 = vmatmul.bf16.gmra.mxu0 %v615
        %v2598 = vpop.f32.mrf.mxu0
        %v2599 = vadd.f32 %v502, %v2598
        %v2600 = vpop.f32.mrf.mxu0
        %v2601 = vadd.f32 %v502, %v2600
        %2602 = vmatmul.bf16.gmra.mxu0 %v617
        %v2603 = vpop.f32.mrf.mxu0
        %v2604 = vadd.f32 %v502, %v2603
        %v2605 = vpop.f32.mrf.mxu0
        %v2606 = vadd.f32 %v502, %v2605
        %2607 = vmatmul.bf16.gmra.mxu0 %v619
        %v2608 = vpop.f32.mrf.mxu0
        %v2609 = vadd.f32 %v502, %v2608
        %v2610 = vpop.f32.mrf.mxu0
        %v2611 = vadd.f32 %v502, %v2610
        %2612 = vmatmul.bf16.gmra.mxu0 %v621
        %v2613 = vpop.f32.mrf.mxu0
        %v2614 = vadd.f32 %v502, %v2613
        %v2615 = vpop.f32.mrf.mxu0
        %v2616 = vadd.f32 %v502, %v2615
        %2617 = vmatmul.bf16.gmra.mxu0 %v623
        %v2618 = vpop.f32.mrf.mxu0
        %v2619 = vadd.f32 %v502, %v2618
        %v2620 = vpop.f32.mrf.mxu0
        %v2621 = vadd.f32 %v502, %v2620
        %2622 = vmatmul.bf16.gmra.mxu0 %v625
        %v2623 = vpop.f32.mrf.mxu0
        %v2624 = vadd.f32 %v502, %v2623
        %v2625 = vpop.f32.mrf.mxu0
        %v2626 = vadd.f32 %v502, %v2625
        %2627 = vmatmul.bf16.gmra.mxu0 %v627
        %v2628 = vpop.f32.mrf.mxu0
        %v2629 = vadd.f32 %v502, %v2628
        %v2630 = vpop.f32.mrf.mxu0
        %v2631 = vadd.f32 %v502, %v2630
        %2632 = vmatmul.bf16.gmra.mxu0 %v629
        %v2633 = vpop.f32.mrf.mxu0
        %v2634 = vadd.f32 %v502, %v2633
        %v2635 = vpop.f32.mrf.mxu0
        %v2636 = vadd.f32 %v502, %v2635
        %2637 = vdwg.mxu0
        %2638 = vmatpush.bf16.msra.mxu0 %v1174
        %2639 = vmatpush.bf16.msra.mxu0 %v1166
        %2640 = vmatpush.bf16.msra.mxu0 %v1158
        %2641 = vmatpush.bf16.msra.mxu0 %v1150
        %2642 = vmatpush.bf16.msra.mxu0 %v1142
        %2643 = vmatpush.bf16.msra.mxu0 %v1134
        %2644 = vmatpush.bf16.msra.mxu0 %v1126
        %2645 = vmatpush.bf16.msra.mxu0 %v1118
        %2646 = vmatmul.bf16.gmra.mxu0 %v600
        %v2647 = vpop.f32.mrf.mxu0
        %v2648 = vadd.f32 %v2559, %v2647
        %v2649 = vpop.f32.mrf.mxu0
        %v2650 = vadd.f32 %v2561, %v2649
        %2651 = vmatmul.bf16.gmra.mxu0 %v602
        %v2652 = vpop.f32.mrf.mxu0
        %v2653 = vadd.f32 %v2564, %v2652
        %v2654 = vpop.f32.mrf.mxu0
        %v2655 = vadd.f32 %v2566, %v2654
        %2656 = vmatmul.bf16.gmra.mxu0 %v604
        %v2657 = vpop.f32.mrf.mxu0
        %v2658 = vadd.f32 %v2569, %v2657
        %v2659 = vpop.f32.mrf.mxu0
        %v2660 = vadd.f32 %v2571, %v2659
        %2661 = vmatmul.bf16.gmra.mxu0 %v606
        %v2662 = vpop.f32.mrf.mxu0
        %v2663 = vadd.f32 %v2574, %v2662
        %v2664 = vpop.f32.mrf.mxu0
        %v2665 = vadd.f32 %v2576, %v2664
        %2666 = vmatmul.bf16.gmra.mxu0 %v608
        %v2667 = vpop.f32.mrf.mxu0
        %v2668 = vadd.f32 %v2579, %v2667
        %v2669 = vpop.f32.mrf.mxu0
        %v2670 = vadd.f32 %v2581, %v2669
        %2671 = vmatmul.bf16.gmra.mxu0 %v610
        %v2672 = vpop.f32.mrf.mxu0
        %v2673 = vadd.f32 %v2584, %v2672
        %v2674 = vpop.f32.mrf.mxu0
        %v2675 = vadd.f32 %v2586, %v2674
        %2676 = vmatmul.bf16.gmra.mxu0 %v612
        %v2677 = vpop.f32.mrf.mxu0
        %v2678 = vadd.f32 %v2589, %v2677
        %v2679 = vpop.f32.mrf.mxu0
        %v2680 = vadd.f32 %v2591, %v2679
        %2681 = vmatmul.bf16.gmra.mxu0 %v614
        %v2682 = vpop.f32.mrf.mxu0
        %v2683 = vadd.f32 %v2594, %v2682
        %v2684 = vpop.f32.mrf.mxu0
        %v2685 = vadd.f32 %v2596, %v2684
        %2686 = vmatmul.bf16.gmra.mxu0 %v616
        %v2687 = vpop.f32.mrf.mxu0
        %v2688 = vadd.f32 %v2599, %v2687
        %v2689 = vpop.f32.mrf.mxu0
        %v2690 = vadd.f32 %v2601, %v2689
        %2691 = vmatmul.bf16.gmra.mxu0 %v618
        %v2692 = vpop.f32.mrf.mxu0
        %v2693 = vadd.f32 %v2604, %v2692
        %v2694 = vpop.f32.mrf.mxu0
        %v2695 = vadd.f32 %v2606, %v2694
        %2696 = vmatmul.bf16.gmra.mxu0 %v620
        %v2697 = vpop.f32.mrf.mxu0
        %v2698 = vadd.f32 %v2609, %v2697
        %v2699 = vpop.f32.mrf.mxu0
        %v2700 = vadd.f32 %v2611, %v2699
        %2701 = vmatmul.bf16.gmra.mxu0 %v622
        %v2702 = vpop.f32.mrf.mxu0
        %v2703 = vadd.f32 %v2614, %v2702
        %v2704 = vpop.f32.mrf.mxu0
        %v2705 = vadd.f32 %v2616, %v2704
        %2706 = vmatmul.bf16.gmra.mxu0 %v624
        %v2707 = vpop.f32.mrf.mxu0
        %v2708 = vadd.f32 %v2619, %v2707
        %v2709 = vpop.f32.mrf.mxu0
        %v2710 = vadd.f32 %v2621, %v2709
        %2711 = vmatmul.bf16.gmra.mxu0 %v626
        %v2712 = vpop.f32.mrf.mxu0
        %v2713 = vadd.f32 %v2624, %v2712
        %v2714 = vpop.f32.mrf.mxu0
        %v2715 = vadd.f32 %v2626, %v2714
        %2716 = vmatmul.bf16.gmra.mxu0 %v628
        %v2717 = vpop.f32.mrf.mxu0
        %v2718 = vadd.f32 %v2629, %v2717
        %v2719 = vpop.f32.mrf.mxu0
        %v2720 = vadd.f32 %v2631, %v2719
        %2721 = vmatmul.bf16.gmra.mxu0 %v630
        %v2722 = vpop.f32.mrf.mxu0
        %v2723 = vadd.f32 %v2634, %v2722
        %v2724 = vpop.f32.mrf.mxu0
        %v2725 = vadd.f32 %v2636, %v2724
        %2726 = vdwg.mxu0
        %v2727 = vmax.f32 %v1402, 0.0
        %v2728 = vmax.f32 %v1580, 0.0
        %v2729 = vmax.f32 %v1758, 0.0
        %v2730 = vmax.f32 %v1936, 0.0
        %v2731 = vmax.f32 %v2114, 0.0
        %v2732 = vmax.f32 %v2292, 0.0
        %v2733 = vmax.f32 %v2470, 0.0
        %v2734 = vmax.f32 %v2648, 0.0
        %v2735 = vmax.f32 %v1404, 0.0
        %v2736 = vmax.f32 %v1582, 0.0
        %v2737 = vmax.f32 %v1760, 0.0
        %v2738 = vmax.f32 %v1938, 0.0
        %v2739 = vmax.f32 %v2116, 0.0
        %v2740 = vmax.f32 %v2294, 0.0
        %v2741 = vmax.f32 %v2472, 0.0
        %v2742 = vmax.f32 %v2650, 0.0
        %v2743 = vmax.f32 %v1407, 0.0
        %v2744 = vmax.f32 %v1585, 0.0
        %v2745 = vmax.f32 %v1763, 0.0
        %v2746 = vmax.f32 %v1941, 0.0
        %v2747 = vmax.f32 %v2119, 0.0
        %v2748 = vmax.f32 %v2297, 0.0
        %v2749 = vmax.f32 %v2475, 0.0
        %v2750 = vmax.f32 %v2653, 0.0
        %v2751 = vmax.f32 %v1409, 0.0
        %v2752 = vmax.f32 %v1587, 0.0
        %v2753 = vmax.f32 %v1765, 0.0
        %v2754 = vmax.f32 %v1943, 0.0
        %v2755 = vmax.f32 %v2121, 0.0
        %v2756 = vmax.f32 %v2299, 0.0
        %v2757 = vmax.f32 %v2477, 0.0
        %v2758 = vmax.f32 %v2655, 0.0
        %v2759 = vmax.f32 %v1412, 0.0
        %v2760 = vmax.f32 %v1590, 0.0
        %v2761 = vmax.f32 %v1768, 0.0
        %v2762 = vmax.f32 %v1946, 0.0
        %v2763 = vmax.f32 %v2124, 0.0
        %v2764 = vmax.f32 %v2302, 0.0
        %v2765 = vmax.f32 %v2480, 0.0
        %v2766 = vmax.f32 %v2658, 0.0
        %v2767 = vmax.f32 %v1414, 0.0
        %v2768 = vmax.f32 %v1592, 0.0
        %v2769 = vmax.f32 %v1770, 0.0
        %v2770 = vmax.f32 %v1948, 0.0
        %v2771 = vmax.f32 %v2126, 0.0
        %v2772 = vmax.f32 %v2304, 0.0
        %v2773 = vmax.f32 %v2482, 0.0
        %v2774 = vmax.f32 %v2660, 0.0
        %v2775 = vmax.f32 %v1417, 0.0
        %v2776 = vmax.f32 %v1595, 0.0
        %v2777 = vmax.f32 %v1773, 0.0
        %v2778 = vmax.f32 %v1951, 0.0
        %v2779 = vmax.f32 %v2129, 0.0
        %v2780 = vmax.f32 %v2307, 0.0
        %v2781 = vmax.f32 %v2485, 0.0
        %v2782 = vmax.f32 %v2663, 0.0
        %v2783 = vmax.f32 %v1419, 0.0
        %v2784 = vmax.f32 %v1597, 0.0
        %v2785 = vmax.f32 %v1775, 0.0
        %v2786 = vmax.f32 %v1953, 0.0
        %v2787 = vmax.f32 %v2131, 0.0
        %v2788 = vmax.f32 %v2309, 0.0
        %v2789 = vmax.f32 %v2487, 0.0
        %v2790 = vmax.f32 %v2665, 0.0
        %v2791 = vmax.f32 %v1422, 0.0
        %v2792 = vmax.f32 %v1600, 0.0
        %v2793 = vmax.f32 %v1778, 0.0
        %v2794 = vmax.f32 %v1956, 0.0
        %v2795 = vmax.f32 %v2134, 0.0
        %v2796 = vmax.f32 %v2312, 0.0
        %v2797 = vmax.f32 %v2490, 0.0
        %v2798 = vmax.f32 %v2668, 0.0
        %v2799 = vmax.f32 %v1424, 0.0
        %v2800 = vmax.f32 %v1602, 0.0
        %v2801 = vmax.f32 %v1780, 0.0
        %v2802 = vmax.f32 %v1958, 0.0
        %v2803 = vmax.f32 %v2136, 0.0
        %v2804 = vmax.f32 %v2314, 0.0
        %v2805 = vmax.f32 %v2492, 0.0
        %v2806 = vmax.f32 %v2670, 0.0
        %v2807 = vmax.f32 %v1427, 0.0
        %v2808 = vmax.f32 %v1605, 0.0
        %v2809 = vmax.f32 %v1783, 0.0
        %v2810 = vmax.f32 %v1961, 0.0
        %v2811 = vmax.f32 %v2139, 0.0
        %v2812 = vmax.f32 %v2317, 0.0
        %v2813 = vmax.f32 %v2495, 0.0
        %v2814 = vmax.f32 %v2673, 0.0
        %v2815 = vmax.f32 %v1429, 0.0
        %v2816 = vmax.f32 %v1607, 0.0
        %v2817 = vmax.f32 %v1785, 0.0
        %v2818 = vmax.f32 %v1963, 0.0
        %v2819 = vmax.f32 %v2141, 0.0
        %v2820 = vmax.f32 %v2319, 0.0
        %v2821 = vmax.f32 %v2497, 0.0
        %v2822 = vmax.f32 %v2675, 0.0
        %v2823 = vmax.f32 %v1432, 0.0
        %v2824 = vmax.f32 %v1610, 0.0
        %v2825 = vmax.f32 %v1788, 0.0
        %v2826 = vmax.f32 %v1966, 0.0
        %v2827 = vmax.f32 %v2144, 0.0
        %v2828 = vmax.f32 %v2322, 0.0
        %v2829 = vmax.f32 %v2500, 0.0
        %v2830 = vmax.f32 %v2678, 0.0
        %v2831 = vmax.f32 %v1434, 0.0
        %v2832 = vmax.f32 %v1612, 0.0
        %v2833 = vmax.f32 %v1790, 0.0
        %v2834 = vmax.f32 %v1968, 0.0
        %v2835 = vmax.f32 %v2146, 0.0
        %v2836 = vmax.f32 %v2324, 0.0
        %v2837 = vmax.f32 %v2502, 0.0
        %v2838 = vmax.f32 %v2680, 0.0
        %v2839 = vmax.f32 %v1437, 0.0
        %v2840 = vmax.f32 %v1615, 0.0
        %v2841 = vmax.f32 %v1793, 0.0
        %v2842 = vmax.f32 %v1971, 0.0
        %v2843 = vmax.f32 %v2149, 0.0
        %v2844 = vmax.f32 %v2327, 0.0
        %v2845 = vmax.f32 %v2505, 0.0
        %v2846 = vmax.f32 %v2683, 0.0
        %v2847 = vmax.f32 %v1439, 0.0
        %v2848 = vmax.f32 %v1617, 0.0
        %v2849 = vmax.f32 %v1795, 0.0
        %v2850 = vmax.f32 %v1973, 0.0
        %v2851 = vmax.f32 %v2151, 0.0
        %v2852 = vmax.f32 %v2329, 0.0
        %v2853 = vmax.f32 %v2507, 0.0
        %v2854 = vmax.f32 %v2685, 0.0
        %v2855 = vmax.f32 %v1442, 0.0
        %v2856 = vmax.f32 %v1620, 0.0
        %v2857 = vmax.f32 %v1798, 0.0
        %v2858 = vmax.f32 %v1976, 0.0
        %v2859 = vmax.f32 %v2154, 0.0
        %v2860 = vmax.f32 %v2332, 0.0
        %v2861 = vmax.f32 %v2510, 0.0
        %v2862 = vmax.f32 %v2688, 0.0
        %v2863 = vmax.f32 %v1444, 0.0
        %v2864 = vmax.f32 %v1622, 0.0
        %v2865 = vmax.f32 %v1800, 0.0
        %v2866 = vmax.f32 %v1978, 0.0
        %v2867 = vmax.f32 %v2156, 0.0
        %v2868 = vmax.f32 %v2334, 0.0
        %v2869 = vmax.f32 %v2512, 0.0
        %v2870 = vmax.f32 %v2690, 0.0
        %v2871 = vmax.f32 %v1447, 0.0
        %v2872 = vmax.f32 %v1625, 0.0
        %v2873 = vmax.f32 %v1803, 0.0
        %v2874 = vmax.f32 %v1981, 0.0
        %v2875 = vmax.f32 %v2159, 0.0
        %v2876 = vmax.f32 %v2337, 0.0
        %v2877 = vmax.f32 %v2515, 0.0
        %v2878 = vmax.f32 %v2693, 0.0
        %v2879 = vmax.f32 %v1449, 0.0
        %v2880 = vmax.f32 %v1627, 0.0
        %v2881 = vmax.f32 %v1805, 0.0
        %v2882 = vmax.f32 %v1983, 0.0
        %v2883 = vmax.f32 %v2161, 0.0
        %v2884 = vmax.f32 %v2339, 0.0
        %v2885 = vmax.f32 %v2517, 0.0
        %v2886 = vmax.f32 %v2695, 0.0
        %v2887 = vmax.f32 %v1452, 0.0
        %v2888 = vmax.f32 %v1630, 0.0
        %v2889 = vmax.f32 %v1808, 0.0
        %v2890 = vmax.f32 %v1986, 0.0
        %v2891 = vmax.f32 %v2164, 0.0
        %v2892 = vmax.f32 %v2342, 0.0
        %v2893 = vmax.f32 %v2520, 0.0
        %v2894 = vmax.f32 %v2698, 0.0
        %v2895 = vmax.f32 %v1454, 0.0
        %v2896 = vmax.f32 %v1632, 0.0
        %v2897 = vmax.f32 %v1810, 0.0
        %v2898 = vmax.f32 %v1988, 0.0
        %v2899 = vmax.f32 %v2166, 0.0
        %v2900 = vmax.f32 %v2344, 0.0
        %v2901 = vmax.f32 %v2522, 0.0
        %v2902 = vmax.f32 %v2700, 0.0
        %v2903 = vmax.f32 %v1457, 0.0
        %v2904 = vmax.f32 %v1635, 0.0
        %v2905 = vmax.f32 %v1813, 0.0
        %v2906 = vmax.f32 %v1991, 0.0
        %v2907 = vmax.f32 %v2169, 0.0
        %v2908 = vmax.f32 %v2347, 0.0
        %v2909 = vmax.f32 %v2525, 0.0
        %v2910 = vmax.f32 %v2703, 0.0
        %v2911 = vmax.f32 %v1459, 0.0
        %v2912 = vmax.f32 %v1637, 0.0
        %v2913 = vmax.f32 %v1815, 0.0
        %v2914 = vmax.f32 %v1993, 0.0
        %v2915 = vmax.f32 %v2171, 0.0
        %v2916 = vmax.f32 %v2349, 0.0
        %v2917 = vmax.f32 %v2527, 0.0
        %v2918 = vmax.f32 %v2705, 0.0
        %v2919 = vmax.f32 %v1462, 0.0
        %v2920 = vmax.f32 %v1640, 0.0
        %v2921 = vmax.f32 %v1818, 0.0
        %v2922 = vmax.f32 %v1996, 0.0
        %v2923 = vmax.f32 %v2174, 0.0
        %v2924 = vmax.f32 %v2352, 0.0
        %v2925 = vmax.f32 %v2530, 0.0
        %v2926 = vmax.f32 %v2708, 0.0
        %v2927 = vmax.f32 %v1464, 0.0
        %v2928 = vmax.f32 %v1642, 0.0
        %v2929 = vmax.f32 %v1820, 0.0
        %v2930 = vmax.f32 %v1998, 0.0
        %v2931 = vmax.f32 %v2176, 0.0
        %v2932 = vmax.f32 %v2354, 0.0
        %v2933 = vmax.f32 %v2532, 0.0
        %v2934 = vmax.f32 %v2710, 0.0
        %v2935 = vmax.f32 %v1467, 0.0
        %v2936 = vmax.f32 %v1645, 0.0
        %v2937 = vmax.f32 %v1823, 0.0
        %v2938 = vmax.f32 %v2001, 0.0
        %v2939 = vmax.f32 %v2179, 0.0
        %v2940 = vmax.f32 %v2357, 0.0
        %v2941 = vmax.f32 %v2535, 0.0
        %v2942 = vmax.f32 %v2713, 0.0
        %v2943 = vmax.f32 %v1469, 0.0
        %v2944 = vmax.f32 %v1647, 0.0
        %v2945 = vmax.f32 %v1825, 0.0
        %v2946 = vmax.f32 %v2003, 0.0
        %v2947 = vmax.f32 %v2181, 0.0
        %v2948 = vmax.f32 %v2359, 0.0
        %v2949 = vmax.f32 %v2537, 0.0
        %v2950 = vmax.f32 %v2715, 0.0
        %v2951 = vmax.f32 %v1472, 0.0
        %v2952 = vmax.f32 %v1650, 0.0
        %v2953 = vmax.f32 %v1828, 0.0
        %v2954 = vmax.f32 %v2006, 0.0
        %v2955 = vmax.f32 %v2184, 0.0
        %v2956 = vmax.f32 %v2362, 0.0
        %v2957 = vmax.f32 %v2540, 0.0
        %v2958 = vmax.f32 %v2718, 0.0
        %v2959 = vmax.f32 %v1474, 0.0
        %v2960 = vmax.f32 %v1652, 0.0
        %v2961 = vmax.f32 %v1830, 0.0
        %v2962 = vmax.f32 %v2008, 0.0
        %v2963 = vmax.f32 %v2186, 0.0
        %v2964 = vmax.f32 %v2364, 0.0
        %v2965 = vmax.f32 %v2542, 0.0
        %v2966 = vmax.f32 %v2720, 0.0
        %v2967 = vmax.f32 %v1477, 0.0
        %v2968 = vmax.f32 %v1655, 0.0
        %v2969 = vmax.f32 %v1833, 0.0
        %v2970 = vmax.f32 %v2011, 0.0
        %v2971 = vmax.f32 %v2189, 0.0
        %v2972 = vmax.f32 %v2367, 0.0
        %v2973 = vmax.f32 %v2545, 0.0
        %v2974 = vmax.f32 %v2723, 0.0
        %v2975 = vmax.f32 %v1479, 0.0
        %v2976 = vmax.f32 %v1657, 0.0
        %v2977 = vmax.f32 %v1835, 0.0
        %v2978 = vmax.f32 %v2013, 0.0
        %v2979 = vmax.f32 %v2191, 0.0
        %v2980 = vmax.f32 %v2369, 0.0
        %v2981 = vmax.f32 %v2547, 0.0
        %v2982 = vmax.f32 %v2725, 0.0
        %v2983 = vpack.c.bf16 %v2735, %v2727
        %v2984 = vpack.c.bf16 %v2736, %v2728
        %v2985 = vpack.c.bf16 %v2737, %v2729
        %v2986 = vpack.c.bf16 %v2738, %v2730
        %v2987 = vpack.c.bf16 %v2739, %v2731
        %v2988 = vpack.c.bf16 %v2740, %v2732
        %v2989 = vpack.c.bf16 %v2741, %v2733
        %v2990 = vpack.c.bf16 %v2742, %v2734
        %v2991 = vpack.c.bf16 %v2751, %v2743
        %v2992 = vpack.c.bf16 %v2752, %v2744
        %v2993 = vpack.c.bf16 %v2753, %v2745
        %v2994 = vpack.c.bf16 %v2754, %v2746
        %v2995 = vpack.c.bf16 %v2755, %v2747
        %v2996 = vpack.c.bf16 %v2756, %v2748
        %v2997 = vpack.c.bf16 %v2757, %v2749
        %v2998 = vpack.c.bf16 %v2758, %v2750
        %v2999 = vpack.c.bf16 %v2767, %v2759
        %v3000 = vpack.c.bf16 %v2768, %v2760
        %v3001 = vpack.c.bf16 %v2769, %v2761
        %v3002 = vpack.c.bf16 %v2770, %v2762
        %v3003 = vpack.c.bf16 %v2771, %v2763
        %v3004 = vpack.c.bf16 %v2772, %v2764
        %v3005 = vpack.c.bf16 %v2773, %v2765
        %v3006 = vpack.c.bf16 %v2774, %v2766
        %v3007 = vpack.c.bf16 %v2783, %v2775
        %v3008 = vpack.c.bf16 %v2784, %v2776
        %v3009 = vpack.c.bf16 %v2785, %v2777
        %v3010 = vpack.c.bf16 %v2786, %v2778
        %v3011 = vpack.c.bf16 %v2787, %v2779
        %v3012 = vpack.c.bf16 %v2788, %v2780
        %v3013 = vpack.c.bf16 %v2789, %v2781
        %v3014 = vpack.c.bf16 %v2790, %v2782
        %v3015 = vpack.c.bf16 %v2799, %v2791
        %v3016 = vpack.c.bf16 %v2800, %v2792
        %v3017 = vpack.c.bf16 %v2801, %v2793
        %v3018 = vpack.c.bf16 %v2802, %v2794
        %v3019 = vpack.c.bf16 %v2803, %v2795
        %v3020 = vpack.c.bf16 %v2804, %v2796
        %v3021 = vpack.c.bf16 %v2805, %v2797
        %v3022 = vpack.c.bf16 %v2806, %v2798
        %v3023 = vpack.c.bf16 %v2815, %v2807
        %v3024 = vpack.c.bf16 %v2816, %v2808
        %v3025 = vpack.c.bf16 %v2817, %v2809
        %v3026 = vpack.c.bf16 %v2818, %v2810
        %v3027 = vpack.c.bf16 %v2819, %v2811
        %v3028 = vpack.c.bf16 %v2820, %v2812
        %v3029 = vpack.c.bf16 %v2821, %v2813
        %v3030 = vpack.c.bf16 %v2822, %v2814
        %v3031 = vpack.c.bf16 %v2831, %v2823
        %v3032 = vpack.c.bf16 %v2832, %v2824
        %v3033 = vpack.c.bf16 %v2833, %v2825
        %v3034 = vpack.c.bf16 %v2834, %v2826
        %v3035 = vpack.c.bf16 %v2835, %v2827
        %v3036 = vpack.c.bf16 %v2836, %v2828
        %v3037 = vpack.c.bf16 %v2837, %v2829
        %v3038 = vpack.c.bf16 %v2838, %v2830
        %v3039 = vpack.c.bf16 %v2847, %v2839
        %v3040 = vpack.c.bf16 %v2848, %v2840
        %v3041 = vpack.c.bf16 %v2849, %v2841
        %v3042 = vpack.c.bf16 %v2850, %v2842
        %v3043 = vpack.c.bf16 %v2851, %v2843
        %v3044 = vpack.c.bf16 %v2852, %v2844
        %v3045 = vpack.c.bf16 %v2853, %v2845
        %v3046 = vpack.c.bf16 %v2854, %v2846
        %v3047 = vpack.c.bf16 %v2863, %v2855
        %v3048 = vpack.c.bf16 %v2864, %v2856
        %v3049 = vpack.c.bf16 %v2865, %v2857
        %v3050 = vpack.c.bf16 %v2866, %v2858
        %v3051 = vpack.c.bf16 %v2867, %v2859
        %v3052 = vpack.c.bf16 %v2868, %v2860
        %v3053 = vpack.c.bf16 %v2869, %v2861
        %v3054 = vpack.c.bf16 %v2870, %v2862
        %v3055 = vpack.c.bf16 %v2879, %v2871
        %v3056 = vpack.c.bf16 %v2880, %v2872
        %v3057 = vpack.c.bf16 %v2881, %v2873
        %v3058 = vpack.c.bf16 %v2882, %v2874
        %v3059 = vpack.c.bf16 %v2883, %v2875
        %v3060 = vpack.c.bf16 %v2884, %v2876
        %v3061 = vpack.c.bf16 %v2885, %v2877
        %v3062 = vpack.c.bf16 %v2886, %v2878
        %v3063 = vpack.c.bf16 %v2895, %v2887
        %v3064 = vpack.c.bf16 %v2896, %v2888
        %v3065 = vpack.c.bf16 %v2897, %v2889
        %v3066 = vpack.c.bf16 %v2898, %v2890
        %v3067 = vpack.c.bf16 %v2899, %v2891
        %v3068 = vpack.c.bf16 %v2900, %v2892
        %v3069 = vpack.c.bf16 %v2901, %v2893
        %v3070 = vpack.c.bf16 %v2902, %v2894
        %v3071 = vpack.c.bf16 %v2911, %v2903
        %v3072 = vpack.c.bf16 %v2912, %v2904
        %v3073 = vpack.c.bf16 %v2913, %v2905
        %v3074 = vpack.c.bf16 %v2914, %v2906
        %v3075 = vpack.c.bf16 %v2915, %v2907
        %v3076 = vpack.c.bf16 %v2916, %v2908
        %v3077 = vpack.c.bf16 %v2917, %v2909
        %v3078 = vpack.c.bf16 %v2918, %v2910
        %v3079 = vpack.c.bf16 %v2927, %v2919
        %v3080 = vpack.c.bf16 %v2928, %v2920
        %v3081 = vpack.c.bf16 %v2929, %v2921
        %v3082 = vpack.c.bf16 %v2930, %v2922
        %v3083 = vpack.c.bf16 %v2931, %v2923
        %v3084 = vpack.c.bf16 %v2932, %v2924
        %v3085 = vpack.c.bf16 %v2933, %v2925
        %v3086 = vpack.c.bf16 %v2934, %v2926
        %v3087 = vpack.c.bf16 %v2943, %v2935
        %v3088 = vpack.c.bf16 %v2944, %v2936
        %v3089 = vpack.c.bf16 %v2945, %v2937
        %v3090 = vpack.c.bf16 %v2946, %v2938
        %v3091 = vpack.c.bf16 %v2947, %v2939
        %v3092 = vpack.c.bf16 %v2948, %v2940
        %v3093 = vpack.c.bf16 %v2949, %v2941
        %v3094 = vpack.c.bf16 %v2950, %v2942
        %v3095 = vpack.c.bf16 %v2959, %v2951
        %v3096 = vpack.c.bf16 %v2960, %v2952
        %v3097 = vpack.c.bf16 %v2961, %v2953
        %v3098 = vpack.c.bf16 %v2962, %v2954
        %v3099 = vpack.c.bf16 %v2963, %v2955
        %v3100 = vpack.c.bf16 %v2964, %v2956
        %v3101 = vpack.c.bf16 %v2965, %v2957
        %v3102 = vpack.c.bf16 %v2966, %v2958
        %v3103 = vpack.c.bf16 %v2975, %v2967
        %v3104 = vpack.c.bf16 %v2976, %v2968
        %v3105 = vpack.c.bf16 %v2977, %v2969
        %v3106 = vpack.c.bf16 %v2978, %v2970
        %v3107 = vpack.c.bf16 %v2979, %v2971
        %v3108 = vpack.c.bf16 %v2980, %v2972
        %v3109 = vpack.c.bf16 %v2981, %v2973
        %v3110 = vpack.c.bf16 %v2982, %v2974
        %v3111 = vld [vmem:[#allocation8] sm:$0xff]
        %v3112 = vld [vmem:[#allocation8 + $0x8] sm:$0xff]
        %v3113 = vld [vmem:[#allocation8 + $0x10] sm:$0xff]
        %v3114 = vld [vmem:[#allocation8 + $0x18] sm:$0xff]
        %v3115 = vld [vmem:[#allocation8 + $0x20] sm:$0xff]
        %v3116 = vld [vmem:[#allocation8 + $0x28] sm:$0xff]
        %v3117 = vld [vmem:[#allocation8 + $0x30] sm:$0xff]
        %v3118 = vld [vmem:[#allocation8 + $0x38] sm:$0xff]
        %v3119 = vld [vmem:[#allocation8 + $0x40] sm:$0xff]
        %v3120 = vld [vmem:[#allocation8 + $0x48] sm:$0xff]
        %v3121 = vld [vmem:[#allocation8 + $0x50] sm:$0xff]
        %v3122 = vld [vmem:[#allocation8 + $0x58] sm:$0xff]
        %v3123 = vld [vmem:[#allocation8 + $0x60] sm:$0xff]
        %v3124 = vld [vmem:[#allocation8 + $0x68] sm:$0xff]
        %v3125 = vld [vmem:[#allocation8 + $0x70] sm:$0xff]
        %v3126 = vld [vmem:[#allocation8 + $0x78] sm:$0xff]
        %v3127 = vld [vmem:[#allocation8 + $0x80] sm:$0xff]
        %v3128 = vld [vmem:[#allocation8 + $0x88] sm:$0xff]
        %v3129 = vld [vmem:[#allocation8 + $0x90] sm:$0xff]
        %v3130 = vld [vmem:[#allocation8 + $0x98] sm:$0xff]
        %v3131 = vld [vmem:[#allocation8 + $0xa0] sm:$0xff]
        %v3132 = vld [vmem:[#allocation8 + $0xa8] sm:$0xff]
        %v3133 = vld [vmem:[#allocation8 + $0xb0] sm:$0xff]
        %v3134 = vld [vmem:[#allocation8 + $0xb8] sm:$0xff]
        %v3135 = vld [vmem:[#allocation8 + $0xc0] sm:$0xff]
        %v3136 = vld [vmem:[#allocation8 + $0xc8] sm:$0xff]
        %v3137 = vld [vmem:[#allocation8 + $0xd0] sm:$0xff]
        %v3138 = vld [vmem:[#allocation8 + $0xd8] sm:$0xff]
        %v3139 = vld [vmem:[#allocation8 + $0xe0] sm:$0xff]
        %v3140 = vld [vmem:[#allocation8 + $0xe8] sm:$0xff]
        %v3141 = vld [vmem:[#allocation8 + $0xf0] sm:$0xff]
        %v3142 = vld [vmem:[#allocation8 + $0xf8] sm:$0xff]
        %v3143 = vld [vmem:[#allocation8 + $0x100] sm:$0xff]
        %v3144 = vld [vmem:[#allocation8 + $0x108] sm:$0xff]
        %v3145 = vld [vmem:[#allocation8 + $0x110] sm:$0xff]
        %v3146 = vld [vmem:[#allocation8 + $0x118] sm:$0xff]
        %v3147 = vld [vmem:[#allocation8 + $0x120] sm:$0xff]
        %v3148 = vld [vmem:[#allocation8 + $0x128] sm:$0xff]
        %v3149 = vld [vmem:[#allocation8 + $0x130] sm:$0xff]
        %v3150 = vld [vmem:[#allocation8 + $0x138] sm:$0xff]
        %v3151 = vld [vmem:[#allocation8 + $0x140] sm:$0xff]
        %v3152 = vld [vmem:[#allocation8 + $0x148] sm:$0xff]
        %v3153 = vld [vmem:[#allocation8 + $0x150] sm:$0xff]
        %v3154 = vld [vmem:[#allocation8 + $0x158] sm:$0xff]
        %v3155 = vld [vmem:[#allocation8 + $0x160] sm:$0xff]
        %v3156 = vld [vmem:[#allocation8 + $0x168] sm:$0xff]
        %v3157 = vld [vmem:[#allocation8 + $0x170] sm:$0xff]
        %v3158 = vld [vmem:[#allocation8 + $0x178] sm:$0xff]
        %v3159 = vld [vmem:[#allocation8 + $0x180] sm:$0xff]
        %v3160 = vld [vmem:[#allocation8 + $0x188] sm:$0xff]
        %v3161 = vld [vmem:[#allocation8 + $0x190] sm:$0xff]
        %v3162 = vld [vmem:[#allocation8 + $0x198] sm:$0xff]
        %v3163 = vld [vmem:[#allocation8 + $0x1a0] sm:$0xff]
        %v3164 = vld [vmem:[#allocation8 + $0x1a8] sm:$0xff]
        %v3165 = vld [vmem:[#allocation8 + $0x1b0] sm:$0xff]
        %v3166 = vld [vmem:[#allocation8 + $0x1b8] sm:$0xff]
        %v3167 = vld [vmem:[#allocation8 + $0x1c0] sm:$0xff]
        %v3168 = vld [vmem:[#allocation8 + $0x1c8] sm:$0xff]
        %v3169 = vld [vmem:[#allocation8 + $0x1d0] sm:$0xff]
        %v3170 = vld [vmem:[#allocation8 + $0x1d8] sm:$0xff]
        %v3171 = vld [vmem:[#allocation8 + $0x1e0] sm:$0xff]
        %v3172 = vld [vmem:[#allocation8 + $0x1e8] sm:$0xff]
        %v3173 = vld [vmem:[#allocation8 + $0x1f0] sm:$0xff]
        %v3174 = vld [vmem:[#allocation8 + $0x1f8] sm:$0xff]
        %v3175 = vld [vmem:[#allocation8 + $0x200] sm:$0xff]
        %v3176 = vld [vmem:[#allocation8 + $0x208] sm:$0xff]
        %v3177 = vld [vmem:[#allocation8 + $0x210] sm:$0xff]
        %v3178 = vld [vmem:[#allocation8 + $0x218] sm:$0xff]
        %v3179 = vld [vmem:[#allocation8 + $0x220] sm:$0xff]
        %v3180 = vld [vmem:[#allocation8 + $0x228] sm:$0xff]
        %v3181 = vld [vmem:[#allocation8 + $0x230] sm:$0xff]
        %v3182 = vld [vmem:[#allocation8 + $0x238] sm:$0xff]
        %v3183 = vld [vmem:[#allocation8 + $0x240] sm:$0xff]
        %v3184 = vld [vmem:[#allocation8 + $0x248] sm:$0xff]
        %v3185 = vld [vmem:[#allocation8 + $0x250] sm:$0xff]
        %v3186 = vld [vmem:[#allocation8 + $0x258] sm:$0xff]
        %v3187 = vld [vmem:[#allocation8 + $0x260] sm:$0xff]
        %v3188 = vld [vmem:[#allocation8 + $0x268] sm:$0xff]
        %v3189 = vld [vmem:[#allocation8 + $0x270] sm:$0xff]
        %v3190 = vld [vmem:[#allocation8 + $0x278] sm:$0xff]
        %v3191 = vld [vmem:[#allocation8 + $0x280] sm:$0xff]
        %v3192 = vld [vmem:[#allocation8 + $0x288] sm:$0xff]
        %v3193 = vld [vmem:[#allocation8 + $0x290] sm:$0xff]
        %v3194 = vld [vmem:[#allocation8 + $0x298] sm:$0xff]
        %v3195 = vld [vmem:[#allocation8 + $0x2a0] sm:$0xff]
        %v3196 = vld [vmem:[#allocation8 + $0x2a8] sm:$0xff]
        %v3197 = vld [vmem:[#allocation8 + $0x2b0] sm:$0xff]
        %v3198 = vld [vmem:[#allocation8 + $0x2b8] sm:$0xff]
        %v3199 = vld [vmem:[#allocation8 + $0x2c0] sm:$0xff]
        %v3200 = vld [vmem:[#allocation8 + $0x2c8] sm:$0xff]
        %v3201 = vld [vmem:[#allocation8 + $0x2d0] sm:$0xff]
        %v3202 = vld [vmem:[#allocation8 + $0x2d8] sm:$0xff]
        %v3203 = vld [vmem:[#allocation8 + $0x2e0] sm:$0xff]
        %v3204 = vld [vmem:[#allocation8 + $0x2e8] sm:$0xff]
        %v3205 = vld [vmem:[#allocation8 + $0x2f0] sm:$0xff]
        %v3206 = vld [vmem:[#allocation8 + $0x2f8] sm:$0xff]
        %v3207 = vld [vmem:[#allocation8 + $0x300] sm:$0xff]
        %v3208 = vld [vmem:[#allocation8 + $0x308] sm:$0xff]
        %v3209 = vld [vmem:[#allocation8 + $0x310] sm:$0xff]
        %v3210 = vld [vmem:[#allocation8 + $0x318] sm:$0xff]
        %v3211 = vld [vmem:[#allocation8 + $0x320] sm:$0xff]
        %v3212 = vld [vmem:[#allocation8 + $0x328] sm:$0xff]
        %v3213 = vld [vmem:[#allocation8 + $0x330] sm:$0xff]
        %v3214 = vld [vmem:[#allocation8 + $0x338] sm:$0xff]
        %v3215 = vld [vmem:[#allocation8 + $0x340] sm:$0xff]
        %v3216 = vld [vmem:[#allocation8 + $0x348] sm:$0xff]
        %v3217 = vld [vmem:[#allocation8 + $0x350] sm:$0xff]
        %v3218 = vld [vmem:[#allocation8 + $0x358] sm:$0xff]
        %v3219 = vld [vmem:[#allocation8 + $0x360] sm:$0xff]
        %v3220 = vld [vmem:[#allocation8 + $0x368] sm:$0xff]
        %v3221 = vld [vmem:[#allocation8 + $0x370] sm:$0xff]
        %v3222 = vld [vmem:[#allocation8 + $0x378] sm:$0xff]
        %v3223 = vld [vmem:[#allocation8 + $0x380] sm:$0xff]
        %v3224 = vld [vmem:[#allocation8 + $0x388] sm:$0xff]
        %v3225 = vld [vmem:[#allocation8 + $0x390] sm:$0xff]
        %v3226 = vld [vmem:[#allocation8 + $0x398] sm:$0xff]
        %v3227 = vld [vmem:[#allocation8 + $0x3a0] sm:$0xff]
        %v3228 = vld [vmem:[#allocation8 + $0x3a8] sm:$0xff]
        %v3229 = vld [vmem:[#allocation8 + $0x3b0] sm:$0xff]
        %v3230 = vld [vmem:[#allocation8 + $0x3b8] sm:$0xff]
        %v3231 = vld [vmem:[#allocation8 + $0x3c0] sm:$0xff]
        %v3232 = vld [vmem:[#allocation8 + $0x3c8] sm:$0xff]
        %v3233 = vld [vmem:[#allocation8 + $0x3d0] sm:$0xff]
        %v3234 = vld [vmem:[#allocation8 + $0x3d8] sm:$0xff]
        %v3235 = vld [vmem:[#allocation8 + $0x3e0] sm:$0xff]
        %v3236 = vld [vmem:[#allocation8 + $0x3e8] sm:$0xff]
        %v3237 = vld [vmem:[#allocation8 + $0x3f0] sm:$0xff]
        %v3238 = vld [vmem:[#allocation8 + $0x3f8] sm:$0xff]
        %v3239 = vld [vmem:[%s4] sm:$0x3]
        %v3240 = vunpack.c.l.bf16 %v3239
        %v3242 = vperm.slane %v3240, 0
        %v3243 = vperm.slane %v3240, 2
        %v3246 = vperm.slane %v3242, 0
        %v3247 = vperm.slane %v3243, 0
        %v3376 = vunpack.c.l.b16 %v3111
        %v3377 = vunpack.c.h.b16 %v3111
        %v3378 = vunpack.c.l.b16 %v3112
        %v3379 = vunpack.c.h.b16 %v3112
        %v3380 = vunpack.c.l.b16 %v3113
        %v3381 = vunpack.c.h.b16 %v3113
        %v3382 = vunpack.c.l.b16 %v3114
        %v3383 = vunpack.c.h.b16 %v3114
        %v3384 = vunpack.c.l.b16 %v3115
        %v3385 = vunpack.c.h.b16 %v3115
        %v3386 = vunpack.c.l.b16 %v3116
        %v3387 = vunpack.c.h.b16 %v3116
        %v3388 = vunpack.c.l.b16 %v3117
        %v3389 = vunpack.c.h.b16 %v3117
        %v3390 = vunpack.c.l.b16 %v3118
        %v3391 = vunpack.c.h.b16 %v3118
        %v3392 = vunpack.c.l.b16 %v3119
        %v3393 = vunpack.c.h.b16 %v3119
        %v3394 = vunpack.c.l.b16 %v3120
        %v3395 = vunpack.c.h.b16 %v3120
        %v3396 = vunpack.c.l.b16 %v3121
        %v3397 = vunpack.c.h.b16 %v3121
        %v3398 = vunpack.c.l.b16 %v3122
        %v3399 = vunpack.c.h.b16 %v3122
        %v3400 = vunpack.c.l.b16 %v3123
        %v3401 = vunpack.c.h.b16 %v3123
        %v3402 = vunpack.c.l.b16 %v3124
        %v3403 = vunpack.c.h.b16 %v3124
        %v3404 = vunpack.c.l.b16 %v3125
        %v3405 = vunpack.c.h.b16 %v3125
        %v3406 = vunpack.c.l.b16 %v3126
        %v3407 = vunpack.c.h.b16 %v3126
        %v3408 = vunpack.c.l.b16 %v3127
        %v3409 = vunpack.c.h.b16 %v3127
        %v3410 = vunpack.c.l.b16 %v3128
        %v3411 = vunpack.c.h.b16 %v3128
        %v3412 = vunpack.c.l.b16 %v3129
        %v3413 = vunpack.c.h.b16 %v3129
        %v3414 = vunpack.c.l.b16 %v3130
        %v3415 = vunpack.c.h.b16 %v3130
        %v3416 = vunpack.c.l.b16 %v3131
        %v3417 = vunpack.c.h.b16 %v3131
        %v3418 = vunpack.c.l.b16 %v3132
        %v3419 = vunpack.c.h.b16 %v3132
        %v3420 = vunpack.c.l.b16 %v3133
        %v3421 = vunpack.c.h.b16 %v3133
        %v3422 = vunpack.c.l.b16 %v3134
        %v3423 = vunpack.c.h.b16 %v3134
        %v3424 = vunpack.c.l.b16 %v3135
        %v3425 = vunpack.c.h.b16 %v3135
        %v3426 = vunpack.c.l.b16 %v3136
        %v3427 = vunpack.c.h.b16 %v3136
        %v3428 = vunpack.c.l.b16 %v3137
        %v3429 = vunpack.c.h.b16 %v3137
        %v3430 = vunpack.c.l.b16 %v3138
        %v3431 = vunpack.c.h.b16 %v3138
        %v3432 = vunpack.c.l.b16 %v3139
        %v3433 = vunpack.c.h.b16 %v3139
        %v3434 = vunpack.c.l.b16 %v3140
        %v3435 = vunpack.c.h.b16 %v3140
        %v3436 = vunpack.c.l.b16 %v3141
        %v3437 = vunpack.c.h.b16 %v3141
        %v3438 = vunpack.c.l.b16 %v3142
        %v3439 = vunpack.c.h.b16 %v3142
        %v3440 = vunpack.c.l.b16 %v3143
        %v3441 = vunpack.c.h.b16 %v3143
        %v3442 = vunpack.c.l.b16 %v3144
        %v3443 = vunpack.c.h.b16 %v3144
        %v3444 = vunpack.c.l.b16 %v3145
        %v3445 = vunpack.c.h.b16 %v3145
        %v3446 = vunpack.c.l.b16 %v3146
        %v3447 = vunpack.c.h.b16 %v3146
        %v3448 = vunpack.c.l.b16 %v3147
        %v3449 = vunpack.c.h.b16 %v3147
        %v3450 = vunpack.c.l.b16 %v3148
        %v3451 = vunpack.c.h.b16 %v3148
        %v3452 = vunpack.c.l.b16 %v3149
        %v3453 = vunpack.c.h.b16 %v3149
        %v3454 = vunpack.c.l.b16 %v3150
        %v3455 = vunpack.c.h.b16 %v3150
        %v3456 = vunpack.c.l.b16 %v3151
        %v3457 = vunpack.c.h.b16 %v3151
        %v3458 = vunpack.c.l.b16 %v3152
        %v3459 = vunpack.c.h.b16 %v3152
        %v3460 = vunpack.c.l.b16 %v3153
        %v3461 = vunpack.c.h.b16 %v3153
        %v3462 = vunpack.c.l.b16 %v3154
        %v3463 = vunpack.c.h.b16 %v3154
        %v3464 = vunpack.c.l.b16 %v3155
        %v3465 = vunpack.c.h.b16 %v3155
        %v3466 = vunpack.c.l.b16 %v3156
        %v3467 = vunpack.c.h.b16 %v3156
        %v3468 = vunpack.c.l.b16 %v3157
        %v3469 = vunpack.c.h.b16 %v3157
        %v3470 = vunpack.c.l.b16 %v3158
        %v3471 = vunpack.c.h.b16 %v3158
        %v3472 = vunpack.c.l.b16 %v3159
        %v3473 = vunpack.c.h.b16 %v3159
        %v3474 = vunpack.c.l.b16 %v3160
        %v3475 = vunpack.c.h.b16 %v3160
        %v3476 = vunpack.c.l.b16 %v3161
        %v3477 = vunpack.c.h.b16 %v3161
        %v3478 = vunpack.c.l.b16 %v3162
        %v3479 = vunpack.c.h.b16 %v3162
        %v3480 = vunpack.c.l.b16 %v3163
        %v3481 = vunpack.c.h.b16 %v3163
        %v3482 = vunpack.c.l.b16 %v3164
        %v3483 = vunpack.c.h.b16 %v3164
        %v3484 = vunpack.c.l.b16 %v3165
        %v3485 = vunpack.c.h.b16 %v3165
        %v3486 = vunpack.c.l.b16 %v3166
        %v3487 = vunpack.c.h.b16 %v3166
        %v3488 = vunpack.c.l.b16 %v3167
        %v3489 = vunpack.c.h.b16 %v3167
        %v3490 = vunpack.c.l.b16 %v3168
        %v3491 = vunpack.c.h.b16 %v3168
        %v3492 = vunpack.c.l.b16 %v3169
        %v3493 = vunpack.c.h.b16 %v3169
        %v3494 = vunpack.c.l.b16 %v3170
        %v3495 = vunpack.c.h.b16 %v3170
        %v3496 = vunpack.c.l.b16 %v3171
        %v3497 = vunpack.c.h.b16 %v3171
        %v3498 = vunpack.c.l.b16 %v3172
        %v3499 = vunpack.c.h.b16 %v3172
        %v3500 = vunpack.c.l.b16 %v3173
        %v3501 = vunpack.c.h.b16 %v3173
        %v3502 = vunpack.c.l.b16 %v3174
        %v3503 = vunpack.c.h.b16 %v3174
        %v3504 = vunpack.c.l.b16 %v3175
        %v3505 = vunpack.c.h.b16 %v3175
        %v3506 = vunpack.c.l.b16 %v3176
        %v3507 = vunpack.c.h.b16 %v3176
        %v3508 = vunpack.c.l.b16 %v3177
        %v3509 = vunpack.c.h.b16 %v3177
        %v3510 = vunpack.c.l.b16 %v3178
        %v3511 = vunpack.c.h.b16 %v3178
        %v3512 = vunpack.c.l.b16 %v3179
        %v3513 = vunpack.c.h.b16 %v3179
        %v3514 = vunpack.c.l.b16 %v3180
        %v3515 = vunpack.c.h.b16 %v3180
        %v3516 = vunpack.c.l.b16 %v3181
        %v3517 = vunpack.c.h.b16 %v3181
        %v3518 = vunpack.c.l.b16 %v3182
        %v3519 = vunpack.c.h.b16 %v3182
        %v3520 = vunpack.c.l.b16 %v3183
        %v3521 = vunpack.c.h.b16 %v3183
        %v3522 = vunpack.c.l.b16 %v3184
        %v3523 = vunpack.c.h.b16 %v3184
        %v3524 = vunpack.c.l.b16 %v3185
        %v3525 = vunpack.c.h.b16 %v3185
        %v3526 = vunpack.c.l.b16 %v3186
        %v3527 = vunpack.c.h.b16 %v3186
        %v3528 = vunpack.c.l.b16 %v3187
        %v3529 = vunpack.c.h.b16 %v3187
        %v3530 = vunpack.c.l.b16 %v3188
        %v3531 = vunpack.c.h.b16 %v3188
        %v3532 = vunpack.c.l.b16 %v3189
        %v3533 = vunpack.c.h.b16 %v3189
        %v3534 = vunpack.c.l.b16 %v3190
        %v3535 = vunpack.c.h.b16 %v3190
        %v3536 = vunpack.c.l.b16 %v3191
        %v3537 = vunpack.c.h.b16 %v3191
        %v3538 = vunpack.c.l.b16 %v3192
        %v3539 = vunpack.c.h.b16 %v3192
        %v3540 = vunpack.c.l.b16 %v3193
        %v3541 = vunpack.c.h.b16 %v3193
        %v3542 = vunpack.c.l.b16 %v3194
        %v3543 = vunpack.c.h.b16 %v3194
        %v3544 = vunpack.c.l.b16 %v3195
        %v3545 = vunpack.c.h.b16 %v3195
        %v3546 = vunpack.c.l.b16 %v3196
        %v3547 = vunpack.c.h.b16 %v3196
        %v3548 = vunpack.c.l.b16 %v3197
        %v3549 = vunpack.c.h.b16 %v3197
        %v3550 = vunpack.c.l.b16 %v3198
        %v3551 = vunpack.c.h.b16 %v3198
        %v3552 = vunpack.c.l.b16 %v3199
        %v3553 = vunpack.c.h.b16 %v3199
        %v3554 = vunpack.c.l.b16 %v3200
        %v3555 = vunpack.c.h.b16 %v3200
        %v3556 = vunpack.c.l.b16 %v3201
        %v3557 = vunpack.c.h.b16 %v3201
        %v3558 = vunpack.c.l.b16 %v3202
        %v3559 = vunpack.c.h.b16 %v3202
        %v3560 = vunpack.c.l.b16 %v3203
        %v3561 = vunpack.c.h.b16 %v3203
        %v3562 = vunpack.c.l.b16 %v3204
        %v3563 = vunpack.c.h.b16 %v3204
        %v3564 = vunpack.c.l.b16 %v3205
        %v3565 = vunpack.c.h.b16 %v3205
        %v3566 = vunpack.c.l.b16 %v3206
        %v3567 = vunpack.c.h.b16 %v3206
        %v3568 = vunpack.c.l.b16 %v3207
        %v3569 = vunpack.c.h.b16 %v3207
        %v3570 = vunpack.c.l.b16 %v3208
        %v3571 = vunpack.c.h.b16 %v3208
        %v3572 = vunpack.c.l.b16 %v3209
        %v3573 = vunpack.c.h.b16 %v3209
        %v3574 = vunpack.c.l.b16 %v3210
        %v3575 = vunpack.c.h.b16 %v3210
        %v3576 = vunpack.c.l.b16 %v3211
        %v3577 = vunpack.c.h.b16 %v3211
        %v3578 = vunpack.c.l.b16 %v3212
        %v3579 = vunpack.c.h.b16 %v3212
        %v3580 = vunpack.c.l.b16 %v3213
        %v3581 = vunpack.c.h.b16 %v3213
        %v3582 = vunpack.c.l.b16 %v3214
        %v3583 = vunpack.c.h.b16 %v3214
        %v3584 = vunpack.c.l.b16 %v3215
        %v3585 = vunpack.c.h.b16 %v3215
        %v3586 = vunpack.c.l.b16 %v3216
        %v3587 = vunpack.c.h.b16 %v3216
        %v3588 = vunpack.c.l.b16 %v3217
        %v3589 = vunpack.c.h.b16 %v3217
        %v3590 = vunpack.c.l.b16 %v3218
        %v3591 = vunpack.c.h.b16 %v3218
        %v3592 = vunpack.c.l.b16 %v3219
        %v3593 = vunpack.c.h.b16 %v3219
        %v3594 = vunpack.c.l.b16 %v3220
        %v3595 = vunpack.c.h.b16 %v3220
        %v3596 = vunpack.c.l.b16 %v3221
        %v3597 = vunpack.c.h.b16 %v3221
        %v3598 = vunpack.c.l.b16 %v3222
        %v3599 = vunpack.c.h.b16 %v3222
        %v3600 = vunpack.c.l.b16 %v3223
        %v3601 = vunpack.c.h.b16 %v3223
        %v3602 = vunpack.c.l.b16 %v3224
        %v3603 = vunpack.c.h.b16 %v3224
        %v3604 = vunpack.c.l.b16 %v3225
        %v3605 = vunpack.c.h.b16 %v3225
        %v3606 = vunpack.c.l.b16 %v3226
        %v3607 = vunpack.c.h.b16 %v3226
        %v3608 = vunpack.c.l.b16 %v3227
        %v3609 = vunpack.c.h.b16 %v3227
        %v3610 = vunpack.c.l.b16 %v3228
        %v3611 = vunpack.c.h.b16 %v3228
        %v3612 = vunpack.c.l.b16 %v3229
        %v3613 = vunpack.c.h.b16 %v3229
        %v3614 = vunpack.c.l.b16 %v3230
        %v3615 = vunpack.c.h.b16 %v3230
        %v3616 = vunpack.c.l.b16 %v3231
        %v3617 = vunpack.c.h.b16 %v3231
        %v3618 = vunpack.c.l.b16 %v3232
        %v3619 = vunpack.c.h.b16 %v3232
        %v3620 = vunpack.c.l.b16 %v3233
        %v3621 = vunpack.c.h.b16 %v3233
        %v3622 = vunpack.c.l.b16 %v3234
        %v3623 = vunpack.c.h.b16 %v3234
        %v3624 = vunpack.c.l.b16 %v3235
        %v3625 = vunpack.c.h.b16 %v3235
        %v3626 = vunpack.c.l.b16 %v3236
        %v3627 = vunpack.c.h.b16 %v3236
        %v3628 = vunpack.c.l.b16 %v3237
        %v3629 = vunpack.c.h.b16 %v3237
        %v3630 = vunpack.c.l.b16 %v3238
        %v3631 = vunpack.c.h.b16 %v3238
        %v3632 = vpack.c.b16 %v3378, %v3376
        %v3633 = vpack.c.b16 %v3379, %v3377
        %v3634 = vpack.c.b16 %v3382, %v3380
        %v3635 = vpack.c.b16 %v3383, %v3381
        %v3636 = vpack.c.b16 %v3386, %v3384
        %v3637 = vpack.c.b16 %v3387, %v3385
        %v3638 = vpack.c.b16 %v3390, %v3388
        %v3639 = vpack.c.b16 %v3391, %v3389
        %v3640 = vpack.c.b16 %v3394, %v3392
        %v3641 = vpack.c.b16 %v3395, %v3393
        %v3642 = vpack.c.b16 %v3398, %v3396
        %v3643 = vpack.c.b16 %v3399, %v3397
        %v3644 = vpack.c.b16 %v3402, %v3400
        %v3645 = vpack.c.b16 %v3403, %v3401
        %v3646 = vpack.c.b16 %v3406, %v3404
        %v3647 = vpack.c.b16 %v3407, %v3405
        %v3648 = vpack.c.b16 %v3410, %v3408
        %v3649 = vpack.c.b16 %v3411, %v3409
        %v3650 = vpack.c.b16 %v3414, %v3412
        %v3651 = vpack.c.b16 %v3415, %v3413
        %v3652 = vpack.c.b16 %v3418, %v3416
        %v3653 = vpack.c.b16 %v3419, %v3417
        %v3654 = vpack.c.b16 %v3422, %v3420
        %v3655 = vpack.c.b16 %v3423, %v3421
        %v3656 = vpack.c.b16 %v3426, %v3424
        %v3657 = vpack.c.b16 %v3427, %v3425
        %v3658 = vpack.c.b16 %v3430, %v3428
        %v3659 = vpack.c.b16 %v3431, %v3429
        %v3660 = vpack.c.b16 %v3434, %v3432
        %v3661 = vpack.c.b16 %v3435, %v3433
        %v3662 = vpack.c.b16 %v3438, %v3436
        %v3663 = vpack.c.b16 %v3439, %v3437
        %v3664 = vpack.c.b16 %v3442, %v3440
        %v3665 = vpack.c.b16 %v3443, %v3441
        %v3666 = vpack.c.b16 %v3446, %v3444
        %v3667 = vpack.c.b16 %v3447, %v3445
        %v3668 = vpack.c.b16 %v3450, %v3448
        %v3669 = vpack.c.b16 %v3451, %v3449
        %v3670 = vpack.c.b16 %v3454, %v3452
        %v3671 = vpack.c.b16 %v3455, %v3453
        %v3672 = vpack.c.b16 %v3458, %v3456
        %v3673 = vpack.c.b16 %v3459, %v3457
        %v3674 = vpack.c.b16 %v3462, %v3460
        %v3675 = vpack.c.b16 %v3463, %v3461
        %v3676 = vpack.c.b16 %v3466, %v3464
        %v3677 = vpack.c.b16 %v3467, %v3465
        %v3678 = vpack.c.b16 %v3470, %v3468
        %v3679 = vpack.c.b16 %v3471, %v3469
        %v3680 = vpack.c.b16 %v3474, %v3472
        %v3681 = vpack.c.b16 %v3475, %v3473
        %v3682 = vpack.c.b16 %v3478, %v3476
        %v3683 = vpack.c.b16 %v3479, %v3477
        %v3684 = vpack.c.b16 %v3482, %v3480
        %v3685 = vpack.c.b16 %v3483, %v3481
        %v3686 = vpack.c.b16 %v3486, %v3484
        %v3687 = vpack.c.b16 %v3487, %v3485
        %v3688 = vpack.c.b16 %v3490, %v3488
        %v3689 = vpack.c.b16 %v3491, %v3489
        %v3690 = vpack.c.b16 %v3494, %v3492
        %v3691 = vpack.c.b16 %v3495, %v3493
        %v3692 = vpack.c.b16 %v3498, %v3496
        %v3693 = vpack.c.b16 %v3499, %v3497
        %v3694 = vpack.c.b16 %v3502, %v3500
        %v3695 = vpack.c.b16 %v3503, %v3501
        %v3696 = vpack.c.b16 %v3506, %v3504
        %v3697 = vpack.c.b16 %v3507, %v3505
        %v3698 = vpack.c.b16 %v3510, %v3508
        %v3699 = vpack.c.b16 %v3511, %v3509
        %v3700 = vpack.c.b16 %v3514, %v3512
        %v3701 = vpack.c.b16 %v3515, %v3513
        %v3702 = vpack.c.b16 %v3518, %v3516
        %v3703 = vpack.c.b16 %v3519, %v3517
        %v3704 = vpack.c.b16 %v3522, %v3520
        %v3705 = vpack.c.b16 %v3523, %v3521
        %v3706 = vpack.c.b16 %v3526, %v3524
        %v3707 = vpack.c.b16 %v3527, %v3525
        %v3708 = vpack.c.b16 %v3530, %v3528
        %v3709 = vpack.c.b16 %v3531, %v3529
        %v3710 = vpack.c.b16 %v3534, %v3532
        %v3711 = vpack.c.b16 %v3535, %v3533
        %v3712 = vpack.c.b16 %v3538, %v3536
        %v3713 = vpack.c.b16 %v3539, %v3537
        %v3714 = vpack.c.b16 %v3542, %v3540
        %v3715 = vpack.c.b16 %v3543, %v3541
        %v3716 = vpack.c.b16 %v3546, %v3544
        %v3717 = vpack.c.b16 %v3547, %v3545
        %v3718 = vpack.c.b16 %v3550, %v3548
        %v3719 = vpack.c.b16 %v3551, %v3549
        %v3720 = vpack.c.b16 %v3554, %v3552
        %v3721 = vpack.c.b16 %v3555, %v3553
        %v3722 = vpack.c.b16 %v3558, %v3556
        %v3723 = vpack.c.b16 %v3559, %v3557
        %v3724 = vpack.c.b16 %v3562, %v3560
        %v3725 = vpack.c.b16 %v3563, %v3561
        %v3726 = vpack.c.b16 %v3566, %v3564
        %v3727 = vpack.c.b16 %v3567, %v3565
        %v3728 = vpack.c.b16 %v3570, %v3568
        %v3729 = vpack.c.b16 %v3571, %v3569
        %v3730 = vpack.c.b16 %v3574, %v3572
        %v3731 = vpack.c.b16 %v3575, %v3573
        %v3732 = vpack.c.b16 %v3578, %v3576
        %v3733 = vpack.c.b16 %v3579, %v3577
        %v3734 = vpack.c.b16 %v3582, %v3580
        %v3735 = vpack.c.b16 %v3583, %v3581
        %v3736 = vpack.c.b16 %v3586, %v3584
        %v3737 = vpack.c.b16 %v3587, %v3585
        %v3738 = vpack.c.b16 %v3590, %v3588
        %v3739 = vpack.c.b16 %v3591, %v3589
        %v3740 = vpack.c.b16 %v3594, %v3592
        %v3741 = vpack.c.b16 %v3595, %v3593
        %v3742 = vpack.c.b16 %v3598, %v3596
        %v3743 = vpack.c.b16 %v3599, %v3597
        %v3744 = vpack.c.b16 %v3602, %v3600
        %v3745 = vpack.c.b16 %v3603, %v3601
        %v3746 = vpack.c.b16 %v3606, %v3604
        %v3747 = vpack.c.b16 %v3607, %v3605
        %v3748 = vpack.c.b16 %v3610, %v3608
        %v3749 = vpack.c.b16 %v3611, %v3609
        %v3750 = vpack.c.b16 %v3614, %v3612
        %v3751 = vpack.c.b16 %v3615, %v3613
        %v3752 = vpack.c.b16 %v3618, %v3616
        %v3753 = vpack.c.b16 %v3619, %v3617
        %v3754 = vpack.c.b16 %v3622, %v3620
        %v3755 = vpack.c.b16 %v3623, %v3621
        %v3756 = vpack.c.b16 %v3626, %v3624
        %v3757 = vpack.c.b16 %v3627, %v3625
        %v3758 = vpack.c.b16 %v3630, %v3628
        %v3759 = vpack.c.b16 %v3631, %v3629
        %3888 = vmatpush.bf16.msra.mxu0 %v3646
        %3889 = vmatpush.bf16.msra.mxu0 %v3644
        %3890 = vmatpush.bf16.msra.mxu0 %v3642
        %3891 = vmatpush.bf16.msra.mxu0 %v3640
        %3892 = vmatpush.bf16.msra.mxu0 %v3638
        %3893 = vmatpush.bf16.msra.mxu0 %v3636
        %3894 = vmatpush.bf16.msra.mxu0 %v3634
        %3895 = vmatpush.bf16.msra.mxu0 %v3632
        %3896 = vmatmul.bf16.gmra.mxu0 %v2983
        %v3897 = vpop.f32.mrf.mxu0
        %v3898 = vadd.f32 %v3246, %v3897
        %v3899 = vpop.f32.mrf.mxu0
        %v3900 = vadd.f32 %v3246, %v3899
        %3901 = vmatmul.bf16.gmra.mxu0 %v2991
        %v3902 = vpop.f32.mrf.mxu0
        %v3903 = vadd.f32 %v3246, %v3902
        %v3904 = vpop.f32.mrf.mxu0
        %v3905 = vadd.f32 %v3246, %v3904
        %3906 = vmatmul.bf16.gmra.mxu0 %v2999
        %v3907 = vpop.f32.mrf.mxu0
        %v3908 = vadd.f32 %v3246, %v3907
        %v3909 = vpop.f32.mrf.mxu0
        %v3910 = vadd.f32 %v3246, %v3909
        %3911 = vmatmul.bf16.gmra.mxu0 %v3007
        %v3912 = vpop.f32.mrf.mxu0
        %v3913 = vadd.f32 %v3246, %v3912
        %v3914 = vpop.f32.mrf.mxu0
        %v3915 = vadd.f32 %v3246, %v3914
        %3916 = vmatmul.bf16.gmra.mxu0 %v3015
        %v3917 = vpop.f32.mrf.mxu0
        %v3918 = vadd.f32 %v3246, %v3917
        %v3919 = vpop.f32.mrf.mxu0
        %v3920 = vadd.f32 %v3246, %v3919
        %3921 = vmatmul.bf16.gmra.mxu0 %v3023
        %v3922 = vpop.f32.mrf.mxu0
        %v3923 = vadd.f32 %v3246, %v3922
        %v3924 = vpop.f32.mrf.mxu0
        %v3925 = vadd.f32 %v3246, %v3924
        %3926 = vmatmul.bf16.gmra.mxu0 %v3031
        %v3927 = vpop.f32.mrf.mxu0
        %v3928 = vadd.f32 %v3246, %v3927
        %v3929 = vpop.f32.mrf.mxu0
        %v3930 = vadd.f32 %v3246, %v3929
        %3931 = vmatmul.bf16.gmra.mxu0 %v3039
        %v3932 = vpop.f32.mrf.mxu0
        %v3933 = vadd.f32 %v3246, %v3932
        %v3934 = vpop.f32.mrf.mxu0
        %v3935 = vadd.f32 %v3246, %v3934
        %3936 = vmatmul.bf16.gmra.mxu0 %v3047
        %v3937 = vpop.f32.mrf.mxu0
        %v3938 = vadd.f32 %v3246, %v3937
        %v3939 = vpop.f32.mrf.mxu0
        %v3940 = vadd.f32 %v3246, %v3939
        %3941 = vmatmul.bf16.gmra.mxu0 %v3055
        %v3942 = vpop.f32.mrf.mxu0
        %v3943 = vadd.f32 %v3246, %v3942
        %v3944 = vpop.f32.mrf.mxu0
        %v3945 = vadd.f32 %v3246, %v3944
        %3946 = vmatmul.bf16.gmra.mxu0 %v3063
        %v3947 = vpop.f32.mrf.mxu0
        %v3948 = vadd.f32 %v3246, %v3947
        %v3949 = vpop.f32.mrf.mxu0
        %v3950 = vadd.f32 %v3246, %v3949
        %3951 = vmatmul.bf16.gmra.mxu0 %v3071
        %v3952 = vpop.f32.mrf.mxu0
        %v3953 = vadd.f32 %v3246, %v3952
        %v3954 = vpop.f32.mrf.mxu0
        %v3955 = vadd.f32 %v3246, %v3954
        %3956 = vmatmul.bf16.gmra.mxu0 %v3079
        %v3957 = vpop.f32.mrf.mxu0
        %v3958 = vadd.f32 %v3246, %v3957
        %v3959 = vpop.f32.mrf.mxu0
        %v3960 = vadd.f32 %v3246, %v3959
        %3961 = vmatmul.bf16.gmra.mxu0 %v3087
        %v3962 = vpop.f32.mrf.mxu0
        %v3963 = vadd.f32 %v3246, %v3962
        %v3964 = vpop.f32.mrf.mxu0
        %v3965 = vadd.f32 %v3246, %v3964
        %3966 = vmatmul.bf16.gmra.mxu0 %v3095
        %v3967 = vpop.f32.mrf.mxu0
        %v3968 = vadd.f32 %v3246, %v3967
        %v3969 = vpop.f32.mrf.mxu0
        %v3970 = vadd.f32 %v3246, %v3969
        %3971 = vmatmul.bf16.gmra.mxu0 %v3103
        %v3972 = vpop.f32.mrf.mxu0
        %v3973 = vadd.f32 %v3246, %v3972
        %v3974 = vpop.f32.mrf.mxu0
        %v3975 = vadd.f32 %v3246, %v3974
        %3976 = vdwg.mxu0
        %3977 = vmatpush.bf16.msra.mxu0 %v3662
        %3978 = vmatpush.bf16.msra.mxu0 %v3660
        %3979 = vmatpush.bf16.msra.mxu0 %v3658
        %3980 = vmatpush.bf16.msra.mxu0 %v3656
        %3981 = vmatpush.bf16.msra.mxu0 %v3654
        %3982 = vmatpush.bf16.msra.mxu0 %v3652
        %3983 = vmatpush.bf16.msra.mxu0 %v3650
        %3984 = vmatpush.bf16.msra.mxu0 %v3648
        %3985 = vmatmul.bf16.gmra.mxu0 %v2984
        %v3986 = vpop.f32.mrf.mxu0
        %v3987 = vadd.f32 %v3898, %v3986
        %v3988 = vpop.f32.mrf.mxu0
        %v3989 = vadd.f32 %v3900, %v3988
        %3990 = vmatmul.bf16.gmra.mxu0 %v2992
        %v3991 = vpop.f32.mrf.mxu0
        %v3992 = vadd.f32 %v3903, %v3991
        %v3993 = vpop.f32.mrf.mxu0
        %v3994 = vadd.f32 %v3905, %v3993
        %3995 = vmatmul.bf16.gmra.mxu0 %v3000
        %v3996 = vpop.f32.mrf.mxu0
        %v3997 = vadd.f32 %v3908, %v3996
        %v3998 = vpop.f32.mrf.mxu0
        %v3999 = vadd.f32 %v3910, %v3998
        %4000 = vmatmul.bf16.gmra.mxu0 %v3008
        %v4001 = vpop.f32.mrf.mxu0
        %v4002 = vadd.f32 %v3913, %v4001
        %v4003 = vpop.f32.mrf.mxu0
        %v4004 = vadd.f32 %v3915, %v4003
        %4005 = vmatmul.bf16.gmra.mxu0 %v3016
        %v4006 = vpop.f32.mrf.mxu0
        %v4007 = vadd.f32 %v3918, %v4006
        %v4008 = vpop.f32.mrf.mxu0
        %v4009 = vadd.f32 %v3920, %v4008
        %4010 = vmatmul.bf16.gmra.mxu0 %v3024
        %v4011 = vpop.f32.mrf.mxu0
        %v4012 = vadd.f32 %v3923, %v4011
        %v4013 = vpop.f32.mrf.mxu0
        %v4014 = vadd.f32 %v3925, %v4013
        %4015 = vmatmul.bf16.gmra.mxu0 %v3032
        %v4016 = vpop.f32.mrf.mxu0
        %v4017 = vadd.f32 %v3928, %v4016
        %v4018 = vpop.f32.mrf.mxu0
        %v4019 = vadd.f32 %v3930, %v4018
        %4020 = vmatmul.bf16.gmra.mxu0 %v3040
        %v4021 = vpop.f32.mrf.mxu0
        %v4022 = vadd.f32 %v3933, %v4021
        %v4023 = vpop.f32.mrf.mxu0
        %v4024 = vadd.f32 %v3935, %v4023
        %4025 = vmatmul.bf16.gmra.mxu0 %v3048
        %v4026 = vpop.f32.mrf.mxu0
        %v4027 = vadd.f32 %v3938, %v4026
        %v4028 = vpop.f32.mrf.mxu0
        %v4029 = vadd.f32 %v3940, %v4028
        %4030 = vmatmul.bf16.gmra.mxu0 %v3056
        %v4031 = vpop.f32.mrf.mxu0
        %v4032 = vadd.f32 %v3943, %v4031
        %v4033 = vpop.f32.mrf.mxu0
        %v4034 = vadd.f32 %v3945, %v4033
        %4035 = vmatmul.bf16.gmra.mxu0 %v3064
        %v4036 = vpop.f32.mrf.mxu0
        %v4037 = vadd.f32 %v3948, %v4036
        %v4038 = vpop.f32.mrf.mxu0
        %v4039 = vadd.f32 %v3950, %v4038
        %4040 = vmatmul.bf16.gmra.mxu0 %v3072
        %v4041 = vpop.f32.mrf.mxu0
        %v4042 = vadd.f32 %v3953, %v4041
        %v4043 = vpop.f32.mrf.mxu0
        %v4044 = vadd.f32 %v3955, %v4043
        %4045 = vmatmul.bf16.gmra.mxu0 %v3080
        %v4046 = vpop.f32.mrf.mxu0
        %v4047 = vadd.f32 %v3958, %v4046
        %v4048 = vpop.f32.mrf.mxu0
        %v4049 = vadd.f32 %v3960, %v4048
        %4050 = vmatmul.bf16.gmra.mxu0 %v3088
        %v4051 = vpop.f32.mrf.mxu0
        %v4052 = vadd.f32 %v3963, %v4051
        %v4053 = vpop.f32.mrf.mxu0
        %v4054 = vadd.f32 %v3965, %v4053
        %4055 = vmatmul.bf16.gmra.mxu0 %v3096
        %v4056 = vpop.f32.mrf.mxu0
        %v4057 = vadd.f32 %v3968, %v4056
        %v4058 = vpop.f32.mrf.mxu0
        %v4059 = vadd.f32 %v3970, %v4058
        %4060 = vmatmul.bf16.gmra.mxu0 %v3104
        %v4061 = vpop.f32.mrf.mxu0
        %v4062 = vadd.f32 %v3973, %v4061
        %v4063 = vpop.f32.mrf.mxu0
        %v4064 = vadd.f32 %v3975, %v4063
        %4065 = vdwg.mxu0
        %4066 = vmatpush.bf16.msra.mxu0 %v3678
        %4067 = vmatpush.bf16.msra.mxu0 %v3676
        %4068 = vmatpush.bf16.msra.mxu0 %v3674
        %4069 = vmatpush.bf16.msra.mxu0 %v3672
        %4070 = vmatpush.bf16.msra.mxu0 %v3670
        %4071 = vmatpush.bf16.msra.mxu0 %v3668
        %4072 = vmatpush.bf16.msra.mxu0 %v3666
        %4073 = vmatpush.bf16.msra.mxu0 %v3664
        %4074 = vmatmul.bf16.gmra.mxu0 %v2985
        %v4075 = vpop.f32.mrf.mxu0
        %v4076 = vadd.f32 %v3987, %v4075
        %v4077 = vpop.f32.mrf.mxu0
        %v4078 = vadd.f32 %v3989, %v4077
        %4079 = vmatmul.bf16.gmra.mxu0 %v2993
        %v4080 = vpop.f32.mrf.mxu0
        %v4081 = vadd.f32 %v3992, %v4080
        %v4082 = vpop.f32.mrf.mxu0
        %v4083 = vadd.f32 %v3994, %v4082
        %4084 = vmatmul.bf16.gmra.mxu0 %v3001
        %v4085 = vpop.f32.mrf.mxu0
        %v4086 = vadd.f32 %v3997, %v4085
        %v4087 = vpop.f32.mrf.mxu0
        %v4088 = vadd.f32 %v3999, %v4087
        %4089 = vmatmul.bf16.gmra.mxu0 %v3009
        %v4090 = vpop.f32.mrf.mxu0
        %v4091 = vadd.f32 %v4002, %v4090
        %v4092 = vpop.f32.mrf.mxu0
        %v4093 = vadd.f32 %v4004, %v4092
        %4094 = vmatmul.bf16.gmra.mxu0 %v3017
        %v4095 = vpop.f32.mrf.mxu0
        %v4096 = vadd.f32 %v4007, %v4095
        %v4097 = vpop.f32.mrf.mxu0
        %v4098 = vadd.f32 %v4009, %v4097
        %4099 = vmatmul.bf16.gmra.mxu0 %v3025
        %v4100 = vpop.f32.mrf.mxu0
        %v4101 = vadd.f32 %v4012, %v4100
        %v4102 = vpop.f32.mrf.mxu0
        %v4103 = vadd.f32 %v4014, %v4102
        %4104 = vmatmul.bf16.gmra.mxu0 %v3033
        %v4105 = vpop.f32.mrf.mxu0
        %v4106 = vadd.f32 %v4017, %v4105
        %v4107 = vpop.f32.mrf.mxu0
        %v4108 = vadd.f32 %v4019, %v4107
        %4109 = vmatmul.bf16.gmra.mxu0 %v3041
        %v4110 = vpop.f32.mrf.mxu0
        %v4111 = vadd.f32 %v4022, %v4110
        %v4112 = vpop.f32.mrf.mxu0
        %v4113 = vadd.f32 %v4024, %v4112
        %4114 = vmatmul.bf16.gmra.mxu0 %v3049
        %v4115 = vpop.f32.mrf.mxu0
        %v4116 = vadd.f32 %v4027, %v4115
        %v4117 = vpop.f32.mrf.mxu0
        %v4118 = vadd.f32 %v4029, %v4117
        %4119 = vmatmul.bf16.gmra.mxu0 %v3057
        %v4120 = vpop.f32.mrf.mxu0
        %v4121 = vadd.f32 %v4032, %v4120
        %v4122 = vpop.f32.mrf.mxu0
        %v4123 = vadd.f32 %v4034, %v4122
        %4124 = vmatmul.bf16.gmra.mxu0 %v3065
        %v4125 = vpop.f32.mrf.mxu0
        %v4126 = vadd.f32 %v4037, %v4125
        %v4127 = vpop.f32.mrf.mxu0
        %v4128 = vadd.f32 %v4039, %v4127
        %4129 = vmatmul.bf16.gmra.mxu0 %v3073
        %v4130 = vpop.f32.mrf.mxu0
        %v4131 = vadd.f32 %v4042, %v4130
        %v4132 = vpop.f32.mrf.mxu0
        %v4133 = vadd.f32 %v4044, %v4132
        %4134 = vmatmul.bf16.gmra.mxu0 %v3081
        %v4135 = vpop.f32.mrf.mxu0
        %v4136 = vadd.f32 %v4047, %v4135
        %v4137 = vpop.f32.mrf.mxu0
        %v4138 = vadd.f32 %v4049, %v4137
        %4139 = vmatmul.bf16.gmra.mxu0 %v3089
        %v4140 = vpop.f32.mrf.mxu0
        %v4141 = vadd.f32 %v4052, %v4140
        %v4142 = vpop.f32.mrf.mxu0
        %v4143 = vadd.f32 %v4054, %v4142
        %4144 = vmatmul.bf16.gmra.mxu0 %v3097
        %v4145 = vpop.f32.mrf.mxu0
        %v4146 = vadd.f32 %v4057, %v4145
        %v4147 = vpop.f32.mrf.mxu0
        %v4148 = vadd.f32 %v4059, %v4147
        %4149 = vmatmul.bf16.gmra.mxu0 %v3105
        %v4150 = vpop.f32.mrf.mxu0
        %v4151 = vadd.f32 %v4062, %v4150
        %v4152 = vpop.f32.mrf.mxu0
        %v4153 = vadd.f32 %v4064, %v4152
        %4154 = vdwg.mxu0
        %4155 = vmatpush.bf16.msra.mxu0 %v3694
        %4156 = vmatpush.bf16.msra.mxu0 %v3692
        %4157 = vmatpush.bf16.msra.mxu0 %v3690
        %4158 = vmatpush.bf16.msra.mxu0 %v3688
        %4159 = vmatpush.bf16.msra.mxu0 %v3686
        %4160 = vmatpush.bf16.msra.mxu0 %v3684
        %4161 = vmatpush.bf16.msra.mxu0 %v3682
        %4162 = vmatpush.bf16.msra.mxu0 %v3680
        %4163 = vmatmul.bf16.gmra.mxu0 %v2986
        %v4164 = vpop.f32.mrf.mxu0
        %v4165 = vadd.f32 %v4076, %v4164
        %v4166 = vpop.f32.mrf.mxu0
        %v4167 = vadd.f32 %v4078, %v4166
        %4168 = vmatmul.bf16.gmra.mxu0 %v2994
        %v4169 = vpop.f32.mrf.mxu0
        %v4170 = vadd.f32 %v4081, %v4169
        %v4171 = vpop.f32.mrf.mxu0
        %v4172 = vadd.f32 %v4083, %v4171
        %4173 = vmatmul.bf16.gmra.mxu0 %v3002
        %v4174 = vpop.f32.mrf.mxu0
        %v4175 = vadd.f32 %v4086, %v4174
        %v4176 = vpop.f32.mrf.mxu0
        %v4177 = vadd.f32 %v4088, %v4176
        %4178 = vmatmul.bf16.gmra.mxu0 %v3010
        %v4179 = vpop.f32.mrf.mxu0
        %v4180 = vadd.f32 %v4091, %v4179
        %v4181 = vpop.f32.mrf.mxu0
        %v4182 = vadd.f32 %v4093, %v4181
        %4183 = vmatmul.bf16.gmra.mxu0 %v3018
        %v4184 = vpop.f32.mrf.mxu0
        %v4185 = vadd.f32 %v4096, %v4184
        %v4186 = vpop.f32.mrf.mxu0
        %v4187 = vadd.f32 %v4098, %v4186
        %4188 = vmatmul.bf16.gmra.mxu0 %v3026
        %v4189 = vpop.f32.mrf.mxu0
        %v4190 = vadd.f32 %v4101, %v4189
        %v4191 = vpop.f32.mrf.mxu0
        %v4192 = vadd.f32 %v4103, %v4191
        %4193 = vmatmul.bf16.gmra.mxu0 %v3034
        %v4194 = vpop.f32.mrf.mxu0
        %v4195 = vadd.f32 %v4106, %v4194
        %v4196 = vpop.f32.mrf.mxu0
        %v4197 = vadd.f32 %v4108, %v4196
        %4198 = vmatmul.bf16.gmra.mxu0 %v3042
        %v4199 = vpop.f32.mrf.mxu0
        %v4200 = vadd.f32 %v4111, %v4199
        %v4201 = vpop.f32.mrf.mxu0
        %v4202 = vadd.f32 %v4113, %v4201
        %4203 = vmatmul.bf16.gmra.mxu0 %v3050
        %v4204 = vpop.f32.mrf.mxu0
        %v4205 = vadd.f32 %v4116, %v4204
        %v4206 = vpop.f32.mrf.mxu0
        %v4207 = vadd.f32 %v4118, %v4206
        %4208 = vmatmul.bf16.gmra.mxu0 %v3058
        %v4209 = vpop.f32.mrf.mxu0
        %v4210 = vadd.f32 %v4121, %v4209
        %v4211 = vpop.f32.mrf.mxu0
        %v4212 = vadd.f32 %v4123, %v4211
        %4213 = vmatmul.bf16.gmra.mxu0 %v3066
        %v4214 = vpop.f32.mrf.mxu0
        %v4215 = vadd.f32 %v4126, %v4214
        %v4216 = vpop.f32.mrf.mxu0
        %v4217 = vadd.f32 %v4128, %v4216
        %4218 = vmatmul.bf16.gmra.mxu0 %v3074
        %v4219 = vpop.f32.mrf.mxu0
        %v4220 = vadd.f32 %v4131, %v4219
        %v4221 = vpop.f32.mrf.mxu0
        %v4222 = vadd.f32 %v4133, %v4221
        %4223 = vmatmul.bf16.gmra.mxu0 %v3082
        %v4224 = vpop.f32.mrf.mxu0
        %v4225 = vadd.f32 %v4136, %v4224
        %v4226 = vpop.f32.mrf.mxu0
        %v4227 = vadd.f32 %v4138, %v4226
        %4228 = vmatmul.bf16.gmra.mxu0 %v3090
        %v4229 = vpop.f32.mrf.mxu0
        %v4230 = vadd.f32 %v4141, %v4229
        %v4231 = vpop.f32.mrf.mxu0
        %v4232 = vadd.f32 %v4143, %v4231
        %4233 = vmatmul.bf16.gmra.mxu0 %v3098
        %v4234 = vpop.f32.mrf.mxu0
        %v4235 = vadd.f32 %v4146, %v4234
        %v4236 = vpop.f32.mrf.mxu0
        %v4237 = vadd.f32 %v4148, %v4236
        %4238 = vmatmul.bf16.gmra.mxu0 %v3106
        %v4239 = vpop.f32.mrf.mxu0
        %v4240 = vadd.f32 %v4151, %v4239
        %v4241 = vpop.f32.mrf.mxu0
        %v4242 = vadd.f32 %v4153, %v4241
        %4243 = vdwg.mxu0
        %4244 = vmatpush.bf16.msra.mxu0 %v3710
        %4245 = vmatpush.bf16.msra.mxu0 %v3708
        %4246 = vmatpush.bf16.msra.mxu0 %v3706
        %4247 = vmatpush.bf16.msra.mxu0 %v3704
        %4248 = vmatpush.bf16.msra.mxu0 %v3702
        %4249 = vmatpush.bf16.msra.mxu0 %v3700
        %4250 = vmatpush.bf16.msra.mxu0 %v3698
        %4251 = vmatpush.bf16.msra.mxu0 %v3696
        %4252 = vmatmul.bf16.gmra.mxu0 %v2987
        %v4253 = vpop.f32.mrf.mxu0
        %v4254 = vadd.f32 %v4165, %v4253
        %v4255 = vpop.f32.mrf.mxu0
        %v4256 = vadd.f32 %v4167, %v4255
        %4257 = vmatmul.bf16.gmra.mxu0 %v2995
        %v4258 = vpop.f32.mrf.mxu0
        %v4259 = vadd.f32 %v4170, %v4258
        %v4260 = vpop.f32.mrf.mxu0
        %v4261 = vadd.f32 %v4172, %v4260
        %4262 = vmatmul.bf16.gmra.mxu0 %v3003
        %v4263 = vpop.f32.mrf.mxu0
        %v4264 = vadd.f32 %v4175, %v4263
        %v4265 = vpop.f32.mrf.mxu0
        %v4266 = vadd.f32 %v4177, %v4265
        %4267 = vmatmul.bf16.gmra.mxu0 %v3011
        %v4268 = vpop.f32.mrf.mxu0
        %v4269 = vadd.f32 %v4180, %v4268
        %v4270 = vpop.f32.mrf.mxu0
        %v4271 = vadd.f32 %v4182, %v4270
        %4272 = vmatmul.bf16.gmra.mxu0 %v3019
        %v4273 = vpop.f32.mrf.mxu0
        %v4274 = vadd.f32 %v4185, %v4273
        %v4275 = vpop.f32.mrf.mxu0
        %v4276 = vadd.f32 %v4187, %v4275
        %4277 = vmatmul.bf16.gmra.mxu0 %v3027
        %v4278 = vpop.f32.mrf.mxu0
        %v4279 = vadd.f32 %v4190, %v4278
        %v4280 = vpop.f32.mrf.mxu0
        %v4281 = vadd.f32 %v4192, %v4280
        %4282 = vmatmul.bf16.gmra.mxu0 %v3035
        %v4283 = vpop.f32.mrf.mxu0
        %v4284 = vadd.f32 %v4195, %v4283
        %v4285 = vpop.f32.mrf.mxu0
        %v4286 = vadd.f32 %v4197, %v4285
        %4287 = vmatmul.bf16.gmra.mxu0 %v3043
        %v4288 = vpop.f32.mrf.mxu0
        %v4289 = vadd.f32 %v4200, %v4288
        %v4290 = vpop.f32.mrf.mxu0
        %v4291 = vadd.f32 %v4202, %v4290
        %4292 = vmatmul.bf16.gmra.mxu0 %v3051
        %v4293 = vpop.f32.mrf.mxu0
        %v4294 = vadd.f32 %v4205, %v4293
        %v4295 = vpop.f32.mrf.mxu0
        %v4296 = vadd.f32 %v4207, %v4295
        %4297 = vmatmul.bf16.gmra.mxu0 %v3059
        %v4298 = vpop.f32.mrf.mxu0
        %v4299 = vadd.f32 %v4210, %v4298
        %v4300 = vpop.f32.mrf.mxu0
        %v4301 = vadd.f32 %v4212, %v4300
        %4302 = vmatmul.bf16.gmra.mxu0 %v3067
        %v4303 = vpop.f32.mrf.mxu0
        %v4304 = vadd.f32 %v4215, %v4303
        %v4305 = vpop.f32.mrf.mxu0
        %v4306 = vadd.f32 %v4217, %v4305
        %4307 = vmatmul.bf16.gmra.mxu0 %v3075
        %v4308 = vpop.f32.mrf.mxu0
        %v4309 = vadd.f32 %v4220, %v4308
        %v4310 = vpop.f32.mrf.mxu0
        %v4311 = vadd.f32 %v4222, %v4310
        %4312 = vmatmul.bf16.gmra.mxu0 %v3083
        %v4313 = vpop.f32.mrf.mxu0
        %v4314 = vadd.f32 %v4225, %v4313
        %v4315 = vpop.f32.mrf.mxu0
        %v4316 = vadd.f32 %v4227, %v4315
        %4317 = vmatmul.bf16.gmra.mxu0 %v3091
        %v4318 = vpop.f32.mrf.mxu0
        %v4319 = vadd.f32 %v4230, %v4318
        %v4320 = vpop.f32.mrf.mxu0
        %v4321 = vadd.f32 %v4232, %v4320
        %4322 = vmatmul.bf16.gmra.mxu0 %v3099
        %v4323 = vpop.f32.mrf.mxu0
        %v4324 = vadd.f32 %v4235, %v4323
        %v4325 = vpop.f32.mrf.mxu0
        %v4326 = vadd.f32 %v4237, %v4325
        %4327 = vmatmul.bf16.gmra.mxu0 %v3107
        %v4328 = vpop.f32.mrf.mxu0
        %v4329 = vadd.f32 %v4240, %v4328
        %v4330 = vpop.f32.mrf.mxu0
        %v4331 = vadd.f32 %v4242, %v4330
        %4332 = vdwg.mxu0
        %4333 = vmatpush.bf16.msra.mxu0 %v3726
        %4334 = vmatpush.bf16.msra.mxu0 %v3724
        %4335 = vmatpush.bf16.msra.mxu0 %v3722
        %4336 = vmatpush.bf16.msra.mxu0 %v3720
        %4337 = vmatpush.bf16.msra.mxu0 %v3718
        %4338 = vmatpush.bf16.msra.mxu0 %v3716
        %4339 = vmatpush.bf16.msra.mxu0 %v3714
        %4340 = vmatpush.bf16.msra.mxu0 %v3712
        %4341 = vmatmul.bf16.gmra.mxu0 %v2988
        %v4342 = vpop.f32.mrf.mxu0
        %v4343 = vadd.f32 %v4254, %v4342
        %v4344 = vpop.f32.mrf.mxu0
        %v4345 = vadd.f32 %v4256, %v4344
        %4346 = vmatmul.bf16.gmra.mxu0 %v2996
        %v4347 = vpop.f32.mrf.mxu0
        %v4348 = vadd.f32 %v4259, %v4347
        %v4349 = vpop.f32.mrf.mxu0
        %v4350 = vadd.f32 %v4261, %v4349
        %4351 = vmatmul.bf16.gmra.mxu0 %v3004
        %v4352 = vpop.f32.mrf.mxu0
        %v4353 = vadd.f32 %v4264, %v4352
        %v4354 = vpop.f32.mrf.mxu0
        %v4355 = vadd.f32 %v4266, %v4354
        %4356 = vmatmul.bf16.gmra.mxu0 %v3012
        %v4357 = vpop.f32.mrf.mxu0
        %v4358 = vadd.f32 %v4269, %v4357
        %v4359 = vpop.f32.mrf.mxu0
        %v4360 = vadd.f32 %v4271, %v4359
        %4361 = vmatmul.bf16.gmra.mxu0 %v3020
        %v4362 = vpop.f32.mrf.mxu0
        %v4363 = vadd.f32 %v4274, %v4362
        %v4364 = vpop.f32.mrf.mxu0
        %v4365 = vadd.f32 %v4276, %v4364
        %4366 = vmatmul.bf16.gmra.mxu0 %v3028
        %v4367 = vpop.f32.mrf.mxu0
        %v4368 = vadd.f32 %v4279, %v4367
        %v4369 = vpop.f32.mrf.mxu0
        %v4370 = vadd.f32 %v4281, %v4369
        %4371 = vmatmul.bf16.gmra.mxu0 %v3036
        %v4372 = vpop.f32.mrf.mxu0
        %v4373 = vadd.f32 %v4284, %v4372
        %v4374 = vpop.f32.mrf.mxu0
        %v4375 = vadd.f32 %v4286, %v4374
        %4376 = vmatmul.bf16.gmra.mxu0 %v3044
        %v4377 = vpop.f32.mrf.mxu0
        %v4378 = vadd.f32 %v4289, %v4377
        %v4379 = vpop.f32.mrf.mxu0
        %v4380 = vadd.f32 %v4291, %v4379
        %4381 = vmatmul.bf16.gmra.mxu0 %v3052
        %v4382 = vpop.f32.mrf.mxu0
        %v4383 = vadd.f32 %v4294, %v4382
        %v4384 = vpop.f32.mrf.mxu0
        %v4385 = vadd.f32 %v4296, %v4384
        %4386 = vmatmul.bf16.gmra.mxu0 %v3060
        %v4387 = vpop.f32.mrf.mxu0
        %v4388 = vadd.f32 %v4299, %v4387
        %v4389 = vpop.f32.mrf.mxu0
        %v4390 = vadd.f32 %v4301, %v4389
        %4391 = vmatmul.bf16.gmra.mxu0 %v3068
        %v4392 = vpop.f32.mrf.mxu0
        %v4393 = vadd.f32 %v4304, %v4392
        %v4394 = vpop.f32.mrf.mxu0
        %v4395 = vadd.f32 %v4306, %v4394
        %4396 = vmatmul.bf16.gmra.mxu0 %v3076
        %v4397 = vpop.f32.mrf.mxu0
        %v4398 = vadd.f32 %v4309, %v4397
        %v4399 = vpop.f32.mrf.mxu0
        %v4400 = vadd.f32 %v4311, %v4399
        %4401 = vmatmul.bf16.gmra.mxu0 %v3084
        %v4402 = vpop.f32.mrf.mxu0
        %v4403 = vadd.f32 %v4314, %v4402
        %v4404 = vpop.f32.mrf.mxu0
        %v4405 = vadd.f32 %v4316, %v4404
        %4406 = vmatmul.bf16.gmra.mxu0 %v3092
        %v4407 = vpop.f32.mrf.mxu0
        %v4408 = vadd.f32 %v4319, %v4407
        %v4409 = vpop.f32.mrf.mxu0
        %v4410 = vadd.f32 %v4321, %v4409
        %4411 = vmatmul.bf16.gmra.mxu0 %v3100
        %v4412 = vpop.f32.mrf.mxu0
        %v4413 = vadd.f32 %v4324, %v4412
        %v4414 = vpop.f32.mrf.mxu0
        %v4415 = vadd.f32 %v4326, %v4414
        %4416 = vmatmul.bf16.gmra.mxu0 %v3108
        %v4417 = vpop.f32.mrf.mxu0
        %v4418 = vadd.f32 %v4329, %v4417
        %v4419 = vpop.f32.mrf.mxu0
        %v4420 = vadd.f32 %v4331, %v4419
        %4421 = vdwg.mxu0
        %4422 = vmatpush.bf16.msra.mxu0 %v3742
        %4423 = vmatpush.bf16.msra.mxu0 %v3740
        %4424 = vmatpush.bf16.msra.mxu0 %v3738
        %4425 = vmatpush.bf16.msra.mxu0 %v3736
        %4426 = vmatpush.bf16.msra.mxu0 %v3734
        %4427 = vmatpush.bf16.msra.mxu0 %v3732
        %4428 = vmatpush.bf16.msra.mxu0 %v3730
        %4429 = vmatpush.bf16.msra.mxu0 %v3728
        %4430 = vmatmul.bf16.gmra.mxu0 %v2989
        %v4431 = vpop.f32.mrf.mxu0
        %v4432 = vadd.f32 %v4343, %v4431
        %v4433 = vpop.f32.mrf.mxu0
        %v4434 = vadd.f32 %v4345, %v4433
        %4435 = vmatmul.bf16.gmra.mxu0 %v2997
        %v4436 = vpop.f32.mrf.mxu0
        %v4437 = vadd.f32 %v4348, %v4436
        %v4438 = vpop.f32.mrf.mxu0
        %v4439 = vadd.f32 %v4350, %v4438
        %4440 = vmatmul.bf16.gmra.mxu0 %v3005
        %v4441 = vpop.f32.mrf.mxu0
        %v4442 = vadd.f32 %v4353, %v4441
        %v4443 = vpop.f32.mrf.mxu0
        %v4444 = vadd.f32 %v4355, %v4443
        %4445 = vmatmul.bf16.gmra.mxu0 %v3013
        %v4446 = vpop.f32.mrf.mxu0
        %v4447 = vadd.f32 %v4358, %v4446
        %v4448 = vpop.f32.mrf.mxu0
        %v4449 = vadd.f32 %v4360, %v4448
        %4450 = vmatmul.bf16.gmra.mxu0 %v3021
        %v4451 = vpop.f32.mrf.mxu0
        %v4452 = vadd.f32 %v4363, %v4451
        %v4453 = vpop.f32.mrf.mxu0
        %v4454 = vadd.f32 %v4365, %v4453
        %4455 = vmatmul.bf16.gmra.mxu0 %v3029
        %v4456 = vpop.f32.mrf.mxu0
        %v4457 = vadd.f32 %v4368, %v4456
        %v4458 = vpop.f32.mrf.mxu0
        %v4459 = vadd.f32 %v4370, %v4458
        %4460 = vmatmul.bf16.gmra.mxu0 %v3037
        %v4461 = vpop.f32.mrf.mxu0
        %v4462 = vadd.f32 %v4373, %v4461
        %v4463 = vpop.f32.mrf.mxu0
        %v4464 = vadd.f32 %v4375, %v4463
        %4465 = vmatmul.bf16.gmra.mxu0 %v3045
        %v4466 = vpop.f32.mrf.mxu0
        %v4467 = vadd.f32 %v4378, %v4466
        %v4468 = vpop.f32.mrf.mxu0
        %v4469 = vadd.f32 %v4380, %v4468
        %4470 = vmatmul.bf16.gmra.mxu0 %v3053
        %v4471 = vpop.f32.mrf.mxu0
        %v4472 = vadd.f32 %v4383, %v4471
        %v4473 = vpop.f32.mrf.mxu0
        %v4474 = vadd.f32 %v4385, %v4473
        %4475 = vmatmul.bf16.gmra.mxu0 %v3061
        %v4476 = vpop.f32.mrf.mxu0
        %v4477 = vadd.f32 %v4388, %v4476
        %v4478 = vpop.f32.mrf.mxu0
        %v4479 = vadd.f32 %v4390, %v4478
        %4480 = vmatmul.bf16.gmra.mxu0 %v3069
        %v4481 = vpop.f32.mrf.mxu0
        %v4482 = vadd.f32 %v4393, %v4481
        %v4483 = vpop.f32.mrf.mxu0
        %v4484 = vadd.f32 %v4395, %v4483
        %4485 = vmatmul.bf16.gmra.mxu0 %v3077
        %v4486 = vpop.f32.mrf.mxu0
        %v4487 = vadd.f32 %v4398, %v4486
        %v4488 = vpop.f32.mrf.mxu0
        %v4489 = vadd.f32 %v4400, %v4488
        %4490 = vmatmul.bf16.gmra.mxu0 %v3085
        %v4491 = vpop.f32.mrf.mxu0
        %v4492 = vadd.f32 %v4403, %v4491
        %v4493 = vpop.f32.mrf.mxu0
        %v4494 = vadd.f32 %v4405, %v4493
        %4495 = vmatmul.bf16.gmra.mxu0 %v3093
        %v4496 = vpop.f32.mrf.mxu0
        %v4497 = vadd.f32 %v4408, %v4496
        %v4498 = vpop.f32.mrf.mxu0
        %v4499 = vadd.f32 %v4410, %v4498
        %4500 = vmatmul.bf16.gmra.mxu0 %v3101
        %v4501 = vpop.f32.mrf.mxu0
        %v4502 = vadd.f32 %v4413, %v4501
        %v4503 = vpop.f32.mrf.mxu0
        %v4504 = vadd.f32 %v4415, %v4503
        %4505 = vmatmul.bf16.gmra.mxu0 %v3109
        %v4506 = vpop.f32.mrf.mxu0
        %v4507 = vadd.f32 %v4418, %v4506
        %v4508 = vpop.f32.mrf.mxu0
        %v4509 = vadd.f32 %v4420, %v4508
        %4510 = vdwg.mxu0
        %4511 = vmatpush.bf16.msra.mxu0 %v3758
        %4512 = vmatpush.bf16.msra.mxu0 %v3756
        %4513 = vmatpush.bf16.msra.mxu0 %v3754
        %4514 = vmatpush.bf16.msra.mxu0 %v3752
        %4515 = vmatpush.bf16.msra.mxu0 %v3750
        %4516 = vmatpush.bf16.msra.mxu0 %v3748
        %4517 = vmatpush.bf16.msra.mxu0 %v3746
        %4518 = vmatpush.bf16.msra.mxu0 %v3744
        %4519 = vmatmul.bf16.gmra.mxu0 %v2990
        %v4520 = vpop.f32.mrf.mxu0
        %v4521 = vadd.f32 %v4432, %v4520
        %v4522 = vpop.f32.mrf.mxu0
        %v4523 = vadd.f32 %v4434, %v4522
        %4524 = vmatmul.bf16.gmra.mxu0 %v2998
        %v4525 = vpop.f32.mrf.mxu0
        %v4526 = vadd.f32 %v4437, %v4525
        %v4527 = vpop.f32.mrf.mxu0
        %v4528 = vadd.f32 %v4439, %v4527
        %4529 = vmatmul.bf16.gmra.mxu0 %v3006
        %v4530 = vpop.f32.mrf.mxu0
        %v4531 = vadd.f32 %v4442, %v4530
        %v4532 = vpop.f32.mrf.mxu0
        %v4533 = vadd.f32 %v4444, %v4532
        %4534 = vmatmul.bf16.gmra.mxu0 %v3014
        %v4535 = vpop.f32.mrf.mxu0
        %v4536 = vadd.f32 %v4447, %v4535
        %v4537 = vpop.f32.mrf.mxu0
        %v4538 = vadd.f32 %v4449, %v4537
        %4539 = vmatmul.bf16.gmra.mxu0 %v3022
        %v4540 = vpop.f32.mrf.mxu0
        %v4541 = vadd.f32 %v4452, %v4540
        %v4542 = vpop.f32.mrf.mxu0
        %v4543 = vadd.f32 %v4454, %v4542
        %4544 = vmatmul.bf16.gmra.mxu0 %v3030
        %v4545 = vpop.f32.mrf.mxu0
        %v4546 = vadd.f32 %v4457, %v4545
        %v4547 = vpop.f32.mrf.mxu0
        %v4548 = vadd.f32 %v4459, %v4547
        %4549 = vmatmul.bf16.gmra.mxu0 %v3038
        %v4550 = vpop.f32.mrf.mxu0
        %v4551 = vadd.f32 %v4462, %v4550
        %v4552 = vpop.f32.mrf.mxu0
        %v4553 = vadd.f32 %v4464, %v4552
        %4554 = vmatmul.bf16.gmra.mxu0 %v3046
        %v4555 = vpop.f32.mrf.mxu0
        %v4556 = vadd.f32 %v4467, %v4555
        %v4557 = vpop.f32.mrf.mxu0
        %v4558 = vadd.f32 %v4469, %v4557
        %4559 = vmatmul.bf16.gmra.mxu0 %v3054
        %v4560 = vpop.f32.mrf.mxu0
        %v4561 = vadd.f32 %v4472, %v4560
        %v4562 = vpop.f32.mrf.mxu0
        %v4563 = vadd.f32 %v4474, %v4562
        %4564 = vmatmul.bf16.gmra.mxu0 %v3062
        %v4565 = vpop.f32.mrf.mxu0
        %v4566 = vadd.f32 %v4477, %v4565
        %v4567 = vpop.f32.mrf.mxu0
        %v4568 = vadd.f32 %v4479, %v4567
        %4569 = vmatmul.bf16.gmra.mxu0 %v3070
        %v4570 = vpop.f32.mrf.mxu0
        %v4571 = vadd.f32 %v4482, %v4570
        %v4572 = vpop.f32.mrf.mxu0
        %v4573 = vadd.f32 %v4484, %v4572
        %4574 = vmatmul.bf16.gmra.mxu0 %v3078
        %v4575 = vpop.f32.mrf.mxu0
        %v4576 = vadd.f32 %v4487, %v4575
        %v4577 = vpop.f32.mrf.mxu0
        %v4578 = vadd.f32 %v4489, %v4577
        %4579 = vmatmul.bf16.gmra.mxu0 %v3086
        %v4580 = vpop.f32.mrf.mxu0
        %v4581 = vadd.f32 %v4492, %v4580
        %v4582 = vpop.f32.mrf.mxu0
        %v4583 = vadd.f32 %v4494, %v4582
        %4584 = vmatmul.bf16.gmra.mxu0 %v3094
        %v4585 = vpop.f32.mrf.mxu0
        %v4586 = vadd.f32 %v4497, %v4585
        %v4587 = vpop.f32.mrf.mxu0
        %v4588 = vadd.f32 %v4499, %v4587
        %4589 = vmatmul.bf16.gmra.mxu0 %v3102
        %v4590 = vpop.f32.mrf.mxu0
        %v4591 = vadd.f32 %v4502, %v4590
        %v4592 = vpop.f32.mrf.mxu0
        %v4593 = vadd.f32 %v4504, %v4592
        %4594 = vmatmul.bf16.gmra.mxu0 %v3110
        %v4595 = vpop.f32.mrf.mxu0
        %v4596 = vadd.f32 %v4507, %v4595
        %v4597 = vpop.f32.mrf.mxu0
        %v4598 = vadd.f32 %v4509, %v4597
        %4599 = vdwg.mxu0
        %4600 = vmatpush.bf16.msra.mxu0 %v3647
        %4601 = vmatpush.bf16.msra.mxu0 %v3645
        %4602 = vmatpush.bf16.msra.mxu0 %v3643
        %4603 = vmatpush.bf16.msra.mxu0 %v3641
        %4604 = vmatpush.bf16.msra.mxu0 %v3639
        %4605 = vmatpush.bf16.msra.mxu0 %v3637
        %4606 = vmatpush.bf16.msra.mxu0 %v3635
        %4607 = vmatpush.bf16.msra.mxu0 %v3633
        %4608 = vmatmul.bf16.gmra.mxu0 %v2983
        %v4609 = vpop.f32.mrf.mxu0
        %v4610 = vadd.f32 %v3247, %v4609
        %v4611 = vpop.f32.mrf.mxu0
        %v4612 = vadd.f32 %v3247, %v4611
        %4613 = vmatmul.bf16.gmra.mxu0 %v2991
        %v4614 = vpop.f32.mrf.mxu0
        %v4615 = vadd.f32 %v3247, %v4614
        %v4616 = vpop.f32.mrf.mxu0
        %v4617 = vadd.f32 %v3247, %v4616
        %4618 = vmatmul.bf16.gmra.mxu0 %v2999
        %v4619 = vpop.f32.mrf.mxu0
        %v4620 = vadd.f32 %v3247, %v4619
        %v4621 = vpop.f32.mrf.mxu0
        %v4622 = vadd.f32 %v3247, %v4621
        %4623 = vmatmul.bf16.gmra.mxu0 %v3007
        %v4624 = vpop.f32.mrf.mxu0
        %v4625 = vadd.f32 %v3247, %v4624
        %v4626 = vpop.f32.mrf.mxu0
        %v4627 = vadd.f32 %v3247, %v4626
        %4628 = vmatmul.bf16.gmra.mxu0 %v3015
        %v4629 = vpop.f32.mrf.mxu0
        %v4630 = vadd.f32 %v3247, %v4629
        %v4631 = vpop.f32.mrf.mxu0
        %v4632 = vadd.f32 %v3247, %v4631
        %4633 = vmatmul.bf16.gmra.mxu0 %v3023
        %v4634 = vpop.f32.mrf.mxu0
        %v4635 = vadd.f32 %v3247, %v4634
        %v4636 = vpop.f32.mrf.mxu0
        %v4637 = vadd.f32 %v3247, %v4636
        %4638 = vmatmul.bf16.gmra.mxu0 %v3031
        %v4639 = vpop.f32.mrf.mxu0
        %v4640 = vadd.f32 %v3247, %v4639
        %v4641 = vpop.f32.mrf.mxu0
        %v4642 = vadd.f32 %v3247, %v4641
        %4643 = vmatmul.bf16.gmra.mxu0 %v3039
        %v4644 = vpop.f32.mrf.mxu0
        %v4645 = vadd.f32 %v3247, %v4644
        %v4646 = vpop.f32.mrf.mxu0
        %v4647 = vadd.f32 %v3247, %v4646
        %4648 = vmatmul.bf16.gmra.mxu0 %v3047
        %v4649 = vpop.f32.mrf.mxu0
        %v4650 = vadd.f32 %v3247, %v4649
        %v4651 = vpop.f32.mrf.mxu0
        %v4652 = vadd.f32 %v3247, %v4651
        %4653 = vmatmul.bf16.gmra.mxu0 %v3055
        %v4654 = vpop.f32.mrf.mxu0
        %v4655 = vadd.f32 %v3247, %v4654
        %v4656 = vpop.f32.mrf.mxu0
        %v4657 = vadd.f32 %v3247, %v4656
        %4658 = vmatmul.bf16.gmra.mxu0 %v3063
        %v4659 = vpop.f32.mrf.mxu0
        %v4660 = vadd.f32 %v3247, %v4659
        %v4661 = vpop.f32.mrf.mxu0
        %v4662 = vadd.f32 %v3247, %v4661
        %4663 = vmatmul.bf16.gmra.mxu0 %v3071
        %v4664 = vpop.f32.mrf.mxu0
        %v4665 = vadd.f32 %v3247, %v4664
        %v4666 = vpop.f32.mrf.mxu0
        %v4667 = vadd.f32 %v3247, %v4666
        %4668 = vmatmul.bf16.gmra.mxu0 %v3079
        %v4669 = vpop.f32.mrf.mxu0
        %v4670 = vadd.f32 %v3247, %v4669
        %v4671 = vpop.f32.mrf.mxu0
        %v4672 = vadd.f32 %v3247, %v4671
        %4673 = vmatmul.bf16.gmra.mxu0 %v3087
        %v4674 = vpop.f32.mrf.mxu0
        %v4675 = vadd.f32 %v3247, %v4674
        %v4676 = vpop.f32.mrf.mxu0
        %v4677 = vadd.f32 %v3247, %v4676
        %4678 = vmatmul.bf16.gmra.mxu0 %v3095
        %v4679 = vpop.f32.mrf.mxu0
        %v4680 = vadd.f32 %v3247, %v4679
        %v4681 = vpop.f32.mrf.mxu0
        %v4682 = vadd.f32 %v3247, %v4681
        %4683 = vmatmul.bf16.gmra.mxu0 %v3103
        %v4684 = vpop.f32.mrf.mxu0
        %v4685 = vadd.f32 %v3247, %v4684
        %v4686 = vpop.f32.mrf.mxu0
        %v4687 = vadd.f32 %v3247, %v4686
        %4688 = vdwg.mxu0
        %4689 = vmatpush.bf16.msra.mxu0 %v3663
        %4690 = vmatpush.bf16.msra.mxu0 %v3661
        %4691 = vmatpush.bf16.msra.mxu0 %v3659
        %4692 = vmatpush.bf16.msra.mxu0 %v3657
        %4693 = vmatpush.bf16.msra.mxu0 %v3655
        %4694 = vmatpush.bf16.msra.mxu0 %v3653
        %4695 = vmatpush.bf16.msra.mxu0 %v3651
        %4696 = vmatpush.bf16.msra.mxu0 %v3649
        %4697 = vmatmul.bf16.gmra.mxu0 %v2984
        %v4698 = vpop.f32.mrf.mxu0
        %v4699 = vadd.f32 %v4610, %v4698
        %v4700 = vpop.f32.mrf.mxu0
        %v4701 = vadd.f32 %v4612, %v4700
        %4702 = vmatmul.bf16.gmra.mxu0 %v2992
        %v4703 = vpop.f32.mrf.mxu0
        %v4704 = vadd.f32 %v4615, %v4703
        %v4705 = vpop.f32.mrf.mxu0
        %v4706 = vadd.f32 %v4617, %v4705
        %4707 = vmatmul.bf16.gmra.mxu0 %v3000
        %v4708 = vpop.f32.mrf.mxu0
        %v4709 = vadd.f32 %v4620, %v4708
        %v4710 = vpop.f32.mrf.mxu0
        %v4711 = vadd.f32 %v4622, %v4710
        %4712 = vmatmul.bf16.gmra.mxu0 %v3008
        %v4713 = vpop.f32.mrf.mxu0
        %v4714 = vadd.f32 %v4625, %v4713
        %v4715 = vpop.f32.mrf.mxu0
        %v4716 = vadd.f32 %v4627, %v4715
        %4717 = vmatmul.bf16.gmra.mxu0 %v3016
        %v4718 = vpop.f32.mrf.mxu0
        %v4719 = vadd.f32 %v4630, %v4718
        %v4720 = vpop.f32.mrf.mxu0
        %v4721 = vadd.f32 %v4632, %v4720
        %4722 = vmatmul.bf16.gmra.mxu0 %v3024
        %v4723 = vpop.f32.mrf.mxu0
        %v4724 = vadd.f32 %v4635, %v4723
        %v4725 = vpop.f32.mrf.mxu0
        %v4726 = vadd.f32 %v4637, %v4725
        %4727 = vmatmul.bf16.gmra.mxu0 %v3032
        %v4728 = vpop.f32.mrf.mxu0
        %v4729 = vadd.f32 %v4640, %v4728
        %v4730 = vpop.f32.mrf.mxu0
        %v4731 = vadd.f32 %v4642, %v4730
        %4732 = vmatmul.bf16.gmra.mxu0 %v3040
        %v4733 = vpop.f32.mrf.mxu0
        %v4734 = vadd.f32 %v4645, %v4733
        %v4735 = vpop.f32.mrf.mxu0
        %v4736 = vadd.f32 %v4647, %v4735
        %4737 = vmatmul.bf16.gmra.mxu0 %v3048
        %v4738 = vpop.f32.mrf.mxu0
        %v4739 = vadd.f32 %v4650, %v4738
        %v4740 = vpop.f32.mrf.mxu0
        %v4741 = vadd.f32 %v4652, %v4740
        %4742 = vmatmul.bf16.gmra.mxu0 %v3056
        %v4743 = vpop.f32.mrf.mxu0
        %v4744 = vadd.f32 %v4655, %v4743
        %v4745 = vpop.f32.mrf.mxu0
        %v4746 = vadd.f32 %v4657, %v4745
        %4747 = vmatmul.bf16.gmra.mxu0 %v3064
        %v4748 = vpop.f32.mrf.mxu0
        %v4749 = vadd.f32 %v4660, %v4748
        %v4750 = vpop.f32.mrf.mxu0
        %v4751 = vadd.f32 %v4662, %v4750
        %4752 = vmatmul.bf16.gmra.mxu0 %v3072
        %v4753 = vpop.f32.mrf.mxu0
        %v4754 = vadd.f32 %v4665, %v4753
        %v4755 = vpop.f32.mrf.mxu0
        %v4756 = vadd.f32 %v4667, %v4755
        %4757 = vmatmul.bf16.gmra.mxu0 %v3080
        %v4758 = vpop.f32.mrf.mxu0
        %v4759 = vadd.f32 %v4670, %v4758
        %v4760 = vpop.f32.mrf.mxu0
        %v4761 = vadd.f32 %v4672, %v4760
        %4762 = vmatmul.bf16.gmra.mxu0 %v3088
        %v4763 = vpop.f32.mrf.mxu0
        %v4764 = vadd.f32 %v4675, %v4763
        %v4765 = vpop.f32.mrf.mxu0
        %v4766 = vadd.f32 %v4677, %v4765
        %4767 = vmatmul.bf16.gmra.mxu0 %v3096
        %v4768 = vpop.f32.mrf.mxu0
        %v4769 = vadd.f32 %v4680, %v4768
        %v4770 = vpop.f32.mrf.mxu0
        %v4771 = vadd.f32 %v4682, %v4770
        %4772 = vmatmul.bf16.gmra.mxu0 %v3104
        %v4773 = vpop.f32.mrf.mxu0
        %v4774 = vadd.f32 %v4685, %v4773
        %v4775 = vpop.f32.mrf.mxu0
        %v4776 = vadd.f32 %v4687, %v4775
        %4777 = vdwg.mxu0
        %4778 = vmatpush.bf16.msra.mxu0 %v3679
        %4779 = vmatpush.bf16.msra.mxu0 %v3677
        %4780 = vmatpush.bf16.msra.mxu0 %v3675
        %4781 = vmatpush.bf16.msra.mxu0 %v3673
        %4782 = vmatpush.bf16.msra.mxu0 %v3671
        %4783 = vmatpush.bf16.msra.mxu0 %v3669
        %4784 = vmatpush.bf16.msra.mxu0 %v3667
        %4785 = vmatpush.bf16.msra.mxu0 %v3665
        %4786 = vmatmul.bf16.gmra.mxu0 %v2985
        %v4787 = vpop.f32.mrf.mxu0
        %v4788 = vadd.f32 %v4699, %v4787
        %v4789 = vpop.f32.mrf.mxu0
        %v4790 = vadd.f32 %v4701, %v4789
        %4791 = vmatmul.bf16.gmra.mxu0 %v2993
        %v4792 = vpop.f32.mrf.mxu0
        %v4793 = vadd.f32 %v4704, %v4792
        %v4794 = vpop.f32.mrf.mxu0
        %v4795 = vadd.f32 %v4706, %v4794
        %4796 = vmatmul.bf16.gmra.mxu0 %v3001
        %v4797 = vpop.f32.mrf.mxu0
        %v4798 = vadd.f32 %v4709, %v4797
        %v4799 = vpop.f32.mrf.mxu0
        %v4800 = vadd.f32 %v4711, %v4799
        %4801 = vmatmul.bf16.gmra.mxu0 %v3009
        %v4802 = vpop.f32.mrf.mxu0
        %v4803 = vadd.f32 %v4714, %v4802
        %v4804 = vpop.f32.mrf.mxu0
        %v4805 = vadd.f32 %v4716, %v4804
        %4806 = vmatmul.bf16.gmra.mxu0 %v3017
        %v4807 = vpop.f32.mrf.mxu0
        %v4808 = vadd.f32 %v4719, %v4807
        %v4809 = vpop.f32.mrf.mxu0
        %v4810 = vadd.f32 %v4721, %v4809
        %4811 = vmatmul.bf16.gmra.mxu0 %v3025
        %v4812 = vpop.f32.mrf.mxu0
        %v4813 = vadd.f32 %v4724, %v4812
        %v4814 = vpop.f32.mrf.mxu0
        %v4815 = vadd.f32 %v4726, %v4814
        %4816 = vmatmul.bf16.gmra.mxu0 %v3033
        %v4817 = vpop.f32.mrf.mxu0
        %v4818 = vadd.f32 %v4729, %v4817
        %v4819 = vpop.f32.mrf.mxu0
        %v4820 = vadd.f32 %v4731, %v4819
        %4821 = vmatmul.bf16.gmra.mxu0 %v3041
        %v4822 = vpop.f32.mrf.mxu0
        %v4823 = vadd.f32 %v4734, %v4822
        %v4824 = vpop.f32.mrf.mxu0
        %v4825 = vadd.f32 %v4736, %v4824
        %4826 = vmatmul.bf16.gmra.mxu0 %v3049
        %v4827 = vpop.f32.mrf.mxu0
        %v4828 = vadd.f32 %v4739, %v4827
        %v4829 = vpop.f32.mrf.mxu0
        %v4830 = vadd.f32 %v4741, %v4829
        %4831 = vmatmul.bf16.gmra.mxu0 %v3057
        %v4832 = vpop.f32.mrf.mxu0
        %v4833 = vadd.f32 %v4744, %v4832
        %v4834 = vpop.f32.mrf.mxu0
        %v4835 = vadd.f32 %v4746, %v4834
        %4836 = vmatmul.bf16.gmra.mxu0 %v3065
        %v4837 = vpop.f32.mrf.mxu0
        %v4838 = vadd.f32 %v4749, %v4837
        %v4839 = vpop.f32.mrf.mxu0
        %v4840 = vadd.f32 %v4751, %v4839
        %4841 = vmatmul.bf16.gmra.mxu0 %v3073
        %v4842 = vpop.f32.mrf.mxu0
        %v4843 = vadd.f32 %v4754, %v4842
        %v4844 = vpop.f32.mrf.mxu0
        %v4845 = vadd.f32 %v4756, %v4844
        %4846 = vmatmul.bf16.gmra.mxu0 %v3081
        %v4847 = vpop.f32.mrf.mxu0
        %v4848 = vadd.f32 %v4759, %v4847
        %v4849 = vpop.f32.mrf.mxu0
        %v4850 = vadd.f32 %v4761, %v4849
        %4851 = vmatmul.bf16.gmra.mxu0 %v3089
        %v4852 = vpop.f32.mrf.mxu0
        %v4853 = vadd.f32 %v4764, %v4852
        %v4854 = vpop.f32.mrf.mxu0
        %v4855 = vadd.f32 %v4766, %v4854
        %4856 = vmatmul.bf16.gmra.mxu0 %v3097
        %v4857 = vpop.f32.mrf.mxu0
        %v4858 = vadd.f32 %v4769, %v4857
        %v4859 = vpop.f32.mrf.mxu0
        %v4860 = vadd.f32 %v4771, %v4859
        %4861 = vmatmul.bf16.gmra.mxu0 %v3105
        %v4862 = vpop.f32.mrf.mxu0
        %v4863 = vadd.f32 %v4774, %v4862
        %v4864 = vpop.f32.mrf.mxu0
        %v4865 = vadd.f32 %v4776, %v4864
        %4866 = vdwg.mxu0
        %4867 = vmatpush.bf16.msra.mxu0 %v3695
        %4868 = vmatpush.bf16.msra.mxu0 %v3693
        %4869 = vmatpush.bf16.msra.mxu0 %v3691
        %4870 = vmatpush.bf16.msra.mxu0 %v3689
        %4871 = vmatpush.bf16.msra.mxu0 %v3687
        %4872 = vmatpush.bf16.msra.mxu0 %v3685
        %4873 = vmatpush.bf16.msra.mxu0 %v3683
        %4874 = vmatpush.bf16.msra.mxu0 %v3681
        %4875 = vmatmul.bf16.gmra.mxu0 %v2986
        %v4876 = vpop.f32.mrf.mxu0
        %v4877 = vadd.f32 %v4788, %v4876
        %v4878 = vpop.f32.mrf.mxu0
        %v4879 = vadd.f32 %v4790, %v4878
        %4880 = vmatmul.bf16.gmra.mxu0 %v2994
        %v4881 = vpop.f32.mrf.mxu0
        %v4882 = vadd.f32 %v4793, %v4881
        %v4883 = vpop.f32.mrf.mxu0
        %v4884 = vadd.f32 %v4795, %v4883
        %4885 = vmatmul.bf16.gmra.mxu0 %v3002
        %v4886 = vpop.f32.mrf.mxu0
        %v4887 = vadd.f32 %v4798, %v4886
        %v4888 = vpop.f32.mrf.mxu0
        %v4889 = vadd.f32 %v4800, %v4888
        %4890 = vmatmul.bf16.gmra.mxu0 %v3010
        %v4891 = vpop.f32.mrf.mxu0
        %v4892 = vadd.f32 %v4803, %v4891
        %v4893 = vpop.f32.mrf.mxu0
        %v4894 = vadd.f32 %v4805, %v4893
        %4895 = vmatmul.bf16.gmra.mxu0 %v3018
        %v4896 = vpop.f32.mrf.mxu0
        %v4897 = vadd.f32 %v4808, %v4896
        %v4898 = vpop.f32.mrf.mxu0
        %v4899 = vadd.f32 %v4810, %v4898
        %4900 = vmatmul.bf16.gmra.mxu0 %v3026
        %v4901 = vpop.f32.mrf.mxu0
        %v4902 = vadd.f32 %v4813, %v4901
        %v4903 = vpop.f32.mrf.mxu0
        %v4904 = vadd.f32 %v4815, %v4903
        %4905 = vmatmul.bf16.gmra.mxu0 %v3034
        %v4906 = vpop.f32.mrf.mxu0
        %v4907 = vadd.f32 %v4818, %v4906
        %v4908 = vpop.f32.mrf.mxu0
        %v4909 = vadd.f32 %v4820, %v4908
        %4910 = vmatmul.bf16.gmra.mxu0 %v3042
        %v4911 = vpop.f32.mrf.mxu0
        %v4912 = vadd.f32 %v4823, %v4911
        %v4913 = vpop.f32.mrf.mxu0
        %v4914 = vadd.f32 %v4825, %v4913
        %4915 = vmatmul.bf16.gmra.mxu0 %v3050
        %v4916 = vpop.f32.mrf.mxu0
        %v4917 = vadd.f32 %v4828, %v4916
        %v4918 = vpop.f32.mrf.mxu0
        %v4919 = vadd.f32 %v4830, %v4918
        %4920 = vmatmul.bf16.gmra.mxu0 %v3058
        %v4921 = vpop.f32.mrf.mxu0
        %v4922 = vadd.f32 %v4833, %v4921
        %v4923 = vpop.f32.mrf.mxu0
        %v4924 = vadd.f32 %v4835, %v4923
        %4925 = vmatmul.bf16.gmra.mxu0 %v3066
        %v4926 = vpop.f32.mrf.mxu0
        %v4927 = vadd.f32 %v4838, %v4926
        %v4928 = vpop.f32.mrf.mxu0
        %v4929 = vadd.f32 %v4840, %v4928
        %4930 = vmatmul.bf16.gmra.mxu0 %v3074
        %v4931 = vpop.f32.mrf.mxu0
        %v4932 = vadd.f32 %v4843, %v4931
        %v4933 = vpop.f32.mrf.mxu0
        %v4934 = vadd.f32 %v4845, %v4933
        %4935 = vmatmul.bf16.gmra.mxu0 %v3082
        %v4936 = vpop.f32.mrf.mxu0
        %v4937 = vadd.f32 %v4848, %v4936
        %v4938 = vpop.f32.mrf.mxu0
        %v4939 = vadd.f32 %v4850, %v4938
        %4940 = vmatmul.bf16.gmra.mxu0 %v3090
        %v4941 = vpop.f32.mrf.mxu0
        %v4942 = vadd.f32 %v4853, %v4941
        %v4943 = vpop.f32.mrf.mxu0
        %v4944 = vadd.f32 %v4855, %v4943
        %4945 = vmatmul.bf16.gmra.mxu0 %v3098
        %v4946 = vpop.f32.mrf.mxu0
        %v4947 = vadd.f32 %v4858, %v4946
        %v4948 = vpop.f32.mrf.mxu0
        %v4949 = vadd.f32 %v4860, %v4948
        %4950 = vmatmul.bf16.gmra.mxu0 %v3106
        %v4951 = vpop.f32.mrf.mxu0
        %v4952 = vadd.f32 %v4863, %v4951
        %v4953 = vpop.f32.mrf.mxu0
        %v4954 = vadd.f32 %v4865, %v4953
        %4955 = vdwg.mxu0
        %4956 = vmatpush.bf16.msra.mxu0 %v3711
        %4957 = vmatpush.bf16.msra.mxu0 %v3709
        %4958 = vmatpush.bf16.msra.mxu0 %v3707
        %4959 = vmatpush.bf16.msra.mxu0 %v3705
        %4960 = vmatpush.bf16.msra.mxu0 %v3703
        %4961 = vmatpush.bf16.msra.mxu0 %v3701
        %4962 = vmatpush.bf16.msra.mxu0 %v3699
        %4963 = vmatpush.bf16.msra.mxu0 %v3697
        %4964 = vmatmul.bf16.gmra.mxu0 %v2987
        %v4965 = vpop.f32.mrf.mxu0
        %v4966 = vadd.f32 %v4877, %v4965
        %v4967 = vpop.f32.mrf.mxu0
        %v4968 = vadd.f32 %v4879, %v4967
        %4969 = vmatmul.bf16.gmra.mxu0 %v2995
        %v4970 = vpop.f32.mrf.mxu0
        %v4971 = vadd.f32 %v4882, %v4970
        %v4972 = vpop.f32.mrf.mxu0
        %v4973 = vadd.f32 %v4884, %v4972
        %4974 = vmatmul.bf16.gmra.mxu0 %v3003
        %v4975 = vpop.f32.mrf.mxu0
        %v4976 = vadd.f32 %v4887, %v4975
        %v4977 = vpop.f32.mrf.mxu0
        %v4978 = vadd.f32 %v4889, %v4977
        %4979 = vmatmul.bf16.gmra.mxu0 %v3011
        %v4980 = vpop.f32.mrf.mxu0
        %v4981 = vadd.f32 %v4892, %v4980
        %v4982 = vpop.f32.mrf.mxu0
        %v4983 = vadd.f32 %v4894, %v4982
        %4984 = vmatmul.bf16.gmra.mxu0 %v3019
        %v4985 = vpop.f32.mrf.mxu0
        %v4986 = vadd.f32 %v4897, %v4985
        %v4987 = vpop.f32.mrf.mxu0
        %v4988 = vadd.f32 %v4899, %v4987
        %4989 = vmatmul.bf16.gmra.mxu0 %v3027
        %v4990 = vpop.f32.mrf.mxu0
        %v4991 = vadd.f32 %v4902, %v4990
        %v4992 = vpop.f32.mrf.mxu0
        %v4993 = vadd.f32 %v4904, %v4992
        %4994 = vmatmul.bf16.gmra.mxu0 %v3035
        %v4995 = vpop.f32.mrf.mxu0
        %v4996 = vadd.f32 %v4907, %v4995
        %v4997 = vpop.f32.mrf.mxu0
        %v4998 = vadd.f32 %v4909, %v4997
        %4999 = vmatmul.bf16.gmra.mxu0 %v3043
        %v5000 = vpop.f32.mrf.mxu0
        %v5001 = vadd.f32 %v4912, %v5000
        %v5002 = vpop.f32.mrf.mxu0
        %v5003 = vadd.f32 %v4914, %v5002
        %5004 = vmatmul.bf16.gmra.mxu0 %v3051
        %v5005 = vpop.f32.mrf.mxu0
        %v5006 = vadd.f32 %v4917, %v5005
        %v5007 = vpop.f32.mrf.mxu0
        %v5008 = vadd.f32 %v4919, %v5007
        %5009 = vmatmul.bf16.gmra.mxu0 %v3059
        %v5010 = vpop.f32.mrf.mxu0
        %v5011 = vadd.f32 %v4922, %v5010
        %v5012 = vpop.f32.mrf.mxu0
        %v5013 = vadd.f32 %v4924, %v5012
        %5014 = vmatmul.bf16.gmra.mxu0 %v3067
        %v5015 = vpop.f32.mrf.mxu0
        %v5016 = vadd.f32 %v4927, %v5015
        %v5017 = vpop.f32.mrf.mxu0
        %v5018 = vadd.f32 %v4929, %v5017
        %5019 = vmatmul.bf16.gmra.mxu0 %v3075
        %v5020 = vpop.f32.mrf.mxu0
        %v5021 = vadd.f32 %v4932, %v5020
        %v5022 = vpop.f32.mrf.mxu0
        %v5023 = vadd.f32 %v4934, %v5022
        %5024 = vmatmul.bf16.gmra.mxu0 %v3083
        %v5025 = vpop.f32.mrf.mxu0
        %v5026 = vadd.f32 %v4937, %v5025
        %v5027 = vpop.f32.mrf.mxu0
        %v5028 = vadd.f32 %v4939, %v5027
        %5029 = vmatmul.bf16.gmra.mxu0 %v3091
        %v5030 = vpop.f32.mrf.mxu0
        %v5031 = vadd.f32 %v4942, %v5030
        %v5032 = vpop.f32.mrf.mxu0
        %v5033 = vadd.f32 %v4944, %v5032
        %5034 = vmatmul.bf16.gmra.mxu0 %v3099
        %v5035 = vpop.f32.mrf.mxu0
        %v5036 = vadd.f32 %v4947, %v5035
        %v5037 = vpop.f32.mrf.mxu0
        %v5038 = vadd.f32 %v4949, %v5037
        %5039 = vmatmul.bf16.gmra.mxu0 %v3107
        %v5040 = vpop.f32.mrf.mxu0
        %v5041 = vadd.f32 %v4952, %v5040
        %v5042 = vpop.f32.mrf.mxu0
        %v5043 = vadd.f32 %v4954, %v5042
        %5044 = vdwg.mxu0
        %5045 = vmatpush.bf16.msra.mxu0 %v3727
        %5046 = vmatpush.bf16.msra.mxu0 %v3725
        %5047 = vmatpush.bf16.msra.mxu0 %v3723
        %5048 = vmatpush.bf16.msra.mxu0 %v3721
        %5049 = vmatpush.bf16.msra.mxu0 %v3719
        %5050 = vmatpush.bf16.msra.mxu0 %v3717
        %5051 = vmatpush.bf16.msra.mxu0 %v3715
        %5052 = vmatpush.bf16.msra.mxu0 %v3713
        %5053 = vmatmul.bf16.gmra.mxu0 %v2988
        %v5054 = vpop.f32.mrf.mxu0
        %v5055 = vadd.f32 %v4966, %v5054
        %v5056 = vpop.f32.mrf.mxu0
        %v5057 = vadd.f32 %v4968, %v5056
        %5058 = vmatmul.bf16.gmra.mxu0 %v2996
        %v5059 = vpop.f32.mrf.mxu0
        %v5060 = vadd.f32 %v4971, %v5059
        %v5061 = vpop.f32.mrf.mxu0
        %v5062 = vadd.f32 %v4973, %v5061
        %5063 = vmatmul.bf16.gmra.mxu0 %v3004
        %v5064 = vpop.f32.mrf.mxu0
        %v5065 = vadd.f32 %v4976, %v5064
        %v5066 = vpop.f32.mrf.mxu0
        %v5067 = vadd.f32 %v4978, %v5066
        %5068 = vmatmul.bf16.gmra.mxu0 %v3012
        %v5069 = vpop.f32.mrf.mxu0
        %v5070 = vadd.f32 %v4981, %v5069
        %v5071 = vpop.f32.mrf.mxu0
        %v5072 = vadd.f32 %v4983, %v5071
        %5073 = vmatmul.bf16.gmra.mxu0 %v3020
        %v5074 = vpop.f32.mrf.mxu0
        %v5075 = vadd.f32 %v4986, %v5074
        %v5076 = vpop.f32.mrf.mxu0
        %v5077 = vadd.f32 %v4988, %v5076
        %5078 = vmatmul.bf16.gmra.mxu0 %v3028
        %v5079 = vpop.f32.mrf.mxu0
        %v5080 = vadd.f32 %v4991, %v5079
        %v5081 = vpop.f32.mrf.mxu0
        %v5082 = vadd.f32 %v4993, %v5081
        %5083 = vmatmul.bf16.gmra.mxu0 %v3036
        %v5084 = vpop.f32.mrf.mxu0
        %v5085 = vadd.f32 %v4996, %v5084
        %v5086 = vpop.f32.mrf.mxu0
        %v5087 = vadd.f32 %v4998, %v5086
        %5088 = vmatmul.bf16.gmra.mxu0 %v3044
        %v5089 = vpop.f32.mrf.mxu0
        %v5090 = vadd.f32 %v5001, %v5089
        %v5091 = vpop.f32.mrf.mxu0
        %v5092 = vadd.f32 %v5003, %v5091
        %5093 = vmatmul.bf16.gmra.mxu0 %v3052
        %v5094 = vpop.f32.mrf.mxu0
        %v5095 = vadd.f32 %v5006, %v5094
        %v5096 = vpop.f32.mrf.mxu0
        %v5097 = vadd.f32 %v5008, %v5096
        %5098 = vmatmul.bf16.gmra.mxu0 %v3060
        %v5099 = vpop.f32.mrf.mxu0
        %v5100 = vadd.f32 %v5011, %v5099
        %v5101 = vpop.f32.mrf.mxu0
        %v5102 = vadd.f32 %v5013, %v5101
        %5103 = vmatmul.bf16.gmra.mxu0 %v3068
        %v5104 = vpop.f32.mrf.mxu0
        %v5105 = vadd.f32 %v5016, %v5104
        %v5106 = vpop.f32.mrf.mxu0
        %v5107 = vadd.f32 %v5018, %v5106
        %5108 = vmatmul.bf16.gmra.mxu0 %v3076
        %v5109 = vpop.f32.mrf.mxu0
        %v5110 = vadd.f32 %v5021, %v5109
        %v5111 = vpop.f32.mrf.mxu0
        %v5112 = vadd.f32 %v5023, %v5111
        %5113 = vmatmul.bf16.gmra.mxu0 %v3084
        %v5114 = vpop.f32.mrf.mxu0
        %v5115 = vadd.f32 %v5026, %v5114
        %v5116 = vpop.f32.mrf.mxu0
        %v5117 = vadd.f32 %v5028, %v5116
        %5118 = vmatmul.bf16.gmra.mxu0 %v3092
        %v5119 = vpop.f32.mrf.mxu0
        %v5120 = vadd.f32 %v5031, %v5119
        %v5121 = vpop.f32.mrf.mxu0
        %v5122 = vadd.f32 %v5033, %v5121
        %5123 = vmatmul.bf16.gmra.mxu0 %v3100
        %v5124 = vpop.f32.mrf.mxu0
        %v5125 = vadd.f32 %v5036, %v5124
        %v5126 = vpop.f32.mrf.mxu0
        %v5127 = vadd.f32 %v5038, %v5126
        %5128 = vmatmul.bf16.gmra.mxu0 %v3108
        %v5129 = vpop.f32.mrf.mxu0
        %v5130 = vadd.f32 %v5041, %v5129
        %v5131 = vpop.f32.mrf.mxu0
        %v5132 = vadd.f32 %v5043, %v5131
        %5133 = vdwg.mxu0
        %5134 = vmatpush.bf16.msra.mxu0 %v3743
        %5135 = vmatpush.bf16.msra.mxu0 %v3741
        %5136 = vmatpush.bf16.msra.mxu0 %v3739
        %5137 = vmatpush.bf16.msra.mxu0 %v3737
        %5138 = vmatpush.bf16.msra.mxu0 %v3735
        %5139 = vmatpush.bf16.msra.mxu0 %v3733
        %5140 = vmatpush.bf16.msra.mxu0 %v3731
        %5141 = vmatpush.bf16.msra.mxu0 %v3729
        %5142 = vmatmul.bf16.gmra.mxu0 %v2989
        %v5143 = vpop.f32.mrf.mxu0
        %v5144 = vadd.f32 %v5055, %v5143
        %v5145 = vpop.f32.mrf.mxu0
        %v5146 = vadd.f32 %v5057, %v5145
        %5147 = vmatmul.bf16.gmra.mxu0 %v2997
        %v5148 = vpop.f32.mrf.mxu0
        %v5149 = vadd.f32 %v5060, %v5148
        %v5150 = vpop.f32.mrf.mxu0
        %v5151 = vadd.f32 %v5062, %v5150
        %5152 = vmatmul.bf16.gmra.mxu0 %v3005
        %v5153 = vpop.f32.mrf.mxu0
        %v5154 = vadd.f32 %v5065, %v5153
        %v5155 = vpop.f32.mrf.mxu0
        %v5156 = vadd.f32 %v5067, %v5155
        %5157 = vmatmul.bf16.gmra.mxu0 %v3013
        %v5158 = vpop.f32.mrf.mxu0
        %v5159 = vadd.f32 %v5070, %v5158
        %v5160 = vpop.f32.mrf.mxu0
        %v5161 = vadd.f32 %v5072, %v5160
        %5162 = vmatmul.bf16.gmra.mxu0 %v3021
        %v5163 = vpop.f32.mrf.mxu0
        %v5164 = vadd.f32 %v5075, %v5163
        %v5165 = vpop.f32.mrf.mxu0
        %v5166 = vadd.f32 %v5077, %v5165
        %5167 = vmatmul.bf16.gmra.mxu0 %v3029
        %v5168 = vpop.f32.mrf.mxu0
        %v5169 = vadd.f32 %v5080, %v5168
        %v5170 = vpop.f32.mrf.mxu0
        %v5171 = vadd.f32 %v5082, %v5170
        %5172 = vmatmul.bf16.gmra.mxu0 %v3037
        %v5173 = vpop.f32.mrf.mxu0
        %v5174 = vadd.f32 %v5085, %v5173
        %v5175 = vpop.f32.mrf.mxu0
        %v5176 = vadd.f32 %v5087, %v5175
        %5177 = vmatmul.bf16.gmra.mxu0 %v3045
        %v5178 = vpop.f32.mrf.mxu0
        %v5179 = vadd.f32 %v5090, %v5178
        %v5180 = vpop.f32.mrf.mxu0
        %v5181 = vadd.f32 %v5092, %v5180
        %5182 = vmatmul.bf16.gmra.mxu0 %v3053
        %v5183 = vpop.f32.mrf.mxu0
        %v5184 = vadd.f32 %v5095, %v5183
        %v5185 = vpop.f32.mrf.mxu0
        %v5186 = vadd.f32 %v5097, %v5185
        %5187 = vmatmul.bf16.gmra.mxu0 %v3061
        %v5188 = vpop.f32.mrf.mxu0
        %v5189 = vadd.f32 %v5100, %v5188
        %v5190 = vpop.f32.mrf.mxu0
        %v5191 = vadd.f32 %v5102, %v5190
        %5192 = vmatmul.bf16.gmra.mxu0 %v3069
        %v5193 = vpop.f32.mrf.mxu0
        %v5194 = vadd.f32 %v5105, %v5193
        %v5195 = vpop.f32.mrf.mxu0
        %v5196 = vadd.f32 %v5107, %v5195
        %5197 = vmatmul.bf16.gmra.mxu0 %v3077
        %v5198 = vpop.f32.mrf.mxu0
        %v5199 = vadd.f32 %v5110, %v5198
        %v5200 = vpop.f32.mrf.mxu0
        %v5201 = vadd.f32 %v5112, %v5200
        %5202 = vmatmul.bf16.gmra.mxu0 %v3085
        %v5203 = vpop.f32.mrf.mxu0
        %v5204 = vadd.f32 %v5115, %v5203
        %v5205 = vpop.f32.mrf.mxu0
        %v5206 = vadd.f32 %v5117, %v5205
        %5207 = vmatmul.bf16.gmra.mxu0 %v3093
        %v5208 = vpop.f32.mrf.mxu0
        %v5209 = vadd.f32 %v5120, %v5208
        %v5210 = vpop.f32.mrf.mxu0
        %v5211 = vadd.f32 %v5122, %v5210
        %5212 = vmatmul.bf16.gmra.mxu0 %v3101
        %v5213 = vpop.f32.mrf.mxu0
        %v5214 = vadd.f32 %v5125, %v5213
        %v5215 = vpop.f32.mrf.mxu0
        %v5216 = vadd.f32 %v5127, %v5215
        %5217 = vmatmul.bf16.gmra.mxu0 %v3109
        %v5218 = vpop.f32.mrf.mxu0
        %v5219 = vadd.f32 %v5130, %v5218
        %v5220 = vpop.f32.mrf.mxu0
        %v5221 = vadd.f32 %v5132, %v5220
        %5222 = vdwg.mxu0
        %5223 = vmatpush.bf16.msra.mxu0 %v3759
        %5224 = vmatpush.bf16.msra.mxu0 %v3757
        %5225 = vmatpush.bf16.msra.mxu0 %v3755
        %5226 = vmatpush.bf16.msra.mxu0 %v3753
        %5227 = vmatpush.bf16.msra.mxu0 %v3751
        %5228 = vmatpush.bf16.msra.mxu0 %v3749
        %5229 = vmatpush.bf16.msra.mxu0 %v3747
        %5230 = vmatpush.bf16.msra.mxu0 %v3745
        %5231 = vmatmul.bf16.gmra.mxu0 %v2990
        %v5232 = vpop.f32.mrf.mxu0
        %v5233 = vadd.f32 %v5144, %v5232
        %v5234 = vpop.f32.mrf.mxu0
        %v5235 = vadd.f32 %v5146, %v5234
        %5236 = vmatmul.bf16.gmra.mxu0 %v2998
        %v5237 = vpop.f32.mrf.mxu0
        %v5238 = vadd.f32 %v5149, %v5237
        %v5239 = vpop.f32.mrf.mxu0
        %v5240 = vadd.f32 %v5151, %v5239
        %5241 = vmatmul.bf16.gmra.mxu0 %v3006
        %v5242 = vpop.f32.mrf.mxu0
        %v5243 = vadd.f32 %v5154, %v5242
        %v5244 = vpop.f32.mrf.mxu0
        %v5245 = vadd.f32 %v5156, %v5244
        %5246 = vmatmul.bf16.gmra.mxu0 %v3014
        %v5247 = vpop.f32.mrf.mxu0
        %v5248 = vadd.f32 %v5159, %v5247
        %v5249 = vpop.f32.mrf.mxu0
        %v5250 = vadd.f32 %v5161, %v5249
        %5251 = vmatmul.bf16.gmra.mxu0 %v3022
        %v5252 = vpop.f32.mrf.mxu0
        %v5253 = vadd.f32 %v5164, %v5252
        %v5254 = vpop.f32.mrf.mxu0
        %v5255 = vadd.f32 %v5166, %v5254
        %5256 = vmatmul.bf16.gmra.mxu0 %v3030
        %v5257 = vpop.f32.mrf.mxu0
        %v5258 = vadd.f32 %v5169, %v5257
        %v5259 = vpop.f32.mrf.mxu0
        %v5260 = vadd.f32 %v5171, %v5259
        %5261 = vmatmul.bf16.gmra.mxu0 %v3038
        %v5262 = vpop.f32.mrf.mxu0
        %v5263 = vadd.f32 %v5174, %v5262
        %v5264 = vpop.f32.mrf.mxu0
        %v5265 = vadd.f32 %v5176, %v5264
        %5266 = vmatmul.bf16.gmra.mxu0 %v3046
        %v5267 = vpop.f32.mrf.mxu0
        %v5268 = vadd.f32 %v5179, %v5267
        %v5269 = vpop.f32.mrf.mxu0
        %v5270 = vadd.f32 %v5181, %v5269
        %5271 = vmatmul.bf16.gmra.mxu0 %v3054
        %v5272 = vpop.f32.mrf.mxu0
        %v5273 = vadd.f32 %v5184, %v5272
        %v5274 = vpop.f32.mrf.mxu0
        %v5275 = vadd.f32 %v5186, %v5274
        %5276 = vmatmul.bf16.gmra.mxu0 %v3062
        %v5277 = vpop.f32.mrf.mxu0
        %v5278 = vadd.f32 %v5189, %v5277
        %v5279 = vpop.f32.mrf.mxu0
        %v5280 = vadd.f32 %v5191, %v5279
        %5281 = vmatmul.bf16.gmra.mxu0 %v3070
        %v5282 = vpop.f32.mrf.mxu0
        %v5283 = vadd.f32 %v5194, %v5282
        %v5284 = vpop.f32.mrf.mxu0
        %v5285 = vadd.f32 %v5196, %v5284
        %5286 = vmatmul.bf16.gmra.mxu0 %v3078
        %v5287 = vpop.f32.mrf.mxu0
        %v5288 = vadd.f32 %v5199, %v5287
        %v5289 = vpop.f32.mrf.mxu0
        %v5290 = vadd.f32 %v5201, %v5289
        %5291 = vmatmul.bf16.gmra.mxu0 %v3086
        %v5292 = vpop.f32.mrf.mxu0
        %v5293 = vadd.f32 %v5204, %v5292
        %v5294 = vpop.f32.mrf.mxu0
        %v5295 = vadd.f32 %v5206, %v5294
        %5296 = vmatmul.bf16.gmra.mxu0 %v3094
        %v5297 = vpop.f32.mrf.mxu0
        %v5298 = vadd.f32 %v5209, %v5297
        %v5299 = vpop.f32.mrf.mxu0
        %v5300 = vadd.f32 %v5211, %v5299
        %5301 = vmatmul.bf16.gmra.mxu0 %v3102
        %v5302 = vpop.f32.mrf.mxu0
        %v5303 = vadd.f32 %v5214, %v5302
        %v5304 = vpop.f32.mrf.mxu0
        %v5305 = vadd.f32 %v5216, %v5304
        %5306 = vmatmul.bf16.gmra.mxu0 %v3110
        %v5307 = vpop.f32.mrf.mxu0
        %v5308 = vadd.f32 %v5219, %v5307
        %v5309 = vpop.f32.mrf.mxu0
        %v5310 = vadd.f32 %v5221, %v5309
        %5311 = vdwg.mxu0
        %v5312 = vpack.c.bf16 %v5233, %v4521
        %v5313 = vpack.c.bf16 %v5235, %v4523
        %v5314 = vpack.c.bf16 %v5238, %v4526
        %v5315 = vpack.c.bf16 %v5240, %v4528
        %v5316 = vpack.c.bf16 %v5243, %v4531
        %v5317 = vpack.c.bf16 %v5245, %v4533
        %v5318 = vpack.c.bf16 %v5248, %v4536
        %v5319 = vpack.c.bf16 %v5250, %v4538
        %v5320 = vpack.c.bf16 %v5253, %v4541
        %v5321 = vpack.c.bf16 %v5255, %v4543
        %v5322 = vpack.c.bf16 %v5258, %v4546
        %v5323 = vpack.c.bf16 %v5260, %v4548
        %v5324 = vpack.c.bf16 %v5263, %v4551
        %v5325 = vpack.c.bf16 %v5265, %v4553
        %v5326 = vpack.c.bf16 %v5268, %v4556
        %v5327 = vpack.c.bf16 %v5270, %v4558
        %v5328 = vpack.c.bf16 %v5273, %v4561
        %v5329 = vpack.c.bf16 %v5275, %v4563
        %v5330 = vpack.c.bf16 %v5278, %v4566
        %v5331 = vpack.c.bf16 %v5280, %v4568
        %v5332 = vpack.c.bf16 %v5283, %v4571
        %v5333 = vpack.c.bf16 %v5285, %v4573
        %v5334 = vpack.c.bf16 %v5288, %v4576
        %v5335 = vpack.c.bf16 %v5290, %v4578
        %v5336 = vpack.c.bf16 %v5293, %v4581
        %v5337 = vpack.c.bf16 %v5295, %v4583
        %v5338 = vpack.c.bf16 %v5298, %v4586
        %v5339 = vpack.c.bf16 %v5300, %v4588
        %v5340 = vpack.c.bf16 %v5303, %v4591
        %v5341 = vpack.c.bf16 %v5305, %v4593
        %v5342 = vpack.c.bf16 %v5308, %v4596
        %v5343 = vpack.c.bf16 %v5310, %v4598
        %5344 = vst [vmem:[%s301] sm:$0xff] %v5312
        %5345 = vst [vmem:[%s301 + $0x8] sm:$0xff] %v5313
        %5346 = vst [vmem:[%s301 + $0x10] sm:$0xff] %v5314
        %5347 = vst [vmem:[%s301 + $0x18] sm:$0xff] %v5315
        %5348 = vst [vmem:[%s301 + $0x20] sm:$0xff] %v5316
        %5349 = vst [vmem:[%s301 + $0x28] sm:$0xff] %v5317
        %5350 = vst [vmem:[%s301 + $0x30] sm:$0xff] %v5318
        %5351 = vst [vmem:[%s301 + $0x38] sm:$0xff] %v5319
        %5352 = vst [vmem:[%s301 + $0x40] sm:$0xff] %v5320
        %5353 = vst [vmem:[%s301 + $0x48] sm:$0xff] %v5321
        %5354 = vst [vmem:[%s301 + $0x50] sm:$0xff] %v5322
        %5355 = vst [vmem:[%s301 + $0x58] sm:$0xff] %v5323
        %5356 = vst [vmem:[%s301 + $0x60] sm:$0xff] %v5324
        %5357 = vst [vmem:[%s301 + $0x68] sm:$0xff] %v5325
        %5358 = vst [vmem:[%s301 + $0x70] sm:$0xff] %v5326
        %5359 = vst [vmem:[%s301 + $0x78] sm:$0xff] %v5327
        %5360 = vst [vmem:[%s301 + $0x80] sm:$0xff] %v5328
        %5361 = vst [vmem:[%s301 + $0x88] sm:$0xff] %v5329
        %5362 = vst [vmem:[%s301 + $0x90] sm:$0xff] %v5330
        %5363 = vst [vmem:[%s301 + $0x98] sm:$0xff] %v5331
        %5364 = vst [vmem:[%s301 + $0xa0] sm:$0xff] %v5332
        %5365 = vst [vmem:[%s301 + $0xa8] sm:$0xff] %v5333
        %5366 = vst [vmem:[%s301 + $0xb0] sm:$0xff] %v5334
        %5367 = vst [vmem:[%s301 + $0xb8] sm:$0xff] %v5335
        %5368 = vst [vmem:[%s301 + $0xc0] sm:$0xff] %v5336
        %5369 = vst [vmem:[%s301 + $0xc8] sm:$0xff] %v5337
        %5370 = vst [vmem:[%s301 + $0xd0] sm:$0xff] %v5338
        %5371 = vst [vmem:[%s301 + $0xd8] sm:$0xff] %v5339
        %5372 = vst [vmem:[%s301 + $0xe0] sm:$0xff] %v5340
        %5373 = vst [vmem:[%s301 + $0xe8] sm:$0xff] %v5341
        %5374 = vst [vmem:[%s301 + $0xf0] sm:$0xff] %v5342
        %5375 = vst [vmem:[%s301 + $0xf8] sm:$0xff] %v5343
        %s5376 = sand.u32 %s142, 1
        %s5377 = scalar_lea.sflag [#allocation4], %s5376
        %s5378 = sand.u32 %s142, 1
        %s5379 = smul.addr %s5378, 256
        %s5380 = scalar_lea.vmem [#allocation10], %s5379
        // Predicated region
        $region57: #{tpu_custom_call.1} parent=39 // pred_check
          %p5381 = pneg %p152
        $region58: #{tpu_custom_call.1} parent=39 // pred_check_branch
          %5383 = sbr.rel (%p5381) target = $region60
        $region59: #{tpu_custom_call.1} parent=39 // pred_region
          %s5384 = smul.u32 32, %s24
          %s5385 = ssub.s32 50, %s5384
          %p5386 = scmp.lt.s32.totalorder %s5385, 32
          %s5387 = scalar_select %p5386, %s5385, 32
          %s5388 = smul.u32 4, %s5387
          %s5389 = smul.u32 %s5388, 2
          %s5390 = ssub.s32 256, %s5389
          %s5391 = sshll.u32 %s5390, 4
          %5392 = vsyncadd %s5377, %s5391
          %p5393 = scmp.ne.s32.totalorder 0, %s5389
          %s5394 = smul.addr %s5384, 2
          %s5395 = smul.addr %s5394, 4
          %s5396 = scalar_lea.hbm %s5, %s5395
          %s5397 = smul.u32 8, %s5387
          %s5398 = sshll.u32 %s5380, 4
          %s5399 = int_to_ptr.vmem [resolvable:$true] %s5398
          %s5400 = sshll.u32 %s5396, 4
          %s5401 = int_to_ptr.hbm [resolvable:$true] %s5400
          %s5402 = sshll.u32 %s5397, 4
          %5406 = dma.vmem_to_hbm [thread:$0]  (%p5393), %s5399, %s5402, %s5401, %s5377, 128, 128, 8
        $region60: #{tpu_custom_call.1} parent=39 // pred_fallthru
          _
      $region40: #{tpu_custom_call.1} parent=5 // pred_fallthru
        _
      %p5407 = scmp.le.s32.totalorder 2, %s19
      // Predicated region
      $region61: #{tpu_custom_call.1} parent=5 // pred_check
        %p5408 = pneg %p5407
      $region62: #{tpu_custom_call.1} parent=5 // pred_check_branch
        %5410 = sbr.rel (%p5408) target = $region64
      $region63: #{tpu_custom_call.1} parent=5 // pred_region
        %s5411 = ssub.s32 %s19, 2
        // Predicated region
        $region65: #{tpu_custom_call.1} parent=63 // pred_check
          %p5412 = pneg %p158
        $region66: #{tpu_custom_call.1} parent=63 // pred_check_branch
          %5414 = sbr.rel (%p5412) target = $region68
        $region67: #{tpu_custom_call.1} parent=63 // pred_region
          %s5415 = sand.u32 %s143, 1
          %s5416 = scalar_lea.sflag [#allocation4], %s5415
          %s5417 = sand.u32 %s143, 1
          %s5418 = smul.addr %s5417, 256
          %s5419 = scalar_lea.vmem [#allocation10], %s5418
          %5421 = dma.done %s5416, 4096
        $region68: #{tpu_custom_call.1} parent=63 // pred_fallthru
          _
      $region64: #{tpu_custom_call.1} parent=5 // pred_fallthru
        _
    $region6: #{tpu_custom_call.1} parent=1 // loop_footer
      %s23 = sadd.s32 1, %s19
    $region7: #{tpu_custom_call.1} parent=1 // loop_footer_branch
      %18 = sbr.rel target = $region3
    $region8: #{tpu_custom_call.1} parent=1 // loop_exit
      _
    %5422 = vsyncpa [#allocation3], 1
    %s5423 = scalar_lea.sflag [#allocation3], 1
    %5424 = vsyncpa %s5423, 1
    %5425 = vsyncpa [#allocation6], 1
    %5426 = vsyncpa [#allocation9], 1
    %5427 = vsyncpa [#allocation4], 1
    %s5428 = scalar_lea.sflag [#allocation4], 1
    %5429 = vsyncpa %s5428, 1

</llo_original>
